<compile_context>
chip_gen: v5e
topology: v5e:2x2
jax: 0.10.0
libtpu: 0.0.40
codegen_flags: <defaults>
</compile_context>

<pallas_src>
import functools

import numpy as np
import jax
import jax.numpy as jnp
from jax import lax
from jax.experimental import pallas as pl
from jax.experimental.pallas import tpu as pltpu


def _round_up(x, m):
    return ((x + m - 1) // m) * m


def _chunker_kernel(seq_length, tile_k,
                    sstart_ref, send_ref, sscore_ref,
                    gstart_ref, gend_ref, glabel_ref, gmask_ref,
                    tmask_ref, out_ref, st_ref):
    """Processes R batch rows per grid step.

    Scratch layout (r-major), st_ref is (R*LP, LP) f32:
        st_ref[r*LP + i, 0] = -S_r(i-1, i-1)
        st_ref[r*LP + i, j] =  S_r(start=j-1, end=i-1)   for j >= 1
    DP step i reads one (R, LP) slab via st_ref[pl.ds(i, R, stride=LP), :].
    """
    LP = st_ref.shape[1]
    R = st_ref.shape[0] // LP
    KP = sstart_ref.shape[1]
    L = seq_length
    TK = tile_k
    NT = KP // TK
    neg_inf = jnp.float32(-jnp.inf)

    # iotas / masks hoisted out of all loops (JAX does not CSE broadcasts)
    lane_iota = lax.broadcasted_iota(jnp.int32, (1, LP), 1)           # lane index j
    pos_col = lax.broadcasted_iota(jnp.int32, (LP, 1), 0) - 1         # pos[p] = p - 1
    col_iota2 = lax.broadcasted_iota(jnp.int32, (LP, LP), 1)
    eye_mask = lax.broadcasted_iota(jnp.int32, (LP, LP), 0) == col_iota2
    zero_col = col_iota2 == 0
    r_iota = lax.broadcasted_iota(jnp.int32, (R, 1), 0)
    dn = (((1,), (1,)), ((), ()))                                     # A @ B.T

    num_acc = jnp.zeros((R, 1), jnp.float32)

    # ---- per-row dense span-score table: K-tiled bf16 (hi+lo) one-hot matmuls ----
    for r in range(R):
        table = jnp.zeros((LP, LP), jnp.float32)
        for t in range(NT):
            k0 = t * TK
            starts = sstart_ref[pl.ds(r, 1), pl.ds(k0, TK)]           # (1, TK) int32
            ends = send_ref[pl.ds(r, 1), pl.ds(k0, TK)]               # (1, TK) int32
            scores = sscore_ref[pl.ds(r, 1), pl.ds(k0, TK)]           # (1, TK) f32
            oh_s = (starts == pos_col).astype(jnp.float32).astype(jnp.bfloat16)  # (LP,TK)
            w_e = jnp.where(ends == pos_col, scores, 0.0)             # (LP, TK) f32
            w_hi = w_e.astype(jnp.bfloat16)
            w_lo = (w_e - w_hi.astype(jnp.float32)).astype(jnp.bfloat16)
            table = table + lax.dot_general(w_hi, oh_s, dn,
                                            preferred_element_type=jnp.float32)
            table = table + lax.dot_general(w_lo, oh_s, dn,
                                            preferred_element_type=jnp.float32)
        # diagonal S(i-1, i-1) extracted from the accumulated table (K-independent)
        diag_col = jnp.sum(jnp.where(eye_mask, table, 0.0), axis=1, keepdims=True)
        table = jnp.where(zero_col, -diag_col, table)                 # column 0 := -diag

        # ---- numerator: gold-span lookup into the table (only columns >= 1 used) ----
        g_start = gstart_ref[r]                                       # (GP, 1) int32
        g_end = gend_ref[r]                                           # (GP, 1) int32
        oh_ge = (g_end + 1 == lane_iota).astype(jnp.float32)          # (GP, LP)
        oh_gs = (g_start + 1 == lane_iota).astype(jnp.float32)        # (GP, LP)
        rows_g = jnp.dot(oh_ge, table, preferred_element_type=jnp.float32)   # (GP, LP)
        contrib = jnp.sum(rows_g * oh_gs, axis=1, keepdims=True)             # (GP, 1)
        w_r = gmask_ref[r] * (2.0 * glabel_ref[r] - 1.0)                     # (GP, 1)
        num_r = jnp.sum(contrib * w_r, axis=0, keepdims=True)                # (1, 1)
        num_acc = num_acc + jnp.where(r_iota == r, num_r, 0.0)

        st_ref[pl.ds(r * LP, LP), :] = table

    # ---- forward DP (denominator), vectorized across the R rows ----
    tmask = tmask_ref[...]                                            # (R, LP), col 0 == 1
    # token mask assumed to be a contiguous 0/1 prefix (same assumption as reference)
    seq_len = (jnp.sum(tmask, axis=1, keepdims=True) - 1.0).astype(jnp.int32)   # (R, 1)

    # beta[i]   = logsumexp_j alpha[i-1, j<i];  beta[1] = 0
    # alpha[i,0] = beta[i] + st[i,0];  alpha[i,j] = beta[j] + st[i,j]  (1 <= j <= i)
    def body(i, carry):
        beta_vec, beta_cur, cap = carry
        st_rows = st_ref[pl.ds(i, R, stride=LP), :]                   # (R, LP) slab
        row = jnp.where(lane_iota == 0, beta_cur, beta_vec) + st_rows
        cap = jnp.where(seq_len == i, row, cap)                       # alpha[seq_len, :]
        v = jnp.where(lane_iota <= i, row, neg_inf)
        mx = jnp.max(v, axis=1, keepdims=True)
        lse = mx + jnp.log(jnp.sum(jnp.exp(v - mx), axis=1, keepdims=True))   # beta[i+1]
        # NOTE: when LP == L+1 the write of beta[L+1] falls off the lane range and is
        # dropped; it is never read (the final row is captured via `cap`).
        beta_vec = jnp.where(lane_iota == i + 1, lse, beta_vec)
        return beta_vec, lse, cap

    init = (jnp.zeros((R, LP), jnp.float32),   # beta vector (beta[1] = 0)
            jnp.zeros((R, 1), jnp.float32),    # beta_cur = beta[1] = 0
            jnp.zeros((R, LP), jnp.float32))   # alpha[seq_len, :] capture
    _, _, cap = lax.fori_loop(1, L + 1, body, init,
                              unroll=True if L <= 32 else 8)

    selected = jnp.where(lane_iota <= seq_len, cap, 0.0)
    total = selected + jnp.log(tmask)                                 # log(0) kills padding
    mx = jnp.max(total, axis=1, keepdims=True)
    log_denom = mx + jnp.log(jnp.sum(jnp.exp(total - mx), axis=1, keepdims=True))   # (R,1)

    out_ref[...] = jnp.broadcast_to(num_acc - log_denom, out_ref.shape)


def span_based_chunker(spans, span_scores, gold_spans, gold_span_labels,
                       span_mask, gold_span_mask, token_mask):
    """Pallas implementation of SpanBasedChunker.forward -> scalar."""
    del span_mask  # unused by the PyTorch forward pass as well
    B, K, _ = spans.shape
    G = gold_spans.shape[1]
    L = token_mask.shape[1]

    R = 8                                    # batch rows per grid step (sublane batching)
    BP = _round_up(max(B, 1), R)
    KP = _round_up(max(K, 1), 128)
    GP = _round_up(max(G, 1), 8)
    LP = _round_up(L + 1, 128)
    TK = next(c for c in (512, 256, 128) if KP % c == 0)   # K-tile width

    def bpad(x, value):
        pad = BP - x.shape[0]
        if pad:
            cfg = [(0, pad)] + [(0, 0)] * (x.ndim - 1)
            x = jnp.pad(x, cfg, constant_values=value)
        return x

    def lane_pad(x, target, value, dtype):
        x = x.astype(dtype)
        pad = target - x.shape[-1]
        if pad:
            x = jnp.pad(x, ((0, 0), (0, pad)), constant_values=value)
        return x

    # batch padding: rows beyond B contribute exactly 0 (and are dropped in the sum)
    spans_p = bpad(spans.astype(jnp.int32), -2)
    scores_p = bpad(span_scores.astype(jnp.float32), 0.0)
    gold_p = bpad(gold_spans.astype(jnp.int32), -3)
    glab_p = bpad(gold_span_labels.astype(jnp.float32), 0.0)
    gmask_p = bpad(gold_span_mask.astype(jnp.float32), 0.0)
    tok_p = bpad(token_mask.astype(jnp.float32), 0.0)

    # padded candidates: start/end -2 never match any position; scores 0.
    span_starts = lane_pad(spans_p[:, :, 0], KP, -2, jnp.int32)       # (BP, KP)
    span_ends = lane_pad(spans_p[:, :, 1], KP, -2, jnp.int32)
    scores = lane_pad(scores_p, KP, 0.0, jnp.float32)
    # padded gold spans: -3 never matches; mask 0.  Gold carries g on sublanes.
    gold_starts = lane_pad(gold_p[:, :, 0], GP, -3, jnp.int32)[..., None]   # (BP, GP, 1)
    gold_ends = lane_pad(gold_p[:, :, 1], GP, -3, jnp.int32)[..., None]
    glabels = lane_pad(glab_p, GP, 0.0, jnp.float32)[..., None]
    gmask = lane_pad(gmask_p, GP, 0.0, jnp.float32)[..., None]

    tmask_full = jnp.concatenate([jnp.ones((BP, 1), jnp.float32), tok_p], axis=1)
    tmask = lane_pad(tmask_full, LP, 0.0, jnp.float32)                # (BP, LP)

    kernel = functools.partial(_chunker_kernel, L, TK)

    # VMEM budget from the actual buffers (+30% headroom), clamped below v7x's 64 MiB.
    st_bytes = R * LP * LP * 4
    io_bytes = 2 * R * (3 * KP * 4 + 4 * GP * 4 + LP * 4 + 128 * 4)
    tmp_bytes = 2 * LP * LP * 4 + LP * TK * 4 + 3 * LP * TK * 2 + 8 * R * LP * 4
    vmem_limit = int(min(56 * 2**20,
                         max(16 * 2**20, int(1.3 * (st_bytes + io_bytes + tmp_bytes)))))

    out = pl.pallas_call(
        kernel,
        out_shape=jax.ShapeDtypeStruct((BP, 128), jnp.float32),
        grid_spec=pltpu.PrefetchScalarGridSpec(
            num_scalar_prefetch=0,
            grid=(BP // R,),
            in_specs=[pl.BlockSpec((R, KP), lambda b: (b, 0)),
                      pl.BlockSpec((R, KP), lambda b: (b, 0)),
                      pl.BlockSpec((R, KP), lambda b: (b, 0)),
                      pl.BlockSpec((R, GP, 1), lambda b: (b, 0, 0)),
                      pl.BlockSpec((R, GP, 1), lambda b: (b, 0, 0)),
                      pl.BlockSpec((R, GP, 1), lambda b: (b, 0, 0)),
                      pl.BlockSpec((R, GP, 1), lambda b: (b, 0, 0)),
                      pl.BlockSpec((R, LP), lambda b: (b, 0))],
            out_specs=pl.BlockSpec((R, 128), lambda b: (b, 0)),
            scratch_shapes=[pltpu.VMEM((R * LP, LP), jnp.float32)]),
        compiler_params=pltpu.CompilerParams(
            dimension_semantics=("parallel",),
            vmem_limit_bytes=vmem_limit),
    )(span_starts, span_ends, scores, gold_starts, gold_ends, glabels, gmask, tmask)

    return jnp.sum(out[:B, 0])


# ---- pure numpy reference (mirrors the PyTorch code) for a correctness check ----
def _reference(spans, span_scores, gold_spans, gold_labels, gold_mask, token_mask):
    spans = np.asarray(spans)
    scores = np.asarray(span_scores, np.float64)
    gold_spans = np.asarray(gold_spans)
    gold_labels = np.asarray(gold_labels, np.float64)
    gold_mask = np.asarray(gold_mask, np.float64)
    token_mask = np.asarray(token_mask, np.float64)
    B, L = token_mask.shape

    def S(b, s, e):
        m = (spans[b, :, 0] == s) & (spans[b, :, 1] == e)
        return float(np.sum(np.where(m, scores[b], 0.0)))

    def lse(x):
        mx = np.max(x)
        return mx + np.log(np.sum(np.exp(x - mx)))

    alpha = np.zeros((L + 1, B, L + 1))
    for b in range(B):
        alpha[1, b, 0] = -S(b, 0, 0)
        alpha[1, b, 1] = S(b, 0, 0)
    for i in range(2, L + 1):
        for b in range(B):
            alpha[i, b, 0] = lse(alpha[i - 1, b, :i] - S(b, i - 1, i - 1))
            for j in range(1, i + 1):
                alpha[i, b, j] = lse(alpha[j - 1, b, :j] + S(b, j - 1, i - 1))

    with np.errstate(divide="ignore"):
        logmask = np.log(token_mask)
    out = 0.0
    G = gold_spans.shape[1]
    for b in range(B):
        sl = int(token_mask[b].sum())
        total = alpha[sl, b, :].copy()
        total[1:] += logmask[b]
        denom = lse(total)
        num = 0.0
        for g in range(G):
            num += S(b, int(gold_spans[b, g, 0]), int(gold_spans[b, g, 1])) \
                   * gold_mask[b, g] * (2.0 * gold_labels[b, g] - 1.0)
        out += num - denom
    return float(out)


if __name__ == "__main__":
    B, L = 2, 8
    # all candidate spans with start <= end  -> K = L*(L+1)/2 = 36
    span_list = [(s, e) for s in range(L) for e in range(s, L)]
    K = len(span_list)
    spans = jnp.asarray(np.tile(np.asarray(span_list, np.int32)[None], (B, 1, 1)))   # (B, K, 2)

    key = jax.random.PRNGKey(0)
    span_scores = jax.random.normal(key, (B, K), dtype=jnp.float32)                  # (B, K)
    span_mask = jnp.ones((B, K), jnp.float32)                                        # unused in fwd

    gold_spans = jnp.asarray(np.asarray([[[0, 1], [2, 2], [4, 7]],
                                         [[0, 0], [1, 3], [0, 0]]], np.int32))       # (B, 3, 2)
    gold_span_labels = jnp.asarray(np.asarray([[1., 0., 1.],
                                               [1., 1., 0.]], np.float32))           # (B, 3)
    gold_span_mask = jnp.asarray(np.asarray([[1., 1., 1.],
                                             [1., 1., 0.]], np.float32))             # (B, 3)
    token_mask = jnp.asarray(np.asarray([[1.] * 8,
                                         [1.] * 6 + [0.] * 2], np.float32))          # (B, L)

    result = span_based_chunker(spans, span_scores, gold_spans, gold_span_labels,
                                span_mask, gold_span_mask, token_mask)
    result = jax.block_until_ready(result)

    ref = _reference(spans, span_scores, gold_spans, gold_span_labels,
                     gold_span_mask, token_mask)
    if (not np.isfinite(float(result))) or \
       abs(float(result) - ref) > 1e-3 * max(1.0, abs(ref)):
        raise AssertionError(f"mismatch: kernel={float(result)} ref={ref}")

    print("KERNEL_OK")
</pallas_src>

<mosaic_0001>
module attributes {stable_mosaic.version = 11 : i64} {
  func.func @_chunker_kernel(%arg0: i32, %arg1: memref<8x128xi32, #tpu.memory_space<vmem>>, %arg2: memref<8x128xi32, #tpu.memory_space<vmem>>, %arg3: memref<8x128xf32, #tpu.memory_space<vmem>>, %arg4: memref<8x8x1xi32, #tpu.memory_space<vmem>>, %arg5: memref<8x8x1xi32, #tpu.memory_space<vmem>>, %arg6: memref<8x8x1xf32, #tpu.memory_space<vmem>>, %arg7: memref<8x8x1xf32, #tpu.memory_space<vmem>>, %arg8: memref<8x128xf32, #tpu.memory_space<vmem>>, %arg9: memref<8x128xf32, #tpu.memory_space<vmem>>, %arg10: memref<1024x128xf32, #tpu.memory_space<vmem>>) attributes {dimension_semantics = [#tpu.dimension_semantics<parallel>], iteration_bounds = array<i64: 1>, scalar_prefetch = 0 : i64, scratch_operands = 1 : i64, tpu.core_type = #tpu.core_type<tc>, window_params = [{transform_indices = @transform_0, window_bounds = array<i64: 8, 128>}, {transform_indices = @transform_1, window_bounds = array<i64: 8, 128>}, {transform_indices = @transform_2, window_bounds = array<i64: 8, 128>}, {transform_indices = @transform_3, window_bounds = array<i64: 8, 8, 1>}, {transform_indices = @transform_4, window_bounds = array<i64: 8, 8, 1>}, {transform_indices = @transform_5, window_bounds = array<i64: 8, 8, 1>}, {transform_indices = @transform_6, window_bounds = array<i64: 8, 8, 1>}, {transform_indices = @transform_7, window_bounds = array<i64: 8, 128>}, {transform_indices = @transform_8, window_bounds = array<i64: 8, 128>}]} {
    %0 = tpu.iota {dimensions = array<i32: 1>} : vector<1x128xi32>
    %1 = tpu.iota {dimensions = array<i32: 0>} : vector<128x1xi32>
    %c1_i32 = arith.constant 1 : i32
    %2 = vector.broadcast %c1_i32 : i32 to vector<128x1xi32>
    %3 = arith.subi %1, %2 : vector<128x1xi32>
    %4 = tpu.iota {dimensions = array<i32: 1>} : vector<128x128xi32>
    %5 = tpu.iota {dimensions = array<i32: 0>} : vector<128x128xi32>
    %6 = arith.cmpi eq, %5, %4 : vector<128x128xi32>
    %c0_i32 = arith.constant 0 : i32
    %7 = vector.broadcast %c0_i32 : i32 to vector<128x128xi32>
    %8 = arith.cmpi eq, %4, %7 : vector<128x128xi32>
    %9 = tpu.iota {dimensions = array<i32: 0>} : vector<8x1xi32>
    %cst = arith.constant 0.000000e+00 : f32
    %10 = vector.broadcast %cst : f32 to vector<8x1xf32>
    %cst_0 = arith.constant 0.000000e+00 : f32
    %11 = vector.broadcast %cst_0 : f32 to vector<128x128xf32>
    %c0 = arith.constant 0 : index
    %c0_1 = arith.constant 0 : index
    %12 = vector.load %arg1[%c0, %c0_1] : memref<8x128xi32, #tpu.memory_space<vmem>>, vector<1x128xi32>
    %c0_2 = arith.constant 0 : index
    %c0_3 = arith.constant 0 : index
    %13 = vector.load %arg2[%c0_2, %c0_3] : memref<8x128xi32, #tpu.memory_space<vmem>>, vector<1x128xi32>
    %c0_4 = arith.constant 0 : index
    %c0_5 = arith.constant 0 : index
    %14 = vector.load %arg3[%c0_4, %c0_5] : memref<8x128xf32, #tpu.memory_space<vmem>>, vector<1x128xf32>
    %15 = vector.broadcast %12 : vector<1x128xi32> to vector<128x128xi32>
    %16 = vector.broadcast %3 : vector<128x1xi32> to vector<128x128xi32>
    %17 = arith.cmpi eq, %15, %16 : vector<128x128xi32>
    %18 = arith.extui %17 : vector<128x128xi1> to vector<128x128xi32>
    %19 = arith.sitofp %18 : vector<128x128xi32> to vector<128x128xf32>
    %20 = arith.truncf %19 : vector<128x128xf32> to vector<128x128xbf16>
    %21 = vector.broadcast %13 : vector<1x128xi32> to vector<128x128xi32>
    %22 = vector.broadcast %3 : vector<128x1xi32> to vector<128x128xi32>
    %23 = arith.cmpi eq, %21, %22 : vector<128x128xi32>
    %cst_6 = arith.constant 0.000000e+00 : f32
    %24 = vector.shape_cast %14 : vector<1x128xf32> to vector<1x128xf32>
    %25 = vector.broadcast %24 : vector<1x128xf32> to vector<128x128xf32>
    %26 = vector.broadcast %cst_6 : f32 to vector<128x128xf32>
    %27 = arith.select %23, %25, %26 : vector<128x128xi1>, vector<128x128xf32>
    %28 = arith.truncf %27 : vector<128x128xf32> to vector<128x128xbf16>
    %29 = arith.extf %28 : vector<128x128xbf16> to vector<128x128xf32>
    %30 = arith.subf %27, %29 : vector<128x128xf32>
    %31 = arith.truncf %30 : vector<128x128xf32> to vector<128x128xbf16>
    %cst_7 = arith.constant dense<0.000000e+00> : vector<128x128xf32>
    %32 = tpu.matmul %28, %20, %cst_7 {dimension_numbers = #tpu.dot_dimension_numbers<[1], [1], [0], [0], [0, 0, 1, 0], [], []>} : vector<128x128xbf16>, vector<128x128xbf16>, vector<128x128xf32> -> vector<128x128xf32>
    %33 = arith.addf %11, %32 : vector<128x128xf32>
    %cst_8 = arith.constant dense<0.000000e+00> : vector<128x128xf32>
    %34 = tpu.matmul %31, %20, %cst_8 {dimension_numbers = #tpu.dot_dimension_numbers<[1], [1], [0], [0], [0, 0, 1, 0], [], []>} : vector<128x128xbf16>, vector<128x128xbf16>, vector<128x128xf32> -> vector<128x128xf32>
    %35 = arith.addf %33, %34 : vector<128x128xf32>
    %cst_9 = arith.constant 0.000000e+00 : f32
    %36 = vector.broadcast %cst_9 : f32 to vector<128x128xf32>
    %37 = arith.select %6, %35, %36 : vector<128x128xi1>, vector<128x128xf32>
    %cst_10 = arith.constant dense<0.000000e+00> : vector<128xf32>
    %38 = vector.multi_reduction <add>, %37, %cst_10 [1] : vector<128x128xf32> to vector<128xf32>
    %39 = vector.shape_cast %38 : vector<128xf32> to vector<128x1xf32>
    %cst_11 = arith.constant 0.000000e+00 : f32
    %40 = vector.broadcast %cst_11 : f32 to vector<128x1xf32>
    %41 = arith.subf %40, %39 : vector<128x1xf32>
    %42 = vector.shape_cast %41 : vector<128x1xf32> to vector<128x1xf32>
    %43 = vector.broadcast %42 : vector<128x1xf32> to vector<128x128xf32>
    %44 = arith.select %8, %43, %35 : vector<128x128xi1>, vector<128x128xf32>
    %c0_12 = arith.constant 0 : index
    %c0_13 = arith.constant 0 : index
    %c0_14 = arith.constant 0 : index
    %45 = vector.load %arg4[%c0_12, %c0_13, %c0_14] : memref<8x8x1xi32, #tpu.memory_space<vmem>>, vector<1x8x1xi32>
    %46 = vector.shape_cast %45 : vector<1x8x1xi32> to vector<8x1xi32>
    %c0_15 = arith.constant 0 : index
    %c0_16 = arith.constant 0 : index
    %c0_17 = arith.constant 0 : index
    %47 = vector.load %arg5[%c0_15, %c0_16, %c0_17] : memref<8x8x1xi32, #tpu.memory_space<vmem>>, vector<1x8x1xi32>
    %48 = vector.shape_cast %47 : vector<1x8x1xi32> to vector<8x1xi32>
    %c1_i32_18 = arith.constant 1 : i32
    %49 = vector.broadcast %c1_i32_18 : i32 to vector<8x1xi32>
    %50 = arith.addi %48, %49 : vector<8x1xi32>
    %51 = vector.broadcast %50 : vector<8x1xi32> to vector<8x128xi32>
    %52 = vector.broadcast %0 : vector<1x128xi32> to vector<8x128xi32>
    %53 = arith.cmpi eq, %51, %52 : vector<8x128xi32>
    %54 = arith.extui %53 : vector<8x128xi1> to vector<8x128xi32>
    %55 = arith.sitofp %54 : vector<8x128xi32> to vector<8x128xf32>
    %c1_i32_19 = arith.constant 1 : i32
    %56 = vector.broadcast %c1_i32_19 : i32 to vector<8x1xi32>
    %57 = arith.addi %46, %56 : vector<8x1xi32>
    %58 = vector.broadcast %57 : vector<8x1xi32> to vector<8x128xi32>
    %59 = vector.broadcast %0 : vector<1x128xi32> to vector<8x128xi32>
    %60 = arith.cmpi eq, %58, %59 : vector<8x128xi32>
    %61 = arith.extui %60 : vector<8x128xi1> to vector<8x128xi32>
    %62 = arith.sitofp %61 : vector<8x128xi32> to vector<8x128xf32>
    %cst_20 = arith.constant dense<0.000000e+00> : vector<8x128xf32>
    %63 = tpu.matmul %55, %44, %cst_20 {dimension_numbers = #tpu.dot_dimension_numbers<[1], [0], [0], [1], [0, 0, 1, 1], [], []>} : vector<8x128xf32>, vector<128x128xf32>, vector<8x128xf32> -> vector<8x128xf32>
    %64 = arith.mulf %63, %62 : vector<8x128xf32>
    %cst_21 = arith.constant dense<0.000000e+00> : vector<8xf32>
    %65 = vector.multi_reduction <add>, %64, %cst_21 [1] : vector<8x128xf32> to vector<8xf32>
    %66 = vector.shape_cast %65 : vector<8xf32> to vector<8x1xf32>
    %c0_22 = arith.constant 0 : index
    %c0_23 = arith.constant 0 : index
    %c0_24 = arith.constant 0 : index
    %67 = vector.load %arg7[%c0_22, %c0_23, %c0_24] : memref<8x8x1xf32, #tpu.memory_space<vmem>>, vector<1x8x1xf32>
    %68 = vector.shape_cast %67 : vector<1x8x1xf32> to vector<8x1xf32>
    %c0_25 = arith.constant 0 : index
    %c0_26 = arith.constant 0 : index
    %c0_27 = arith.constant 0 : index
    %69 = vector.load %arg6[%c0_25, %c0_26, %c0_27] : memref<8x8x1xf32, #tpu.memory_space<vmem>>, vector<1x8x1xf32>
    %70 = vector.shape_cast %69 : vector<1x8x1xf32> to vector<8x1xf32>
    %cst_28 = arith.constant 2.000000e+00 : f32
    %71 = vector.broadcast %cst_28 : f32 to vector<8x1xf32>
    %72 = arith.mulf %71, %70 : vector<8x1xf32>
    %cst_29 = arith.constant 1.000000e+00 : f32
    %73 = vector.broadcast %cst_29 : f32 to vector<8x1xf32>
    %74 = arith.subf %72, %73 : vector<8x1xf32>
    %75 = arith.mulf %68, %74 : vector<8x1xf32>
    %76 = arith.mulf %66, %75 : vector<8x1xf32>
    %cst_30 = arith.constant dense<0.000000e+00> : vector<1xf32>
    %77 = vector.multi_reduction <add>, %76, %cst_30 [0] : vector<8x1xf32> to vector<1xf32>
    %78 = vector.shape_cast %77 : vector<1xf32> to vector<1x1xf32>
    %c0_i32_31 = arith.constant 0 : i32
    %79 = vector.broadcast %c0_i32_31 : i32 to vector<8x1xi32>
    %80 = arith.cmpi eq, %9, %79 : vector<8x1xi32>
    %cst_32 = arith.constant 0.000000e+00 : f32
    %81 = vector.shape_cast %78 : vector<1x1xf32> to vector<1x1xf32>
    %82 = vector.broadcast %81 : vector<1x1xf32> to vector<8x1xf32>
    %83 = vector.broadcast %cst_32 : f32 to vector<8x1xf32>
    %84 = arith.select %80, %82, %83 : vector<8x1xi1>, vector<8x1xf32>
    %85 = arith.addf %10, %84 : vector<8x1xf32>
    %c0_33 = arith.constant 0 : index
    %c0_34 = arith.constant 0 : index
    %86 = vector.load %arg10[%c0_33, %c0_34] : memref<1024x128xf32, #tpu.memory_space<vmem>>, vector<128x128xf32>
    tpu.vector_store %arg10[%c0_33, %c0_34], %44 {strides = array<i32>} : memref<1024x128xf32, #tpu.memory_space<vmem>>, vector<128x128xf32>,
    %cst_35 = arith.constant 0.000000e+00 : f32
    %87 = vector.broadcast %cst_35 : f32 to vector<128x128xf32>
    %c1 = arith.constant 1 : index
    %c0_36 = arith.constant 0 : index
    %88 = vector.load %arg1[%c1, %c0_36] : memref<8x128xi32, #tpu.memory_space<vmem>>, vector<1x128xi32>
    %c1_37 = arith.constant 1 : index
    %c0_38 = arith.constant 0 : index
    %89 = vector.load %arg2[%c1_37, %c0_38] : memref<8x128xi32, #tpu.memory_space<vmem>>, vector<1x128xi32>
    %c1_39 = arith.constant 1 : index
    %c0_40 = arith.constant 0 : index
    %90 = vector.load %arg3[%c1_39, %c0_40] : memref<8x128xf32, #tpu.memory_space<vmem>>, vector<1x128xf32>
    %91 = vector.broadcast %88 : vector<1x128xi32> to vector<128x128xi32>
    %92 = vector.broadcast %3 : vector<128x1xi32> to vector<128x128xi32>
    %93 = arith.cmpi eq, %91, %92 : vector<128x128xi32>
    %94 = arith.extui %93 : vector<128x128xi1> to vector<128x128xi32>
    %95 = arith.sitofp %94 : vector<128x128xi32> to vector<128x128xf32>
    %96 = arith.truncf %95 : vector<128x128xf32> to vector<128x128xbf16>
    %97 = vector.broadcast %89 : vector<1x128xi32> to vector<128x128xi32>
    %98 = vector.broadcast %3 : vector<128x1xi32> to vector<128x128xi32>
    %99 = arith.cmpi eq, %97, %98 : vector<128x128xi32>
    %cst_41 = arith.constant 0.000000e+00 : f32
    %100 = vector.shape_cast %90 : vector<1x128xf32> to vector<1x128xf32>
    %101 = vector.broadcast %100 : vector<1x128xf32> to vector<128x128xf32>
    %102 = vector.broadcast %cst_41 : f32 to vector<128x128xf32>
    %103 = arith.select %99, %101, %102 : vector<128x128xi1>, vector<128x128xf32>
    %104 = arith.truncf %103 : vector<128x128xf32> to vector<128x128xbf16>
    %105 = arith.extf %104 : vector<128x128xbf16> to vector<128x128xf32>
    %106 = arith.subf %103, %105 : vector<128x128xf32>
    %107 = arith.truncf %106 : vector<128x128xf32> to vector<128x128xbf16>
    %cst_42 = arith.constant dense<0.000000e+00> : vector<128x128xf32>
    %108 = tpu.matmul %104, %96, %cst_42 {dimension_numbers = #tpu.dot_dimension_numbers<[1], [1], [0], [0], [0, 0, 1, 0], [], []>} : vector<128x128xbf16>, vector<128x128xbf16>, vector<128x128xf32> -> vector<128x128xf32>
    %109 = arith.addf %87, %108 : vector<128x128xf32>
    %cst_43 = arith.constant dense<0.000000e+00> : vector<128x128xf32>
    %110 = tpu.matmul %107, %96, %cst_43 {dimension_numbers = #tpu.dot_dimension_numbers<[1], [1], [0], [0], [0, 0, 1, 0], [], []>} : vector<128x128xbf16>, vector<128x128xbf16>, vector<128x128xf32> -> vector<128x128xf32>
    %111 = arith.addf %109, %110 : vector<128x128xf32>
    %cst_44 = arith.constant 0.000000e+00 : f32
    %112 = vector.broadcast %cst_44 : f32 to vector<128x128xf32>
    %113 = arith.select %6, %111, %112 : vector<128x128xi1>, vector<128x128xf32>
    %cst_45 = arith.constant dense<0.000000e+00> : vector<128xf32>
    %114 = vector.multi_reduction <add>, %113, %cst_45 [1] : vector<128x128xf32> to vector<128xf32>
    %115 = vector.shape_cast %114 : vector<128xf32> to vector<128x1xf32>
    %cst_46 = arith.constant 0.000000e+00 : f32
    %116 = vector.broadcast %cst_46 : f32 to vector<128x1xf32>
    %117 = arith.subf %116, %115 : vector<128x1xf32>
    %118 = vector.shape_cast %117 : vector<128x1xf32> to vector<128x1xf32>
    %119 = vector.broadcast %118 : vector<128x1xf32> to vector<128x128xf32>
    %120 = arith.select %8, %119, %111 : vector<128x128xi1>, vector<128x128xf32>
    %c1_47 = arith.constant 1 : index
    %c0_48 = arith.constant 0 : index
    %c0_49 = arith.constant 0 : index
    %121 = vector.load %arg4[%c1_47, %c0_48, %c0_49] : memref<8x8x1xi32, #tpu.memory_space<vmem>>, vector<1x8x1xi32>
    %122 = vector.shape_cast %121 : vector<1x8x1xi32> to vector<8x1xi32>
    %c1_50 = arith.constant 1 : index
    %c0_51 = arith.constant 0 : index
    %c0_52 = arith.constant 0 : index
    %123 = vector.load %arg5[%c1_50, %c0_51, %c0_52] : memref<8x8x1xi32, #tpu.memory_space<vmem>>, vector<1x8x1xi32>
    %124 = vector.shape_cast %123 : vector<1x8x1xi32> to vector<8x1xi32>
    %c1_i32_53 = arith.constant 1 : i32
    %125 = vector.broadcast %c1_i32_53 : i32 to vector<8x1xi32>
    %126 = arith.addi %124, %125 : vector<8x1xi32>
    %127 = vector.broadcast %126 : vector<8x1xi32> to vector<8x128xi32>
    %128 = vector.broadcast %0 : vector<1x128xi32> to vector<8x128xi32>
    %129 = arith.cmpi eq, %127, %128 : vector<8x128xi32>
    %130 = arith.extui %129 : vector<8x128xi1> to vector<8x128xi32>
    %131 = arith.sitofp %130 : vector<8x128xi32> to vector<8x128xf32>
    %c1_i32_54 = arith.constant 1 : i32
    %132 = vector.broadcast %c1_i32_54 : i32 to vector<8x1xi32>
    %133 = arith.addi %122, %132 : vector<8x1xi32>
    %134 = vector.broadcast %133 : vector<8x1xi32> to vector<8x128xi32>
    %135 = vector.broadcast %0 : vector<1x128xi32> to vector<8x128xi32>
    %136 = arith.cmpi eq, %134, %135 : vector<8x128xi32>
    %137 = arith.extui %136 : vector<8x128xi1> to vector<8x128xi32>
    %138 = arith.sitofp %137 : vector<8x128xi32> to vector<8x128xf32>
    %cst_55 = arith.constant dense<0.000000e+00> : vector<8x128xf32>
    %139 = tpu.matmul %131, %120, %cst_55 {dimension_numbers = #tpu.dot_dimension_numbers<[1], [0], [0], [1], [0, 0, 1, 1], [], []>} : vector<8x128xf32>, vector<128x128xf32>, vector<8x128xf32> -> vector<8x128xf32>
    %140 = arith.mulf %139, %138 : vector<8x128xf32>
    %cst_56 = arith.constant dense<0.000000e+00> : vector<8xf32>
    %141 = vector.multi_reduction <add>, %140, %cst_56 [1] : vector<8x128xf32> to vector<8xf32>
    %142 = vector.shape_cast %141 : vector<8xf32> to vector<8x1xf32>
    %c1_57 = arith.constant 1 : index
    %c0_58 = arith.constant 0 : index
    %c0_59 = arith.constant 0 : index
    %143 = vector.load %arg7[%c1_57, %c0_58, %c0_59] : memref<8x8x1xf32, #tpu.memory_space<vmem>>, vector<1x8x1xf32>
    %144 = vector.shape_cast %143 : vector<1x8x1xf32> to vector<8x1xf32>
    %c1_60 = arith.constant 1 : index
    %c0_61 = arith.constant 0 : index
    %c0_62 = arith.constant 0 : index
    %145 = vector.load %arg6[%c1_60, %c0_61, %c0_62] : memref<8x8x1xf32, #tpu.memory_space<vmem>>, vector<1x8x1xf32>
    %146 = vector.shape_cast %145 : vector<1x8x1xf32> to vector<8x1xf32>
    %cst_63 = arith.constant 2.000000e+00 : f32
    %147 = vector.broadcast %cst_63 : f32 to vector<8x1xf32>
    %148 = arith.mulf %147, %146 : vector<8x1xf32>
    %cst_64 = arith.constant 1.000000e+00 : f32
    %149 = vector.broadcast %cst_64 : f32 to vector<8x1xf32>
    %150 = arith.subf %148, %149 : vector<8x1xf32>
    %151 = arith.mulf %144, %150 : vector<8x1xf32>
    %152 = arith.mulf %142, %151 : vector<8x1xf32>
    %cst_65 = arith.constant dense<0.000000e+00> : vector<1xf32>
    %153 = vector.multi_reduction <add>, %152, %cst_65 [0] : vector<8x1xf32> to vector<1xf32>
    %154 = vector.shape_cast %153 : vector<1xf32> to vector<1x1xf32>
    %c1_i32_66 = arith.constant 1 : i32
    %155 = vector.broadcast %c1_i32_66 : i32 to vector<8x1xi32>
    %156 = arith.cmpi eq, %9, %155 : vector<8x1xi32>
    %cst_67 = arith.constant 0.000000e+00 : f32
    %157 = vector.shape_cast %154 : vector<1x1xf32> to vector<1x1xf32>
    %158 = vector.broadcast %157 : vector<1x1xf32> to vector<8x1xf32>
    %159 = vector.broadcast %cst_67 : f32 to vector<8x1xf32>
    %160 = arith.select %156, %158, %159 : vector<8x1xi1>, vector<8x1xf32>
    %161 = arith.addf %85, %160 : vector<8x1xf32>
    %c128 = arith.constant 128 : index
    %c0_68 = arith.constant 0 : index
    %162 = vector.load %arg10[%c128, %c0_68] : memref<1024x128xf32, #tpu.memory_space<vmem>>, vector<128x128xf32>
    tpu.vector_store %arg10[%c128, %c0_68], %120 {strides = array<i32>} : memref<1024x128xf32, #tpu.memory_space<vmem>>, vector<128x128xf32>,
    %cst_69 = arith.constant 0.000000e+00 : f32
    %163 = vector.broadcast %cst_69 : f32 to vector<128x128xf32>
    %c2 = arith.constant 2 : index
    %c0_70 = arith.constant 0 : index
    %164 = vector.load %arg1[%c2, %c0_70] : memref<8x128xi32, #tpu.memory_space<vmem>>, vector<1x128xi32>
    %c2_71 = arith.constant 2 : index
    %c0_72 = arith.constant 0 : index
    %165 = vector.load %arg2[%c2_71, %c0_72] : memref<8x128xi32, #tpu.memory_space<vmem>>, vector<1x128xi32>
    %c2_73 = arith.constant 2 : index
    %c0_74 = arith.constant 0 : index
    %166 = vector.load %arg3[%c2_73, %c0_74] : memref<8x128xf32, #tpu.memory_space<vmem>>, vector<1x128xf32>
    %167 = vector.broadcast %164 : vector<1x128xi32> to vector<128x128xi32>
    %168 = vector.broadcast %3 : vector<128x1xi32> to vector<128x128xi32>
    %169 = arith.cmpi eq, %167, %168 : vector<128x128xi32>
    %170 = arith.extui %169 : vector<128x128xi1> to vector<128x128xi32>
    %171 = arith.sitofp %170 : vector<128x128xi32> to vector<128x128xf32>
    %172 = arith.truncf %171 : vector<128x128xf32> to vector<128x128xbf16>
    %173 = vector.broadcast %165 : vector<1x128xi32> to vector<128x128xi32>
    %174 = vector.broadcast %3 : vector<128x1xi32> to vector<128x128xi32>
    %175 = arith.cmpi eq, %173, %174 : vector<128x128xi32>
    %cst_75 = arith.constant 0.000000e+00 : f32
    %176 = vector.shape_cast %166 : vector<1x128xf32> to vector<1x128xf32>
    %177 = vector.broadcast %176 : vector<1x128xf32> to vector<128x128xf32>
    %178 = vector.broadcast %cst_75 : f32 to vector<128x128xf32>
    %179 = arith.select %175, %177, %178 : vector<128x128xi1>, vector<128x128xf32>
    %180 = arith.truncf %179 : vector<128x128xf32> to vector<128x128xbf16>
    %181 = arith.extf %180 : vector<128x128xbf16> to vector<128x128xf32>
    %182 = arith.subf %179, %181 : vector<128x128xf32>
    %183 = arith.truncf %182 : vector<128x128xf32> to vector<128x128xbf16>
    %cst_76 = arith.constant dense<0.000000e+00> : vector<128x128xf32>
    %184 = tpu.matmul %180, %172, %cst_76 {dimension_numbers = #tpu.dot_dimension_numbers<[1], [1], [0], [0], [0, 0, 1, 0], [], []>} : vector<128x128xbf16>, vector<128x128xbf16>, vector<128x128xf32> -> vector<128x128xf32>
    %185 = arith.addf %163, %184 : vector<128x128xf32>
    %cst_77 = arith.constant dense<0.000000e+00> : vector<128x128xf32>
    %186 = tpu.matmul %183, %172, %cst_77 {dimension_numbers = #tpu.dot_dimension_numbers<[1], [1], [0], [0], [0, 0, 1, 0], [], []>} : vector<128x128xbf16>, vector<128x128xbf16>, vector<128x128xf32> -> vector<128x128xf32>
    %187 = arith.addf %185, %186 : vector<128x128xf32>
    %cst_78 = arith.constant 0.000000e+00 : f32
    %188 = vector.broadcast %cst_78 : f32 to vector<128x128xf32>
    %189 = arith.select %6, %187, %188 : vector<128x128xi1>, vector<128x128xf32>
    %cst_79 = arith.constant dense<0.000000e+00> : vector<128xf32>
    %190 = vector.multi_reduction <add>, %189, %cst_79 [1] : vector<128x128xf32> to vector<128xf32>
    %191 = vector.shape_cast %190 : vector<128xf32> to vector<128x1xf32>
    %cst_80 = arith.constant 0.000000e+00 : f32
    %192 = vector.broadcast %cst_80 : f32 to vector<128x1xf32>
    %193 = arith.subf %192, %191 : vector<128x1xf32>
    %194 = vector.shape_cast %193 : vector<128x1xf32> to vector<128x1xf32>
    %195 = vector.broadcast %194 : vector<128x1xf32> to vector<128x128xf32>
    %196 = arith.select %8, %195, %187 : vector<128x128xi1>, vector<128x128xf32>
    %c2_81 = arith.constant 2 : index
    %c0_82 = arith.constant 0 : index
    %c0_83 = arith.constant 0 : index
    %197 = vector.load %arg4[%c2_81, %c0_82, %c0_83] : memref<8x8x1xi32, #tpu.memory_space<vmem>>, vector<1x8x1xi32>
    %198 = vector.shape_cast %197 : vector<1x8x1xi32> to vector<8x1xi32>
    %c2_84 = arith.constant 2 : index
    %c0_85 = arith.constant 0 : index
    %c0_86 = arith.constant 0 : index
    %199 = vector.load %arg5[%c2_84, %c0_85, %c0_86] : memref<8x8x1xi32, #tpu.memory_space<vmem>>, vector<1x8x1xi32>
    %200 = vector.shape_cast %199 : vector<1x8x1xi32> to vector<8x1xi32>
    %c1_i32_87 = arith.constant 1 : i32
    %201 = vector.broadcast %c1_i32_87 : i32 to vector<8x1xi32>
    %202 = arith.addi %200, %201 : vector<8x1xi32>
    %203 = vector.broadcast %202 : vector<8x1xi32> to vector<8x128xi32>
    %204 = vector.broadcast %0 : vector<1x128xi32> to vector<8x128xi32>
    %205 = arith.cmpi eq, %203, %204 : vector<8x128xi32>
    %206 = arith.extui %205 : vector<8x128xi1> to vector<8x128xi32>
    %207 = arith.sitofp %206 : vector<8x128xi32> to vector<8x128xf32>
    %c1_i32_88 = arith.constant 1 : i32
    %208 = vector.broadcast %c1_i32_88 : i32 to vector<8x1xi32>
    %209 = arith.addi %198, %208 : vector<8x1xi32>
    %210 = vector.broadcast %209 : vector<8x1xi32> to vector<8x128xi32>
    %211 = vector.broadcast %0 : vector<1x128xi32> to vector<8x128xi32>
    %212 = arith.cmpi eq, %210, %211 : vector<8x128xi32>
    %213 = arith.extui %212 : vector<8x128xi1> to vector<8x128xi32>
    %214 = arith.sitofp %213 : vector<8x128xi32> to vector<8x128xf32>
    %cst_89 = arith.constant dense<0.000000e+00> : vector<8x128xf32>
    %215 = tpu.matmul %207, %196, %cst_89 {dimension_numbers = #tpu.dot_dimension_numbers<[1], [0], [0], [1], [0, 0, 1, 1], [], []>} : vector<8x128xf32>, vector<128x128xf32>, vector<8x128xf32> -> vector<8x128xf32>
    %216 = arith.mulf %215, %214 : vector<8x128xf32>
    %cst_90 = arith.constant dense<0.000000e+00> : vector<8xf32>
    %217 = vector.multi_reduction <add>, %216, %cst_90 [1] : vector<8x128xf32> to vector<8xf32>
    %218 = vector.shape_cast %217 : vector<8xf32> to vector<8x1xf32>
    %c2_91 = arith.constant 2 : index
    %c0_92 = arith.constant 0 : index
    %c0_93 = arith.constant 0 : index
    %219 = vector.load %arg7[%c2_91, %c0_92, %c0_93] : memref<8x8x1xf32, #tpu.memory_space<vmem>>, vector<1x8x1xf32>
    %220 = vector.shape_cast %219 : vector<1x8x1xf32> to vector<8x1xf32>
    %c2_94 = arith.constant 2 : index
    %c0_95 = arith.constant 0 : index
    %c0_96 = arith.constant 0 : index
    %221 = vector.load %arg6[%c2_94, %c0_95, %c0_96] : memref<8x8x1xf32, #tpu.memory_space<vmem>>, vector<1x8x1xf32>
    %222 = vector.shape_cast %221 : vector<1x8x1xf32> to vector<8x1xf32>
    %cst_97 = arith.constant 2.000000e+00 : f32
    %223 = vector.broadcast %cst_97 : f32 to vector<8x1xf32>
    %224 = arith.mulf %223, %222 : vector<8x1xf32>
    %cst_98 = arith.constant 1.000000e+00 : f32
    %225 = vector.broadcast %cst_98 : f32 to vector<8x1xf32>
    %226 = arith.subf %224, %225 : vector<8x1xf32>
    %227 = arith.mulf %220, %226 : vector<8x1xf32>
    %228 = arith.mulf %218, %227 : vector<8x1xf32>
    %cst_99 = arith.constant dense<0.000000e+00> : vector<1xf32>
    %229 = vector.multi_reduction <add>, %228, %cst_99 [0] : vector<8x1xf32> to vector<1xf32>
    %230 = vector.shape_cast %229 : vector<1xf32> to vector<1x1xf32>
    %c2_i32 = arith.constant 2 : i32
    %231 = vector.broadcast %c2_i32 : i32 to vector<8x1xi32>
    %232 = arith.cmpi eq, %9, %231 : vector<8x1xi32>
    %cst_100 = arith.constant 0.000000e+00 : f32
    %233 = vector.shape_cast %230 : vector<1x1xf32> to vector<1x1xf32>
    %234 = vector.broadcast %233 : vector<1x1xf32> to vector<8x1xf32>
    %235 = vector.broadcast %cst_100 : f32 to vector<8x1xf32>
    %236 = arith.select %232, %234, %235 : vector<8x1xi1>, vector<8x1xf32>
    %237 = arith.addf %161, %236 : vector<8x1xf32>
    %c256 = arith.constant 256 : index
    %c0_101 = arith.constant 0 : index
    %238 = vector.load %arg10[%c256, %c0_101] : memref<1024x128xf32, #tpu.memory_space<vmem>>, vector<128x128xf32>
    tpu.vector_store %arg10[%c256, %c0_101], %196 {strides = array<i32>} : memref<1024x128xf32, #tpu.memory_space<vmem>>, vector<128x128xf32>,
    %cst_102 = arith.constant 0.000000e+00 : f32
    %239 = vector.broadcast %cst_102 : f32 to vector<128x128xf32>
    %c3 = arith.constant 3 : index
    %c0_103 = arith.constant 0 : index
    %240 = vector.load %arg1[%c3, %c0_103] : memref<8x128xi32, #tpu.memory_space<vmem>>, vector<1x128xi32>
    %c3_104 = arith.constant 3 : index
    %c0_105 = arith.constant 0 : index
    %241 = vector.load %arg2[%c3_104, %c0_105] : memref<8x128xi32, #tpu.memory_space<vmem>>, vector<1x128xi32>
    %c3_106 = arith.constant 3 : index
    %c0_107 = arith.constant 0 : index
    %242 = vector.load %arg3[%c3_106, %c0_107] : memref<8x128xf32, #tpu.memory_space<vmem>>, vector<1x128xf32>
    %243 = vector.broadcast %240 : vector<1x128xi32> to vector<128x128xi32>
    %244 = vector.broadcast %3 : vector<128x1xi32> to vector<128x128xi32>
    %245 = arith.cmpi eq, %243, %244 : vector<128x128xi32>
    %246 = arith.extui %245 : vector<128x128xi1> to vector<128x128xi32>
    %247 = arith.sitofp %246 : vector<128x128xi32> to vector<128x128xf32>
    %248 = arith.truncf %247 : vector<128x128xf32> to vector<128x128xbf16>
    %249 = vector.broadcast %241 : vector<1x128xi32> to vector<128x128xi32>
    %250 = vector.broadcast %3 : vector<128x1xi32> to vector<128x128xi32>
    %251 = arith.cmpi eq, %249, %250 : vector<128x128xi32>
    %cst_108 = arith.constant 0.000000e+00 : f32
    %252 = vector.shape_cast %242 : vector<1x128xf32> to vector<1x128xf32>
    %253 = vector.broadcast %252 : vector<1x128xf32> to vector<128x128xf32>
    %254 = vector.broadcast %cst_108 : f32 to vector<128x128xf32>
    %255 = arith.select %251, %253, %254 : vector<128x128xi1>, vector<128x128xf32>
    %256 = arith.truncf %255 : vector<128x128xf32> to vector<128x128xbf16>
    %257 = arith.extf %256 : vector<128x128xbf16> to vector<128x128xf32>
    %258 = arith.subf %255, %257 : vector<128x128xf32>
    %259 = arith.truncf %258 : vector<128x128xf32> to vector<128x128xbf16>
    %cst_109 = arith.constant dense<0.000000e+00> : vector<128x128xf32>
    %260 = tpu.matmul %256, %248, %cst_109 {dimension_numbers = #tpu.dot_dimension_numbers<[1], [1], [0], [0], [0, 0, 1, 0], [], []>} : vector<128x128xbf16>, vector<128x128xbf16>, vector<128x128xf32> -> vector<128x128xf32>
    %261 = arith.addf %239, %260 : vector<128x128xf32>
    %cst_110 = arith.constant dense<0.000000e+00> : vector<128x128xf32>
    %262 = tpu.matmul %259, %248, %cst_110 {dimension_numbers = #tpu.dot_dimension_numbers<[1], [1], [0], [0], [0, 0, 1, 0], [], []>} : vector<128x128xbf16>, vector<128x128xbf16>, vector<128x128xf32> -> vector<128x128xf32>
    %263 = arith.addf %261, %262 : vector<128x128xf32>
    %cst_111 = arith.constant 0.000000e+00 : f32
    %264 = vector.broadcast %cst_111 : f32 to vector<128x128xf32>
    %265 = arith.select %6, %263, %264 : vector<128x128xi1>, vector<128x128xf32>
    %cst_112 = arith.constant dense<0.000000e+00> : vector<128xf32>
    %266 = vector.multi_reduction <add>, %265, %cst_112 [1] : vector<128x128xf32> to vector<128xf32>
    %267 = vector.shape_cast %266 : vector<128xf32> to vector<128x1xf32>
    %cst_113 = arith.constant 0.000000e+00 : f32
    %268 = vector.broadcast %cst_113 : f32 to vector<128x1xf32>
    %269 = arith.subf %268, %267 : vector<128x1xf32>
    %270 = vector.shape_cast %269 : vector<128x1xf32> to vector<128x1xf32>
    %271 = vector.broadcast %270 : vector<128x1xf32> to vector<128x128xf32>
    %272 = arith.select %8, %271, %263 : vector<128x128xi1>, vector<128x128xf32>
    %c3_114 = arith.constant 3 : index
    %c0_115 = arith.constant 0 : index
    %c0_116 = arith.constant 0 : index
    %273 = vector.load %arg4[%c3_114, %c0_115, %c0_116] : memref<8x8x1xi32, #tpu.memory_space<vmem>>, vector<1x8x1xi32>
    %274 = vector.shape_cast %273 : vector<1x8x1xi32> to vector<8x1xi32>
    %c3_117 = arith.constant 3 : index
    %c0_118 = arith.constant 0 : index
    %c0_119 = arith.constant 0 : index
    %275 = vector.load %arg5[%c3_117, %c0_118, %c0_119] : memref<8x8x1xi32, #tpu.memory_space<vmem>>, vector<1x8x1xi32>
    %276 = vector.shape_cast %275 : vector<1x8x1xi32> to vector<8x1xi32>
    %c1_i32_120 = arith.constant 1 : i32
    %277 = vector.broadcast %c1_i32_120 : i32 to vector<8x1xi32>
    %278 = arith.addi %276, %277 : vector<8x1xi32>
    %279 = vector.broadcast %278 : vector<8x1xi32> to vector<8x128xi32>
    %280 = vector.broadcast %0 : vector<1x128xi32> to vector<8x128xi32>
    %281 = arith.cmpi eq, %279, %280 : vector<8x128xi32>
    %282 = arith.extui %281 : vector<8x128xi1> to vector<8x128xi32>
    %283 = arith.sitofp %282 : vector<8x128xi32> to vector<8x128xf32>
    %c1_i32_121 = arith.constant 1 : i32
    %284 = vector.broadcast %c1_i32_121 : i32 to vector<8x1xi32>
    %285 = arith.addi %274, %284 : vector<8x1xi32>
    %286 = vector.broadcast %285 : vector<8x1xi32> to vector<8x128xi32>
    %287 = vector.broadcast %0 : vector<1x128xi32> to vector<8x128xi32>
    %288 = arith.cmpi eq, %286, %287 : vector<8x128xi32>
    %289 = arith.extui %288 : vector<8x128xi1> to vector<8x128xi32>
    %290 = arith.sitofp %289 : vector<8x128xi32> to vector<8x128xf32>
    %cst_122 = arith.constant dense<0.000000e+00> : vector<8x128xf32>
    %291 = tpu.matmul %283, %272, %cst_122 {dimension_numbers = #tpu.dot_dimension_numbers<[1], [0], [0], [1], [0, 0, 1, 1], [], []>} : vector<8x128xf32>, vector<128x128xf32>, vector<8x128xf32> -> vector<8x128xf32>
    %292 = arith.mulf %291, %290 : vector<8x128xf32>
    %cst_123 = arith.constant dense<0.000000e+00> : vector<8xf32>
    %293 = vector.multi_reduction <add>, %292, %cst_123 [1] : vector<8x128xf32> to vector<8xf32>
    %294 = vector.shape_cast %293 : vector<8xf32> to vector<8x1xf32>
    %c3_124 = arith.constant 3 : index
    %c0_125 = arith.constant 0 : index
    %c0_126 = arith.constant 0 : index
    %295 = vector.load %arg7[%c3_124, %c0_125, %c0_126] : memref<8x8x1xf32, #tpu.memory_space<vmem>>, vector<1x8x1xf32>
    %296 = vector.shape_cast %295 : vector<1x8x1xf32> to vector<8x1xf32>
    %c3_127 = arith.constant 3 : index
    %c0_128 = arith.constant 0 : index
    %c0_129 = arith.constant 0 : index
    %297 = vector.load %arg6[%c3_127, %c0_128, %c0_129] : memref<8x8x1xf32, #tpu.memory_space<vmem>>, vector<1x8x1xf32>
    %298 = vector.shape_cast %297 : vector<1x8x1xf32> to vector<8x1xf32>
    %cst_130 = arith.constant 2.000000e+00 : f32
    %299 = vector.broadcast %cst_130 : f32 to vector<8x1xf32>
    %300 = arith.mulf %299, %298 : vector<8x1xf32>
    %cst_131 = arith.constant 1.000000e+00 : f32
    %301 = vector.broadcast %cst_131 : f32 to vector<8x1xf32>
    %302 = arith.subf %300, %301 : vector<8x1xf32>
    %303 = arith.mulf %296, %302 : vector<8x1xf32>
    %304 = arith.mulf %294, %303 : vector<8x1xf32>
    %cst_132 = arith.constant dense<0.000000e+00> : vector<1xf32>
    %305 = vector.multi_reduction <add>, %304, %cst_132 [0] : vector<8x1xf32> to vector<1xf32>
    %306 = vector.shape_cast %305 : vector<1xf32> to vector<1x1xf32>
    %c3_i32 = arith.constant 3 : i32
    %307 = vector.broadcast %c3_i32 : i32 to vector<8x1xi32>
    %308 = arith.cmpi eq, %9, %307 : vector<8x1xi32>
    %cst_133 = arith.constant 0.000000e+00 : f32
    %309 = vector.shape_cast %306 : vector<1x1xf32> to vector<1x1xf32>
    %310 = vector.broadcast %309 : vector<1x1xf32> to vector<8x1xf32>
    %311 = vector.broadcast %cst_133 : f32 to vector<8x1xf32>
    %312 = arith.select %308, %310, %311 : vector<8x1xi1>, vector<8x1xf32>
    %313 = arith.addf %237, %312 : vector<8x1xf32>
    %c384 = arith.constant 384 : index
    %c0_134 = arith.constant 0 : index
    %314 = vector.load %arg10[%c384, %c0_134] : memref<1024x128xf32, #tpu.memory_space<vmem>>, vector<128x128xf32>
    tpu.vector_store %arg10[%c384, %c0_134], %272 {strides = array<i32>} : memref<1024x128xf32, #tpu.memory_space<vmem>>, vector<128x128xf32>,
    %cst_135 = arith.constant 0.000000e+00 : f32
    %315 = vector.broadcast %cst_135 : f32 to vector<128x128xf32>
    %c4 = arith.constant 4 : index
    %c0_136 = arith.constant 0 : index
    %316 = vector.load %arg1[%c4, %c0_136] : memref<8x128xi32, #tpu.memory_space<vmem>>, vector<1x128xi32>
    %c4_137 = arith.constant 4 : index
    %c0_138 = arith.constant 0 : index
    %317 = vector.load %arg2[%c4_137, %c0_138] : memref<8x128xi32, #tpu.memory_space<vmem>>, vector<1x128xi32>
    %c4_139 = arith.constant 4 : index
    %c0_140 = arith.constant 0 : index
    %318 = vector.load %arg3[%c4_139, %c0_140] : memref<8x128xf32, #tpu.memory_space<vmem>>, vector<1x128xf32>
    %319 = vector.broadcast %316 : vector<1x128xi32> to vector<128x128xi32>
    %320 = vector.broadcast %3 : vector<128x1xi32> to vector<128x128xi32>
    %321 = arith.cmpi eq, %319, %320 : vector<128x128xi32>
    %322 = arith.extui %321 : vector<128x128xi1> to vector<128x128xi32>
    %323 = arith.sitofp %322 : vector<128x128xi32> to vector<128x128xf32>
    %324 = arith.truncf %323 : vector<128x128xf32> to vector<128x128xbf16>
    %325 = vector.broadcast %317 : vector<1x128xi32> to vector<128x128xi32>
    %326 = vector.broadcast %3 : vector<128x1xi32> to vector<128x128xi32>
    %327 = arith.cmpi eq, %325, %326 : vector<128x128xi32>
    %cst_141 = arith.constant 0.000000e+00 : f32
    %328 = vector.shape_cast %318 : vector<1x128xf32> to vector<1x128xf32>
    %329 = vector.broadcast %328 : vector<1x128xf32> to vector<128x128xf32>
    %330 = vector.broadcast %cst_141 : f32 to vector<128x128xf32>
    %331 = arith.select %327, %329, %330 : vector<128x128xi1>, vector<128x128xf32>
    %332 = arith.truncf %331 : vector<128x128xf32> to vector<128x128xbf16>
    %333 = arith.extf %332 : vector<128x128xbf16> to vector<128x128xf32>
    %334 = arith.subf %331, %333 : vector<128x128xf32>
    %335 = arith.truncf %334 : vector<128x128xf32> to vector<128x128xbf16>
    %cst_142 = arith.constant dense<0.000000e+00> : vector<128x128xf32>
    %336 = tpu.matmul %332, %324, %cst_142 {dimension_numbers = #tpu.dot_dimension_numbers<[1], [1], [0], [0], [0, 0, 1, 0], [], []>} : vector<128x128xbf16>, vector<128x128xbf16>, vector<128x128xf32> -> vector<128x128xf32>
    %337 = arith.addf %315, %336 : vector<128x128xf32>
    %cst_143 = arith.constant dense<0.000000e+00> : vector<128x128xf32>
    %338 = tpu.matmul %335, %324, %cst_143 {dimension_numbers = #tpu.dot_dimension_numbers<[1], [1], [0], [0], [0, 0, 1, 0], [], []>} : vector<128x128xbf16>, vector<128x128xbf16>, vector<128x128xf32> -> vector<128x128xf32>
    %339 = arith.addf %337, %338 : vector<128x128xf32>
    %cst_144 = arith.constant 0.000000e+00 : f32
    %340 = vector.broadcast %cst_144 : f32 to vector<128x128xf32>
    %341 = arith.select %6, %339, %340 : vector<128x128xi1>, vector<128x128xf32>
    %cst_145 = arith.constant dense<0.000000e+00> : vector<128xf32>
    %342 = vector.multi_reduction <add>, %341, %cst_145 [1] : vector<128x128xf32> to vector<128xf32>
    %343 = vector.shape_cast %342 : vector<128xf32> to vector<128x1xf32>
    %cst_146 = arith.constant 0.000000e+00 : f32
    %344 = vector.broadcast %cst_146 : f32 to vector<128x1xf32>
    %345 = arith.subf %344, %343 : vector<128x1xf32>
    %346 = vector.shape_cast %345 : vector<128x1xf32> to vector<128x1xf32>
    %347 = vector.broadcast %346 : vector<128x1xf32> to vector<128x128xf32>
    %348 = arith.select %8, %347, %339 : vector<128x128xi1>, vector<128x128xf32>
    %c4_147 = arith.constant 4 : index
    %c0_148 = arith.constant 0 : index
    %c0_149 = arith.constant 0 : index
    %349 = vector.load %arg4[%c4_147, %c0_148, %c0_149] : memref<8x8x1xi32, #tpu.memory_space<vmem>>, vector<1x8x1xi32>
    %350 = vector.shape_cast %349 : vector<1x8x1xi32> to vector<8x1xi32>
    %c4_150 = arith.constant 4 : index
    %c0_151 = arith.constant 0 : index
    %c0_152 = arith.constant 0 : index
    %351 = vector.load %arg5[%c4_150, %c0_151, %c0_152] : memref<8x8x1xi32, #tpu.memory_space<vmem>>, vector<1x8x1xi32>
    %352 = vector.shape_cast %351 : vector<1x8x1xi32> to vector<8x1xi32>
    %c1_i32_153 = arith.constant 1 : i32
    %353 = vector.broadcast %c1_i32_153 : i32 to vector<8x1xi32>
    %354 = arith.addi %352, %353 : vector<8x1xi32>
    %355 = vector.broadcast %354 : vector<8x1xi32> to vector<8x128xi32>
    %356 = vector.broadcast %0 : vector<1x128xi32> to vector<8x128xi32>
    %357 = arith.cmpi eq, %355, %356 : vector<8x128xi32>
    %358 = arith.extui %357 : vector<8x128xi1> to vector<8x128xi32>
    %359 = arith.sitofp %358 : vector<8x128xi32> to vector<8x128xf32>
    %c1_i32_154 = arith.constant 1 : i32
    %360 = vector.broadcast %c1_i32_154 : i32 to vector<8x1xi32>
    %361 = arith.addi %350, %360 : vector<8x1xi32>
    %362 = vector.broadcast %361 : vector<8x1xi32> to vector<8x128xi32>
    %363 = vector.broadcast %0 : vector<1x128xi32> to vector<8x128xi32>
    %364 = arith.cmpi eq, %362, %363 : vector<8x128xi32>
    %365 = arith.extui %364 : vector<8x128xi1> to vector<8x128xi32>
    %366 = arith.sitofp %365 : vector<8x128xi32> to vector<8x128xf32>
    %cst_155 = arith.constant dense<0.000000e+00> : vector<8x128xf32>
    %367 = tpu.matmul %359, %348, %cst_155 {dimension_numbers = #tpu.dot_dimension_numbers<[1], [0], [0], [1], [0, 0, 1, 1], [], []>} : vector<8x128xf32>, vector<128x128xf32>, vector<8x128xf32> -> vector<8x128xf32>
    %368 = arith.mulf %367, %366 : vector<8x128xf32>
    %cst_156 = arith.constant dense<0.000000e+00> : vector<8xf32>
    %369 = vector.multi_reduction <add>, %368, %cst_156 [1] : vector<8x128xf32> to vector<8xf32>
    %370 = vector.shape_cast %369 : vector<8xf32> to vector<8x1xf32>
    %c4_157 = arith.constant 4 : index
    %c0_158 = arith.constant 0 : index
    %c0_159 = arith.constant 0 : index
    %371 = vector.load %arg7[%c4_157, %c0_158, %c0_159] : memref<8x8x1xf32, #tpu.memory_space<vmem>>, vector<1x8x1xf32>
    %372 = vector.shape_cast %371 : vector<1x8x1xf32> to vector<8x1xf32>
    %c4_160 = arith.constant 4 : index
    %c0_161 = arith.constant 0 : index
    %c0_162 = arith.constant 0 : index
    %373 = vector.load %arg6[%c4_160, %c0_161, %c0_162] : memref<8x8x1xf32, #tpu.memory_space<vmem>>, vector<1x8x1xf32>
    %374 = vector.shape_cast %373 : vector<1x8x1xf32> to vector<8x1xf32>
    %cst_163 = arith.constant 2.000000e+00 : f32
    %375 = vector.broadcast %cst_163 : f32 to vector<8x1xf32>
    %376 = arith.mulf %375, %374 : vector<8x1xf32>
    %cst_164 = arith.constant 1.000000e+00 : f32
    %377 = vector.broadcast %cst_164 : f32 to vector<8x1xf32>
    %378 = arith.subf %376, %377 : vector<8x1xf32>
    %379 = arith.mulf %372, %378 : vector<8x1xf32>
    %380 = arith.mulf %370, %379 : vector<8x1xf32>
    %cst_165 = arith.constant dense<0.000000e+00> : vector<1xf32>
    %381 = vector.multi_reduction <add>, %380, %cst_165 [0] : vector<8x1xf32> to vector<1xf32>
    %382 = vector.shape_cast %381 : vector<1xf32> to vector<1x1xf32>
    %c4_i32 = arith.constant 4 : i32
    %383 = vector.broadcast %c4_i32 : i32 to vector<8x1xi32>
    %384 = arith.cmpi eq, %9, %383 : vector<8x1xi32>
    %cst_166 = arith.constant 0.000000e+00 : f32
    %385 = vector.shape_cast %382 : vector<1x1xf32> to vector<1x1xf32>
    %386 = vector.broadcast %385 : vector<1x1xf32> to vector<8x1xf32>
    %387 = vector.broadcast %cst_166 : f32 to vector<8x1xf32>
    %388 = arith.select %384, %386, %387 : vector<8x1xi1>, vector<8x1xf32>
    %389 = arith.addf %313, %388 : vector<8x1xf32>
    %c512 = arith.constant 512 : index
    %c0_167 = arith.constant 0 : index
    %390 = vector.load %arg10[%c512, %c0_167] : memref<1024x128xf32, #tpu.memory_space<vmem>>, vector<128x128xf32>
    tpu.vector_store %arg10[%c512, %c0_167], %348 {strides = array<i32>} : memref<1024x128xf32, #tpu.memory_space<vmem>>, vector<128x128xf32>,
    %cst_168 = arith.constant 0.000000e+00 : f32
    %391 = vector.broadcast %cst_168 : f32 to vector<128x128xf32>
    %c5 = arith.constant 5 : index
    %c0_169 = arith.constant 0 : index
    %392 = vector.load %arg1[%c5, %c0_169] : memref<8x128xi32, #tpu.memory_space<vmem>>, vector<1x128xi32>
    %c5_170 = arith.constant 5 : index
    %c0_171 = arith.constant 0 : index
    %393 = vector.load %arg2[%c5_170, %c0_171] : memref<8x128xi32, #tpu.memory_space<vmem>>, vector<1x128xi32>
    %c5_172 = arith.constant 5 : index
    %c0_173 = arith.constant 0 : index
    %394 = vector.load %arg3[%c5_172, %c0_173] : memref<8x128xf32, #tpu.memory_space<vmem>>, vector<1x128xf32>
    %395 = vector.broadcast %392 : vector<1x128xi32> to vector<128x128xi32>
    %396 = vector.broadcast %3 : vector<128x1xi32> to vector<128x128xi32>
    %397 = arith.cmpi eq, %395, %396 : vector<128x128xi32>
    %398 = arith.extui %397 : vector<128x128xi1> to vector<128x128xi32>
    %399 = arith.sitofp %398 : vector<128x128xi32> to vector<128x128xf32>
    %400 = arith.truncf %399 : vector<128x128xf32> to vector<128x128xbf16>
    %401 = vector.broadcast %393 : vector<1x128xi32> to vector<128x128xi32>
    %402 = vector.broadcast %3 : vector<128x1xi32> to vector<128x128xi32>
    %403 = arith.cmpi eq, %401, %402 : vector<128x128xi32>
    %cst_174 = arith.constant 0.000000e+00 : f32
    %404 = vector.shape_cast %394 : vector<1x128xf32> to vector<1x128xf32>
    %405 = vector.broadcast %404 : vector<1x128xf32> to vector<128x128xf32>
    %406 = vector.broadcast %cst_174 : f32 to vector<128x128xf32>
    %407 = arith.select %403, %405, %406 : vector<128x128xi1>, vector<128x128xf32>
    %408 = arith.truncf %407 : vector<128x128xf32> to vector<128x128xbf16>
    %409 = arith.extf %408 : vector<128x128xbf16> to vector<128x128xf32>
    %410 = arith.subf %407, %409 : vector<128x128xf32>
    %411 = arith.truncf %410 : vector<128x128xf32> to vector<128x128xbf16>
    %cst_175 = arith.constant dense<0.000000e+00> : vector<128x128xf32>
    %412 = tpu.matmul %408, %400, %cst_175 {dimension_numbers = #tpu.dot_dimension_numbers<[1], [1], [0], [0], [0, 0, 1, 0], [], []>} : vector<128x128xbf16>, vector<128x128xbf16>, vector<128x128xf32> -> vector<128x128xf32>
    %413 = arith.addf %391, %412 : vector<128x128xf32>
    %cst_176 = arith.constant dense<0.000000e+00> : vector<128x128xf32>
    %414 = tpu.matmul %411, %400, %cst_176 {dimension_numbers = #tpu.dot_dimension_numbers<[1], [1], [0], [0], [0, 0, 1, 0], [], []>} : vector<128x128xbf16>, vector<128x128xbf16>, vector<128x128xf32> -> vector<128x128xf32>
    %415 = arith.addf %413, %414 : vector<128x128xf32>
    %cst_177 = arith.constant 0.000000e+00 : f32
    %416 = vector.broadcast %cst_177 : f32 to vector<128x128xf32>
    %417 = arith.select %6, %415, %416 : vector<128x128xi1>, vector<128x128xf32>
    %cst_178 = arith.constant dense<0.000000e+00> : vector<128xf32>
    %418 = vector.multi_reduction <add>, %417, %cst_178 [1] : vector<128x128xf32> to vector<128xf32>
    %419 = vector.shape_cast %418 : vector<128xf32> to vector<128x1xf32>
    %cst_179 = arith.constant 0.000000e+00 : f32
    %420 = vector.broadcast %cst_179 : f32 to vector<128x1xf32>
    %421 = arith.subf %420, %419 : vector<128x1xf32>
    %422 = vector.shape_cast %421 : vector<128x1xf32> to vector<128x1xf32>
    %423 = vector.broadcast %422 : vector<128x1xf32> to vector<128x128xf32>
    %424 = arith.select %8, %423, %415 : vector<128x128xi1>, vector<128x128xf32>
    %c5_180 = arith.constant 5 : index
    %c0_181 = arith.constant 0 : index
    %c0_182 = arith.constant 0 : index
    %425 = vector.load %arg4[%c5_180, %c0_181, %c0_182] : memref<8x8x1xi32, #tpu.memory_space<vmem>>, vector<1x8x1xi32>
    %426 = vector.shape_cast %425 : vector<1x8x1xi32> to vector<8x1xi32>
    %c5_183 = arith.constant 5 : index
    %c0_184 = arith.constant 0 : index
    %c0_185 = arith.constant 0 : index
    %427 = vector.load %arg5[%c5_183, %c0_184, %c0_185] : memref<8x8x1xi32, #tpu.memory_space<vmem>>, vector<1x8x1xi32>
    %428 = vector.shape_cast %427 : vector<1x8x1xi32> to vector<8x1xi32>
    %c1_i32_186 = arith.constant 1 : i32
    %429 = vector.broadcast %c1_i32_186 : i32 to vector<8x1xi32>
    %430 = arith.addi %428, %429 : vector<8x1xi32>
    %431 = vector.broadcast %430 : vector<8x1xi32> to vector<8x128xi32>
    %432 = vector.broadcast %0 : vector<1x128xi32> to vector<8x128xi32>
    %433 = arith.cmpi eq, %431, %432 : vector<8x128xi32>
    %434 = arith.extui %433 : vector<8x128xi1> to vector<8x128xi32>
    %435 = arith.sitofp %434 : vector<8x128xi32> to vector<8x128xf32>
    %c1_i32_187 = arith.constant 1 : i32
    %436 = vector.broadcast %c1_i32_187 : i32 to vector<8x1xi32>
    %437 = arith.addi %426, %436 : vector<8x1xi32>
    %438 = vector.broadcast %437 : vector<8x1xi32> to vector<8x128xi32>
    %439 = vector.broadcast %0 : vector<1x128xi32> to vector<8x128xi32>
    %440 = arith.cmpi eq, %438, %439 : vector<8x128xi32>
    %441 = arith.extui %440 : vector<8x128xi1> to vector<8x128xi32>
    %442 = arith.sitofp %441 : vector<8x128xi32> to vector<8x128xf32>
    %cst_188 = arith.constant dense<0.000000e+00> : vector<8x128xf32>
    %443 = tpu.matmul %435, %424, %cst_188 {dimension_numbers = #tpu.dot_dimension_numbers<[1], [0], [0], [1], [0, 0, 1, 1], [], []>} : vector<8x128xf32>, vector<128x128xf32>, vector<8x128xf32> -> vector<8x128xf32>
    %444 = arith.mulf %443, %442 : vector<8x128xf32>
    %cst_189 = arith.constant dense<0.000000e+00> : vector<8xf32>
    %445 = vector.multi_reduction <add>, %444, %cst_189 [1] : vector<8x128xf32> to vector<8xf32>
    %446 = vector.shape_cast %445 : vector<8xf32> to vector<8x1xf32>
    %c5_190 = arith.constant 5 : index
    %c0_191 = arith.constant 0 : index
    %c0_192 = arith.constant 0 : index
    %447 = vector.load %arg7[%c5_190, %c0_191, %c0_192] : memref<8x8x1xf32, #tpu.memory_space<vmem>>, vector<1x8x1xf32>
    %448 = vector.shape_cast %447 : vector<1x8x1xf32> to vector<8x1xf32>
    %c5_193 = arith.constant 5 : index
    %c0_194 = arith.constant 0 : index
    %c0_195 = arith.constant 0 : index
    %449 = vector.load %arg6[%c5_193, %c0_194, %c0_195] : memref<8x8x1xf32, #tpu.memory_space<vmem>>, vector<1x8x1xf32>
    %450 = vector.shape_cast %449 : vector<1x8x1xf32> to vector<8x1xf32>
    %cst_196 = arith.constant 2.000000e+00 : f32
    %451 = vector.broadcast %cst_196 : f32 to vector<8x1xf32>
    %452 = arith.mulf %451, %450 : vector<8x1xf32>
    %cst_197 = arith.constant 1.000000e+00 : f32
    %453 = vector.broadcast %cst_197 : f32 to vector<8x1xf32>
    %454 = arith.subf %452, %453 : vector<8x1xf32>
    %455 = arith.mulf %448, %454 : vector<8x1xf32>
    %456 = arith.mulf %446, %455 : vector<8x1xf32>
    %cst_198 = arith.constant dense<0.000000e+00> : vector<1xf32>
    %457 = vector.multi_reduction <add>, %456, %cst_198 [0] : vector<8x1xf32> to vector<1xf32>
    %458 = vector.shape_cast %457 : vector<1xf32> to vector<1x1xf32>
    %c5_i32 = arith.constant 5 : i32
    %459 = vector.broadcast %c5_i32 : i32 to vector<8x1xi32>
    %460 = arith.cmpi eq, %9, %459 : vector<8x1xi32>
    %cst_199 = arith.constant 0.000000e+00 : f32
    %461 = vector.shape_cast %458 : vector<1x1xf32> to vector<1x1xf32>
    %462 = vector.broadcast %461 : vector<1x1xf32> to vector<8x1xf32>
    %463 = vector.broadcast %cst_199 : f32 to vector<8x1xf32>
    %464 = arith.select %460, %462, %463 : vector<8x1xi1>, vector<8x1xf32>
    %465 = arith.addf %389, %464 : vector<8x1xf32>
    %c640 = arith.constant 640 : index
    %c0_200 = arith.constant 0 : index
    %466 = vector.load %arg10[%c640, %c0_200] : memref<1024x128xf32, #tpu.memory_space<vmem>>, vector<128x128xf32>
    tpu.vector_store %arg10[%c640, %c0_200], %424 {strides = array<i32>} : memref<1024x128xf32, #tpu.memory_space<vmem>>, vector<128x128xf32>,
    %cst_201 = arith.constant 0.000000e+00 : f32
    %467 = vector.broadcast %cst_201 : f32 to vector<128x128xf32>
    %c6 = arith.constant 6 : index
    %c0_202 = arith.constant 0 : index
    %468 = vector.load %arg1[%c6, %c0_202] : memref<8x128xi32, #tpu.memory_space<vmem>>, vector<1x128xi32>
    %c6_203 = arith.constant 6 : index
    %c0_204 = arith.constant 0 : index
    %469 = vector.load %arg2[%c6_203, %c0_204] : memref<8x128xi32, #tpu.memory_space<vmem>>, vector<1x128xi32>
    %c6_205 = arith.constant 6 : index
    %c0_206 = arith.constant 0 : index
    %470 = vector.load %arg3[%c6_205, %c0_206] : memref<8x128xf32, #tpu.memory_space<vmem>>, vector<1x128xf32>
    %471 = vector.broadcast %468 : vector<1x128xi32> to vector<128x128xi32>
    %472 = vector.broadcast %3 : vector<128x1xi32> to vector<128x128xi32>
    %473 = arith.cmpi eq, %471, %472 : vector<128x128xi32>
    %474 = arith.extui %473 : vector<128x128xi1> to vector<128x128xi32>
    %475 = arith.sitofp %474 : vector<128x128xi32> to vector<128x128xf32>
    %476 = arith.truncf %475 : vector<128x128xf32> to vector<128x128xbf16>
    %477 = vector.broadcast %469 : vector<1x128xi32> to vector<128x128xi32>
    %478 = vector.broadcast %3 : vector<128x1xi32> to vector<128x128xi32>
    %479 = arith.cmpi eq, %477, %478 : vector<128x128xi32>
    %cst_207 = arith.constant 0.000000e+00 : f32
    %480 = vector.shape_cast %470 : vector<1x128xf32> to vector<1x128xf32>
    %481 = vector.broadcast %480 : vector<1x128xf32> to vector<128x128xf32>
    %482 = vector.broadcast %cst_207 : f32 to vector<128x128xf32>
    %483 = arith.select %479, %481, %482 : vector<128x128xi1>, vector<128x128xf32>
    %484 = arith.truncf %483 : vector<128x128xf32> to vector<128x128xbf16>
    %485 = arith.extf %484 : vector<128x128xbf16> to vector<128x128xf32>
    %486 = arith.subf %483, %485 : vector<128x128xf32>
    %487 = arith.truncf %486 : vector<128x128xf32> to vector<128x128xbf16>
    %cst_208 = arith.constant dense<0.000000e+00> : vector<128x128xf32>
    %488 = tpu.matmul %484, %476, %cst_208 {dimension_numbers = #tpu.dot_dimension_numbers<[1], [1], [0], [0], [0, 0, 1, 0], [], []>} : vector<128x128xbf16>, vector<128x128xbf16>, vector<128x128xf32> -> vector<128x128xf32>
    %489 = arith.addf %467, %488 : vector<128x128xf32>
    %cst_209 = arith.constant dense<0.000000e+00> : vector<128x128xf32>
    %490 = tpu.matmul %487, %476, %cst_209 {dimension_numbers = #tpu.dot_dimension_numbers<[1], [1], [0], [0], [0, 0, 1, 0], [], []>} : vector<128x128xbf16>, vector<128x128xbf16>, vector<128x128xf32> -> vector<128x128xf32>
    %491 = arith.addf %489, %490 : vector<128x128xf32>
    %cst_210 = arith.constant 0.000000e+00 : f32
    %492 = vector.broadcast %cst_210 : f32 to vector<128x128xf32>
    %493 = arith.select %6, %491, %492 : vector<128x128xi1>, vector<128x128xf32>
    %cst_211 = arith.constant dense<0.000000e+00> : vector<128xf32>
    %494 = vector.multi_reduction <add>, %493, %cst_211 [1] : vector<128x128xf32> to vector<128xf32>
    %495 = vector.shape_cast %494 : vector<128xf32> to vector<128x1xf32>
    %cst_212 = arith.constant 0.000000e+00 : f32
    %496 = vector.broadcast %cst_212 : f32 to vector<128x1xf32>
    %497 = arith.subf %496, %495 : vector<128x1xf32>
    %498 = vector.shape_cast %497 : vector<128x1xf32> to vector<128x1xf32>
    %499 = vector.broadcast %498 : vector<128x1xf32> to vector<128x128xf32>
    %500 = arith.select %8, %499, %491 : vector<128x128xi1>, vector<128x128xf32>
    %c6_213 = arith.constant 6 : index
    %c0_214 = arith.constant 0 : index
    %c0_215 = arith.constant 0 : index
    %501 = vector.load %arg4[%c6_213, %c0_214, %c0_215] : memref<8x8x1xi32, #tpu.memory_space<vmem>>, vector<1x8x1xi32>
    %502 = vector.shape_cast %501 : vector<1x8x1xi32> to vector<8x1xi32>
    %c6_216 = arith.constant 6 : index
    %c0_217 = arith.constant 0 : index
    %c0_218 = arith.constant 0 : index
    %503 = vector.load %arg5[%c6_216, %c0_217, %c0_218] : memref<8x8x1xi32, #tpu.memory_space<vmem>>, vector<1x8x1xi32>
    %504 = vector.shape_cast %503 : vector<1x8x1xi32> to vector<8x1xi32>
    %c1_i32_219 = arith.constant 1 : i32
    %505 = vector.broadcast %c1_i32_219 : i32 to vector<8x1xi32>
    %506 = arith.addi %504, %505 : vector<8x1xi32>
    %507 = vector.broadcast %506 : vector<8x1xi32> to vector<8x128xi32>
    %508 = vector.broadcast %0 : vector<1x128xi32> to vector<8x128xi32>
    %509 = arith.cmpi eq, %507, %508 : vector<8x128xi32>
    %510 = arith.extui %509 : vector<8x128xi1> to vector<8x128xi32>
    %511 = arith.sitofp %510 : vector<8x128xi32> to vector<8x128xf32>
    %c1_i32_220 = arith.constant 1 : i32
    %512 = vector.broadcast %c1_i32_220 : i32 to vector<8x1xi32>
    %513 = arith.addi %502, %512 : vector<8x1xi32>
    %514 = vector.broadcast %513 : vector<8x1xi32> to vector<8x128xi32>
    %515 = vector.broadcast %0 : vector<1x128xi32> to vector<8x128xi32>
    %516 = arith.cmpi eq, %514, %515 : vector<8x128xi32>
    %517 = arith.extui %516 : vector<8x128xi1> to vector<8x128xi32>
    %518 = arith.sitofp %517 : vector<8x128xi32> to vector<8x128xf32>
    %cst_221 = arith.constant dense<0.000000e+00> : vector<8x128xf32>
    %519 = tpu.matmul %511, %500, %cst_221 {dimension_numbers = #tpu.dot_dimension_numbers<[1], [0], [0], [1], [0, 0, 1, 1], [], []>} : vector<8x128xf32>, vector<128x128xf32>, vector<8x128xf32> -> vector<8x128xf32>
    %520 = arith.mulf %519, %518 : vector<8x128xf32>
    %cst_222 = arith.constant dense<0.000000e+00> : vector<8xf32>
    %521 = vector.multi_reduction <add>, %520, %cst_222 [1] : vector<8x128xf32> to vector<8xf32>
    %522 = vector.shape_cast %521 : vector<8xf32> to vector<8x1xf32>
    %c6_223 = arith.constant 6 : index
    %c0_224 = arith.constant 0 : index
    %c0_225 = arith.constant 0 : index
    %523 = vector.load %arg7[%c6_223, %c0_224, %c0_225] : memref<8x8x1xf32, #tpu.memory_space<vmem>>, vector<1x8x1xf32>
    %524 = vector.shape_cast %523 : vector<1x8x1xf32> to vector<8x1xf32>
    %c6_226 = arith.constant 6 : index
    %c0_227 = arith.constant 0 : index
    %c0_228 = arith.constant 0 : index
    %525 = vector.load %arg6[%c6_226, %c0_227, %c0_228] : memref<8x8x1xf32, #tpu.memory_space<vmem>>, vector<1x8x1xf32>
    %526 = vector.shape_cast %525 : vector<1x8x1xf32> to vector<8x1xf32>
    %cst_229 = arith.constant 2.000000e+00 : f32
    %527 = vector.broadcast %cst_229 : f32 to vector<8x1xf32>
    %528 = arith.mulf %527, %526 : vector<8x1xf32>
    %cst_230 = arith.constant 1.000000e+00 : f32
    %529 = vector.broadcast %cst_230 : f32 to vector<8x1xf32>
    %530 = arith.subf %528, %529 : vector<8x1xf32>
    %531 = arith.mulf %524, %530 : vector<8x1xf32>
    %532 = arith.mulf %522, %531 : vector<8x1xf32>
    %cst_231 = arith.constant dense<0.000000e+00> : vector<1xf32>
    %533 = vector.multi_reduction <add>, %532, %cst_231 [0] : vector<8x1xf32> to vector<1xf32>
    %534 = vector.shape_cast %533 : vector<1xf32> to vector<1x1xf32>
    %c6_i32 = arith.constant 6 : i32
    %535 = vector.broadcast %c6_i32 : i32 to vector<8x1xi32>
    %536 = arith.cmpi eq, %9, %535 : vector<8x1xi32>
    %cst_232 = arith.constant 0.000000e+00 : f32
    %537 = vector.shape_cast %534 : vector<1x1xf32> to vector<1x1xf32>
    %538 = vector.broadcast %537 : vector<1x1xf32> to vector<8x1xf32>
    %539 = vector.broadcast %cst_232 : f32 to vector<8x1xf32>
    %540 = arith.select %536, %538, %539 : vector<8x1xi1>, vector<8x1xf32>
    %541 = arith.addf %465, %540 : vector<8x1xf32>
    %c768 = arith.constant 768 : index
    %c0_233 = arith.constant 0 : index
    %542 = vector.load %arg10[%c768, %c0_233] : memref<1024x128xf32, #tpu.memory_space<vmem>>, vector<128x128xf32>
    tpu.vector_store %arg10[%c768, %c0_233], %500 {strides = array<i32>} : memref<1024x128xf32, #tpu.memory_space<vmem>>, vector<128x128xf32>,
    %cst_234 = arith.constant 0.000000e+00 : f32
    %543 = vector.broadcast %cst_234 : f32 to vector<128x128xf32>
    %c7 = arith.constant 7 : index
    %c0_235 = arith.constant 0 : index
    %544 = vector.load %arg1[%c7, %c0_235] : memref<8x128xi32, #tpu.memory_space<vmem>>, vector<1x128xi32>
    %c7_236 = arith.constant 7 : index
    %c0_237 = arith.constant 0 : index
    %545 = vector.load %arg2[%c7_236, %c0_237] : memref<8x128xi32, #tpu.memory_space<vmem>>, vector<1x128xi32>
    %c7_238 = arith.constant 7 : index
    %c0_239 = arith.constant 0 : index
    %546 = vector.load %arg3[%c7_238, %c0_239] : memref<8x128xf32, #tpu.memory_space<vmem>>, vector<1x128xf32>
    %547 = vector.broadcast %544 : vector<1x128xi32> to vector<128x128xi32>
    %548 = vector.broadcast %3 : vector<128x1xi32> to vector<128x128xi32>
    %549 = arith.cmpi eq, %547, %548 : vector<128x128xi32>
    %550 = arith.extui %549 : vector<128x128xi1> to vector<128x128xi32>
    %551 = arith.sitofp %550 : vector<128x128xi32> to vector<128x128xf32>
    %552 = arith.truncf %551 : vector<128x128xf32> to vector<128x128xbf16>
    %553 = vector.broadcast %545 : vector<1x128xi32> to vector<128x128xi32>
    %554 = vector.broadcast %3 : vector<128x1xi32> to vector<128x128xi32>
    %555 = arith.cmpi eq, %553, %554 : vector<128x128xi32>
    %cst_240 = arith.constant 0.000000e+00 : f32
    %556 = vector.shape_cast %546 : vector<1x128xf32> to vector<1x128xf32>
    %557 = vector.broadcast %556 : vector<1x128xf32> to vector<128x128xf32>
    %558 = vector.broadcast %cst_240 : f32 to vector<128x128xf32>
    %559 = arith.select %555, %557, %558 : vector<128x128xi1>, vector<128x128xf32>
    %560 = arith.truncf %559 : vector<128x128xf32> to vector<128x128xbf16>
    %561 = arith.extf %560 : vector<128x128xbf16> to vector<128x128xf32>
    %562 = arith.subf %559, %561 : vector<128x128xf32>
    %563 = arith.truncf %562 : vector<128x128xf32> to vector<128x128xbf16>
    %cst_241 = arith.constant dense<0.000000e+00> : vector<128x128xf32>
    %564 = tpu.matmul %560, %552, %cst_241 {dimension_numbers = #tpu.dot_dimension_numbers<[1], [1], [0], [0], [0, 0, 1, 0], [], []>} : vector<128x128xbf16>, vector<128x128xbf16>, vector<128x128xf32> -> vector<128x128xf32>
    %565 = arith.addf %543, %564 : vector<128x128xf32>
    %cst_242 = arith.constant dense<0.000000e+00> : vector<128x128xf32>
    %566 = tpu.matmul %563, %552, %cst_242 {dimension_numbers = #tpu.dot_dimension_numbers<[1], [1], [0], [0], [0, 0, 1, 0], [], []>} : vector<128x128xbf16>, vector<128x128xbf16>, vector<128x128xf32> -> vector<128x128xf32>
    %567 = arith.addf %565, %566 : vector<128x128xf32>
    %cst_243 = arith.constant 0.000000e+00 : f32
    %568 = vector.broadcast %cst_243 : f32 to vector<128x128xf32>
    %569 = arith.select %6, %567, %568 : vector<128x128xi1>, vector<128x128xf32>
    %cst_244 = arith.constant dense<0.000000e+00> : vector<128xf32>
    %570 = vector.multi_reduction <add>, %569, %cst_244 [1] : vector<128x128xf32> to vector<128xf32>
    %571 = vector.shape_cast %570 : vector<128xf32> to vector<128x1xf32>
    %cst_245 = arith.constant 0.000000e+00 : f32
    %572 = vector.broadcast %cst_245 : f32 to vector<128x1xf32>
    %573 = arith.subf %572, %571 : vector<128x1xf32>
    %574 = vector.shape_cast %573 : vector<128x1xf32> to vector<128x1xf32>
    %575 = vector.broadcast %574 : vector<128x1xf32> to vector<128x128xf32>
    %576 = arith.select %8, %575, %567 : vector<128x128xi1>, vector<128x128xf32>
    %c7_246 = arith.constant 7 : index
    %c0_247 = arith.constant 0 : index
    %c0_248 = arith.constant 0 : index
    %577 = vector.load %arg4[%c7_246, %c0_247, %c0_248] : memref<8x8x1xi32, #tpu.memory_space<vmem>>, vector<1x8x1xi32>
    %578 = vector.shape_cast %577 : vector<1x8x1xi32> to vector<8x1xi32>
    %c7_249 = arith.constant 7 : index
    %c0_250 = arith.constant 0 : index
    %c0_251 = arith.constant 0 : index
    %579 = vector.load %arg5[%c7_249, %c0_250, %c0_251] : memref<8x8x1xi32, #tpu.memory_space<vmem>>, vector<1x8x1xi32>
    %580 = vector.shape_cast %579 : vector<1x8x1xi32> to vector<8x1xi32>
    %c1_i32_252 = arith.constant 1 : i32
    %581 = vector.broadcast %c1_i32_252 : i32 to vector<8x1xi32>
    %582 = arith.addi %580, %581 : vector<8x1xi32>
    %583 = vector.broadcast %582 : vector<8x1xi32> to vector<8x128xi32>
    %584 = vector.broadcast %0 : vector<1x128xi32> to vector<8x128xi32>
    %585 = arith.cmpi eq, %583, %584 : vector<8x128xi32>
    %586 = arith.extui %585 : vector<8x128xi1> to vector<8x128xi32>
    %587 = arith.sitofp %586 : vector<8x128xi32> to vector<8x128xf32>
    %c1_i32_253 = arith.constant 1 : i32
    %588 = vector.broadcast %c1_i32_253 : i32 to vector<8x1xi32>
    %589 = arith.addi %578, %588 : vector<8x1xi32>
    %590 = vector.broadcast %589 : vector<8x1xi32> to vector<8x128xi32>
    %591 = vector.broadcast %0 : vector<1x128xi32> to vector<8x128xi32>
    %592 = arith.cmpi eq, %590, %591 : vector<8x128xi32>
    %593 = arith.extui %592 : vector<8x128xi1> to vector<8x128xi32>
    %594 = arith.sitofp %593 : vector<8x128xi32> to vector<8x128xf32>
    %cst_254 = arith.constant dense<0.000000e+00> : vector<8x128xf32>
    %595 = tpu.matmul %587, %576, %cst_254 {dimension_numbers = #tpu.dot_dimension_numbers<[1], [0], [0], [1], [0, 0, 1, 1], [], []>} : vector<8x128xf32>, vector<128x128xf32>, vector<8x128xf32> -> vector<8x128xf32>
    %596 = arith.mulf %595, %594 : vector<8x128xf32>
    %cst_255 = arith.constant dense<0.000000e+00> : vector<8xf32>
    %597 = vector.multi_reduction <add>, %596, %cst_255 [1] : vector<8x128xf32> to vector<8xf32>
    %598 = vector.shape_cast %597 : vector<8xf32> to vector<8x1xf32>
    %c7_256 = arith.constant 7 : index
    %c0_257 = arith.constant 0 : index
    %c0_258 = arith.constant 0 : index
    %599 = vector.load %arg7[%c7_256, %c0_257, %c0_258] : memref<8x8x1xf32, #tpu.memory_space<vmem>>, vector<1x8x1xf32>
    %600 = vector.shape_cast %599 : vector<1x8x1xf32> to vector<8x1xf32>
    %c7_259 = arith.constant 7 : index
    %c0_260 = arith.constant 0 : index
    %c0_261 = arith.constant 0 : index
    %601 = vector.load %arg6[%c7_259, %c0_260, %c0_261] : memref<8x8x1xf32, #tpu.memory_space<vmem>>, vector<1x8x1xf32>
    %602 = vector.shape_cast %601 : vector<1x8x1xf32> to vector<8x1xf32>
    %cst_262 = arith.constant 2.000000e+00 : f32
    %603 = vector.broadcast %cst_262 : f32 to vector<8x1xf32>
    %604 = arith.mulf %603, %602 : vector<8x1xf32>
    %cst_263 = arith.constant 1.000000e+00 : f32
    %605 = vector.broadcast %cst_263 : f32 to vector<8x1xf32>
    %606 = arith.subf %604, %605 : vector<8x1xf32>
    %607 = arith.mulf %600, %606 : vector<8x1xf32>
    %608 = arith.mulf %598, %607 : vector<8x1xf32>
    %cst_264 = arith.constant dense<0.000000e+00> : vector<1xf32>
    %609 = vector.multi_reduction <add>, %608, %cst_264 [0] : vector<8x1xf32> to vector<1xf32>
    %610 = vector.shape_cast %609 : vector<1xf32> to vector<1x1xf32>
    %c7_i32 = arith.constant 7 : i32
    %611 = vector.broadcast %c7_i32 : i32 to vector<8x1xi32>
    %612 = arith.cmpi eq, %9, %611 : vector<8x1xi32>
    %cst_265 = arith.constant 0.000000e+00 : f32
    %613 = vector.shape_cast %610 : vector<1x1xf32> to vector<1x1xf32>
    %614 = vector.broadcast %613 : vector<1x1xf32> to vector<8x1xf32>
    %615 = vector.broadcast %cst_265 : f32 to vector<8x1xf32>
    %616 = arith.select %612, %614, %615 : vector<8x1xi1>, vector<8x1xf32>
    %617 = arith.addf %541, %616 : vector<8x1xf32>
    %c896 = arith.constant 896 : index
    %c0_266 = arith.constant 0 : index
    %618 = vector.load %arg10[%c896, %c0_266] : memref<1024x128xf32, #tpu.memory_space<vmem>>, vector<128x128xf32>
    tpu.vector_store %arg10[%c896, %c0_266], %576 {strides = array<i32>} : memref<1024x128xf32, #tpu.memory_space<vmem>>, vector<128x128xf32>,
    %c0_267 = arith.constant 0 : index
    %c0_268 = arith.constant 0 : index
    %619 = vector.load %arg8[%c0_267, %c0_268] : memref<8x128xf32, #tpu.memory_space<vmem>>, vector<8x128xf32>
    %cst_269 = arith.constant dense<0.000000e+00> : vector<8xf32>
    %620 = vector.multi_reduction <add>, %619, %cst_269 [1] : vector<8x128xf32> to vector<8xf32>
    %621 = vector.shape_cast %620 : vector<8xf32> to vector<8x1xf32>
    %cst_270 = arith.constant 1.000000e+00 : f32
    %622 = vector.broadcast %cst_270 : f32 to vector<8x1xf32>
    %623 = arith.subf %621, %622 : vector<8x1xf32>
    %624 = arith.fptosi %623 : vector<8x1xf32> to vector<8x1xi32>
    %cst_271 = arith.constant 0.000000e+00 : f32
    %625 = vector.broadcast %cst_271 : f32 to vector<8x128xf32>
    %cst_272 = arith.constant 0.000000e+00 : f32
    %626 = vector.broadcast %cst_272 : f32 to vector<8x1xf32>
    %cst_273 = arith.constant 0.000000e+00 : f32
    %627 = vector.broadcast %cst_273 : f32 to vector<8x128xf32>
    %cst_274 = arith.constant 0xFF800000 : f32
    %c1_i32_275 = arith.constant 1 : i32
    %628 = arith.index_cast %c1_i32_275 : i32 to index
    %c0_276 = arith.constant 0 : index
    %629 = tpu.strided_load %arg10[%628, %c0_276] {strides = array<i32: 128, 1>} : memref<1024x128xf32, #tpu.memory_space<vmem>>, vector<8x128xf32>
    %c0_i32_277 = arith.constant 0 : i32
    %630 = vector.broadcast %c0_i32_277 : i32 to vector<1x128xi32>
    %631 = arith.cmpi eq, %0, %630 : vector<1x128xi32>
    %632 = vector.shape_cast %631 : vector<1x128xi1> to vector<1x128xi1>
    %633 = vector.broadcast %632 : vector<1x128xi1> to vector<8x128xi1>
    %634 = vector.shape_cast %626 : vector<8x1xf32> to vector<8x1xf32>
    %635 = vector.broadcast %634 : vector<8x1xf32> to vector<8x128xf32>
    %636 = arith.select %633, %635, %625 : vector<8x128xi1>, vector<8x128xf32>
    %637 = arith.addf %636, %629 : vector<8x128xf32>
    %638 = vector.broadcast %c1_i32_275 : i32 to vector<8x1xi32>
    %639 = arith.cmpi eq, %624, %638 : vector<8x1xi32>
    %640 = vector.shape_cast %639 : vector<8x1xi1> to vector<8x1xi1>
    %641 = vector.broadcast %640 : vector<8x1xi1> to vector<8x128xi1>
    %642 = arith.select %641, %637, %627 : vector<8x128xi1>, vector<8x128xf32>
    %643 = vector.broadcast %c1_i32_275 : i32 to vector<1x128xi32>
    %644 = arith.cmpi sle, %0, %643 : vector<1x128xi32>
    %645 = vector.shape_cast %644 : vector<1x128xi1> to vector<1x128xi1>
    %646 = vector.broadcast %645 : vector<1x128xi1> to vector<8x128xi1>
    %647 = vector.broadcast %cst_274 : f32 to vector<8x128xf32>
    %648 = arith.select %646, %637, %647 : vector<8x128xi1>, vector<8x128xf32>
    %cst_278 = arith.constant dense<0xFF800000> : vector<8xf32>
    %649 = vector.multi_reduction <maximumf>, %648, %cst_278 [1] : vector<8x128xf32> to vector<8xf32>
    %650 = vector.shape_cast %649 : vector<8xf32> to vector<8x1xf32>
    %651 = vector.broadcast %650 : vector<8x1xf32> to vector<8x128xf32>
    %652 = arith.subf %648, %651 : vector<8x128xf32>
    %653 = math.exp %652 : vector<8x128xf32>
    %cst_279 = arith.constant dense<0.000000e+00> : vector<8xf32>
    %654 = vector.multi_reduction <add>, %653, %cst_279 [1] : vector<8x128xf32> to vector<8xf32>
    %655 = vector.shape_cast %654 : vector<8xf32> to vector<8x1xf32>
    %656 = math.log %655 : vector<8x1xf32>
    %657 = arith.addf %650, %656 : vector<8x1xf32>
    %c1_i32_280 = arith.constant 1 : i32
    %658 = arith.addi %c1_i32_275, %c1_i32_280 : i32
    %659 = vector.broadcast %658 : i32 to vector<1x128xi32>
    %660 = arith.cmpi eq, %0, %659 : vector<1x128xi32>
    %661 = vector.shape_cast %660 : vector<1x128xi1> to vector<1x128xi1>
    %662 = vector.broadcast %661 : vector<1x128xi1> to vector<8x128xi1>
    %663 = vector.shape_cast %657 : vector<8x1xf32> to vector<8x1xf32>
    %664 = vector.broadcast %663 : vector<8x1xf32> to vector<8x128xf32>
    %665 = arith.select %662, %664, %625 : vector<8x128xi1>, vector<8x128xf32>
    %c2_i32_281 = arith.constant 2 : i32
    %666 = arith.index_cast %c2_i32_281 : i32 to index
    %c0_282 = arith.constant 0 : index
    %667 = tpu.strided_load %arg10[%666, %c0_282] {strides = array<i32: 128, 1>} : memref<1024x128xf32, #tpu.memory_space<vmem>>, vector<8x128xf32>
    %c0_i32_283 = arith.constant 0 : i32
    %668 = vector.broadcast %c0_i32_283 : i32 to vector<1x128xi32>
    %669 = arith.cmpi eq, %0, %668 : vector<1x128xi32>
    %670 = vector.shape_cast %669 : vector<1x128xi1> to vector<1x128xi1>
    %671 = vector.broadcast %670 : vector<1x128xi1> to vector<8x128xi1>
    %672 = vector.shape_cast %657 : vector<8x1xf32> to vector<8x1xf32>
    %673 = vector.broadcast %672 : vector<8x1xf32> to vector<8x128xf32>
    %674 = arith.select %671, %673, %665 : vector<8x128xi1>, vector<8x128xf32>
    %675 = arith.addf %674, %667 : vector<8x128xf32>
    %676 = vector.broadcast %c2_i32_281 : i32 to vector<8x1xi32>
    %677 = arith.cmpi eq, %624, %676 : vector<8x1xi32>
    %678 = vector.shape_cast %677 : vector<8x1xi1> to vector<8x1xi1>
    %679 = vector.broadcast %678 : vector<8x1xi1> to vector<8x128xi1>
    %680 = arith.select %679, %675, %642 : vector<8x128xi1>, vector<8x128xf32>
    %681 = vector.broadcast %c2_i32_281 : i32 to vector<1x128xi32>
    %682 = arith.cmpi sle, %0, %681 : vector<1x128xi32>
    %683 = vector.shape_cast %682 : vector<1x128xi1> to vector<1x128xi1>
    %684 = vector.broadcast %683 : vector<1x128xi1> to vector<8x128xi1>
    %685 = vector.broadcast %cst_274 : f32 to vector<8x128xf32>
    %686 = arith.select %684, %675, %685 : vector<8x128xi1>, vector<8x128xf32>
    %cst_284 = arith.constant dense<0xFF800000> : vector<8xf32>
    %687 = vector.multi_reduction <maximumf>, %686, %cst_284 [1] : vector<8x128xf32> to vector<8xf32>
    %688 = vector.shape_cast %687 : vector<8xf32> to vector<8x1xf32>
    %689 = vector.broadcast %688 : vector<8x1xf32> to vector<8x128xf32>
    %690 = arith.subf %686, %689 : vector<8x128xf32>
    %691 = math.exp %690 : vector<8x128xf32>
    %cst_285 = arith.constant dense<0.000000e+00> : vector<8xf32>
    %692 = vector.multi_reduction <add>, %691, %cst_285 [1] : vector<8x128xf32> to vector<8xf32>
    %693 = vector.shape_cast %692 : vector<8xf32> to vector<8x1xf32>
    %694 = math.log %693 : vector<8x1xf32>
    %695 = arith.addf %688, %694 : vector<8x1xf32>
    %c1_i32_286 = arith.constant 1 : i32
    %696 = arith.addi %c2_i32_281, %c1_i32_286 : i32
    %697 = vector.broadcast %696 : i32 to vector<1x128xi32>
    %698 = arith.cmpi eq, %0, %697 : vector<1x128xi32>
    %699 = vector.shape_cast %698 : vector<1x128xi1> to vector<1x128xi1>
    %700 = vector.broadcast %699 : vector<1x128xi1> to vector<8x128xi1>
    %701 = vector.shape_cast %695 : vector<8x1xf32> to vector<8x1xf32>
    %702 = vector.broadcast %701 : vector<8x1xf32> to vector<8x128xf32>
    %703 = arith.select %700, %702, %665 : vector<8x128xi1>, vector<8x128xf32>
    %c3_i32_287 = arith.constant 3 : i32
    %704 = arith.index_cast %c3_i32_287 : i32 to index
    %c0_288 = arith.constant 0 : index
    %705 = tpu.strided_load %arg10[%704, %c0_288] {strides = array<i32: 128, 1>} : memref<1024x128xf32, #tpu.memory_space<vmem>>, vector<8x128xf32>
    %c0_i32_289 = arith.constant 0 : i32
    %706 = vector.broadcast %c0_i32_289 : i32 to vector<1x128xi32>
    %707 = arith.cmpi eq, %0, %706 : vector<1x128xi32>
    %708 = vector.shape_cast %707 : vector<1x128xi1> to vector<1x128xi1>
    %709 = vector.broadcast %708 : vector<1x128xi1> to vector<8x128xi1>
    %710 = vector.shape_cast %695 : vector<8x1xf32> to vector<8x1xf32>
    %711 = vector.broadcast %710 : vector<8x1xf32> to vector<8x128xf32>
    %712 = arith.select %709, %711, %703 : vector<8x128xi1>, vector<8x128xf32>
    %713 = arith.addf %712, %705 : vector<8x128xf32>
    %714 = vector.broadcast %c3_i32_287 : i32 to vector<8x1xi32>
    %715 = arith.cmpi eq, %624, %714 : vector<8x1xi32>
    %716 = vector.shape_cast %715 : vector<8x1xi1> to vector<8x1xi1>
    %717 = vector.broadcast %716 : vector<8x1xi1> to vector<8x128xi1>
    %718 = arith.select %717, %713, %680 : vector<8x128xi1>, vector<8x128xf32>
    %719 = vector.broadcast %c3_i32_287 : i32 to vector<1x128xi32>
    %720 = arith.cmpi sle, %0, %719 : vector<1x128xi32>
    %721 = vector.shape_cast %720 : vector<1x128xi1> to vector<1x128xi1>
    %722 = vector.broadcast %721 : vector<1x128xi1> to vector<8x128xi1>
    %723 = vector.broadcast %cst_274 : f32 to vector<8x128xf32>
    %724 = arith.select %722, %713, %723 : vector<8x128xi1>, vector<8x128xf32>
    %cst_290 = arith.constant dense<0xFF800000> : vector<8xf32>
    %725 = vector.multi_reduction <maximumf>, %724, %cst_290 [1] : vector<8x128xf32> to vector<8xf32>
    %726 = vector.shape_cast %725 : vector<8xf32> to vector<8x1xf32>
    %727 = vector.broadcast %726 : vector<8x1xf32> to vector<8x128xf32>
    %728 = arith.subf %724, %727 : vector<8x128xf32>
    %729 = math.exp %728 : vector<8x128xf32>
    %cst_291 = arith.constant dense<0.000000e+00> : vector<8xf32>
    %730 = vector.multi_reduction <add>, %729, %cst_291 [1] : vector<8x128xf32> to vector<8xf32>
    %731 = vector.shape_cast %730 : vector<8xf32> to vector<8x1xf32>
    %732 = math.log %731 : vector<8x1xf32>
    %733 = arith.addf %726, %732 : vector<8x1xf32>
    %c1_i32_292 = arith.constant 1 : i32
    %734 = arith.addi %c3_i32_287, %c1_i32_292 : i32
    %735 = vector.broadcast %734 : i32 to vector<1x128xi32>
    %736 = arith.cmpi eq, %0, %735 : vector<1x128xi32>
    %737 = vector.shape_cast %736 : vector<1x128xi1> to vector<1x128xi1>
    %738 = vector.broadcast %737 : vector<1x128xi1> to vector<8x128xi1>
    %739 = vector.shape_cast %733 : vector<8x1xf32> to vector<8x1xf32>
    %740 = vector.broadcast %739 : vector<8x1xf32> to vector<8x128xf32>
    %741 = arith.select %738, %740, %703 : vector<8x128xi1>, vector<8x128xf32>
    %c4_i32_293 = arith.constant 4 : i32
    %742 = arith.index_cast %c4_i32_293 : i32 to index
    %c0_294 = arith.constant 0 : index
    %743 = tpu.strided_load %arg10[%742, %c0_294] {strides = array<i32: 128, 1>} : memref<1024x128xf32, #tpu.memory_space<vmem>>, vector<8x128xf32>
    %c0_i32_295 = arith.constant 0 : i32
    %744 = vector.broadcast %c0_i32_295 : i32 to vector<1x128xi32>
    %745 = arith.cmpi eq, %0, %744 : vector<1x128xi32>
    %746 = vector.shape_cast %745 : vector<1x128xi1> to vector<1x128xi1>
    %747 = vector.broadcast %746 : vector<1x128xi1> to vector<8x128xi1>
    %748 = vector.shape_cast %733 : vector<8x1xf32> to vector<8x1xf32>
    %749 = vector.broadcast %748 : vector<8x1xf32> to vector<8x128xf32>
    %750 = arith.select %747, %749, %741 : vector<8x128xi1>, vector<8x128xf32>
    %751 = arith.addf %750, %743 : vector<8x128xf32>
    %752 = vector.broadcast %c4_i32_293 : i32 to vector<8x1xi32>
    %753 = arith.cmpi eq, %624, %752 : vector<8x1xi32>
    %754 = vector.shape_cast %753 : vector<8x1xi1> to vector<8x1xi1>
    %755 = vector.broadcast %754 : vector<8x1xi1> to vector<8x128xi1>
    %756 = arith.select %755, %751, %718 : vector<8x128xi1>, vector<8x128xf32>
    %757 = vector.broadcast %c4_i32_293 : i32 to vector<1x128xi32>
    %758 = arith.cmpi sle, %0, %757 : vector<1x128xi32>
    %759 = vector.shape_cast %758 : vector<1x128xi1> to vector<1x128xi1>
    %760 = vector.broadcast %759 : vector<1x128xi1> to vector<8x128xi1>
    %761 = vector.broadcast %cst_274 : f32 to vector<8x128xf32>
    %762 = arith.select %760, %751, %761 : vector<8x128xi1>, vector<8x128xf32>
    %cst_296 = arith.constant dense<0xFF800000> : vector<8xf32>
    %763 = vector.multi_reduction <maximumf>, %762, %cst_296 [1] : vector<8x128xf32> to vector<8xf32>
    %764 = vector.shape_cast %763 : vector<8xf32> to vector<8x1xf32>
    %765 = vector.broadcast %764 : vector<8x1xf32> to vector<8x128xf32>
    %766 = arith.subf %762, %765 : vector<8x128xf32>
    %767 = math.exp %766 : vector<8x128xf32>
    %cst_297 = arith.constant dense<0.000000e+00> : vector<8xf32>
    %768 = vector.multi_reduction <add>, %767, %cst_297 [1] : vector<8x128xf32> to vector<8xf32>
    %769 = vector.shape_cast %768 : vector<8xf32> to vector<8x1xf32>
    %770 = math.log %769 : vector<8x1xf32>
    %771 = arith.addf %764, %770 : vector<8x1xf32>
    %c1_i32_298 = arith.constant 1 : i32
    %772 = arith.addi %c4_i32_293, %c1_i32_298 : i32
    %773 = vector.broadcast %772 : i32 to vector<1x128xi32>
    %774 = arith.cmpi eq, %0, %773 : vector<1x128xi32>
    %775 = vector.shape_cast %774 : vector<1x128xi1> to vector<1x128xi1>
    %776 = vector.broadcast %775 : vector<1x128xi1> to vector<8x128xi1>
    %777 = vector.shape_cast %771 : vector<8x1xf32> to vector<8x1xf32>
    %778 = vector.broadcast %777 : vector<8x1xf32> to vector<8x128xf32>
    %779 = arith.select %776, %778, %741 : vector<8x128xi1>, vector<8x128xf32>
    %c5_i32_299 = arith.constant 5 : i32
    %780 = arith.index_cast %c5_i32_299 : i32 to index
    %c0_300 = arith.constant 0 : index
    %781 = tpu.strided_load %arg10[%780, %c0_300] {strides = array<i32: 128, 1>} : memref<1024x128xf32, #tpu.memory_space<vmem>>, vector<8x128xf32>
    %c0_i32_301 = arith.constant 0 : i32
    %782 = vector.broadcast %c0_i32_301 : i32 to vector<1x128xi32>
    %783 = arith.cmpi eq, %0, %782 : vector<1x128xi32>
    %784 = vector.shape_cast %783 : vector<1x128xi1> to vector<1x128xi1>
    %785 = vector.broadcast %784 : vector<1x128xi1> to vector<8x128xi1>
    %786 = vector.shape_cast %771 : vector<8x1xf32> to vector<8x1xf32>
    %787 = vector.broadcast %786 : vector<8x1xf32> to vector<8x128xf32>
    %788 = arith.select %785, %787, %779 : vector<8x128xi1>, vector<8x128xf32>
    %789 = arith.addf %788, %781 : vector<8x128xf32>
    %790 = vector.broadcast %c5_i32_299 : i32 to vector<8x1xi32>
    %791 = arith.cmpi eq, %624, %790 : vector<8x1xi32>
    %792 = vector.shape_cast %791 : vector<8x1xi1> to vector<8x1xi1>
    %793 = vector.broadcast %792 : vector<8x1xi1> to vector<8x128xi1>
    %794 = arith.select %793, %789, %756 : vector<8x128xi1>, vector<8x128xf32>
    %795 = vector.broadcast %c5_i32_299 : i32 to vector<1x128xi32>
    %796 = arith.cmpi sle, %0, %795 : vector<1x128xi32>
    %797 = vector.shape_cast %796 : vector<1x128xi1> to vector<1x128xi1>
    %798 = vector.broadcast %797 : vector<1x128xi1> to vector<8x128xi1>
    %799 = vector.broadcast %cst_274 : f32 to vector<8x128xf32>
    %800 = arith.select %798, %789, %799 : vector<8x128xi1>, vector<8x128xf32>
    %cst_302 = arith.constant dense<0xFF800000> : vector<8xf32>
    %801 = vector.multi_reduction <maximumf>, %800, %cst_302 [1] : vector<8x128xf32> to vector<8xf32>
    %802 = vector.shape_cast %801 : vector<8xf32> to vector<8x1xf32>
    %803 = vector.broadcast %802 : vector<8x1xf32> to vector<8x128xf32>
    %804 = arith.subf %800, %803 : vector<8x128xf32>
    %805 = math.exp %804 : vector<8x128xf32>
    %cst_303 = arith.constant dense<0.000000e+00> : vector<8xf32>
    %806 = vector.multi_reduction <add>, %805, %cst_303 [1] : vector<8x128xf32> to vector<8xf32>
    %807 = vector.shape_cast %806 : vector<8xf32> to vector<8x1xf32>
    %808 = math.log %807 : vector<8x1xf32>
    %809 = arith.addf %802, %808 : vector<8x1xf32>
    %c1_i32_304 = arith.constant 1 : i32
    %810 = arith.addi %c5_i32_299, %c1_i32_304 : i32
    %811 = vector.broadcast %810 : i32 to vector<1x128xi32>
    %812 = arith.cmpi eq, %0, %811 : vector<1x128xi32>
    %813 = vector.shape_cast %812 : vector<1x128xi1> to vector<1x128xi1>
    %814 = vector.broadcast %813 : vector<1x128xi1> to vector<8x128xi1>
    %815 = vector.shape_cast %809 : vector<8x1xf32> to vector<8x1xf32>
    %816 = vector.broadcast %815 : vector<8x1xf32> to vector<8x128xf32>
    %817 = arith.select %814, %816, %779 : vector<8x128xi1>, vector<8x128xf32>
    %c6_i32_305 = arith.constant 6 : i32
    %818 = arith.index_cast %c6_i32_305 : i32 to index
    %c0_306 = arith.constant 0 : index
    %819 = tpu.strided_load %arg10[%818, %c0_306] {strides = array<i32: 128, 1>} : memref<1024x128xf32, #tpu.memory_space<vmem>>, vector<8x128xf32>
    %c0_i32_307 = arith.constant 0 : i32
    %820 = vector.broadcast %c0_i32_307 : i32 to vector<1x128xi32>
    %821 = arith.cmpi eq, %0, %820 : vector<1x128xi32>
    %822 = vector.shape_cast %821 : vector<1x128xi1> to vector<1x128xi1>
    %823 = vector.broadcast %822 : vector<1x128xi1> to vector<8x128xi1>
    %824 = vector.shape_cast %809 : vector<8x1xf32> to vector<8x1xf32>
    %825 = vector.broadcast %824 : vector<8x1xf32> to vector<8x128xf32>
    %826 = arith.select %823, %825, %817 : vector<8x128xi1>, vector<8x128xf32>
    %827 = arith.addf %826, %819 : vector<8x128xf32>
    %828 = vector.broadcast %c6_i32_305 : i32 to vector<8x1xi32>
    %829 = arith.cmpi eq, %624, %828 : vector<8x1xi32>
    %830 = vector.shape_cast %829 : vector<8x1xi1> to vector<8x1xi1>
    %831 = vector.broadcast %830 : vector<8x1xi1> to vector<8x128xi1>
    %832 = arith.select %831, %827, %794 : vector<8x128xi1>, vector<8x128xf32>
    %833 = vector.broadcast %c6_i32_305 : i32 to vector<1x128xi32>
    %834 = arith.cmpi sle, %0, %833 : vector<1x128xi32>
    %835 = vector.shape_cast %834 : vector<1x128xi1> to vector<1x128xi1>
    %836 = vector.broadcast %835 : vector<1x128xi1> to vector<8x128xi1>
    %837 = vector.broadcast %cst_274 : f32 to vector<8x128xf32>
    %838 = arith.select %836, %827, %837 : vector<8x128xi1>, vector<8x128xf32>
    %cst_308 = arith.constant dense<0xFF800000> : vector<8xf32>
    %839 = vector.multi_reduction <maximumf>, %838, %cst_308 [1] : vector<8x128xf32> to vector<8xf32>
    %840 = vector.shape_cast %839 : vector<8xf32> to vector<8x1xf32>
    %841 = vector.broadcast %840 : vector<8x1xf32> to vector<8x128xf32>
    %842 = arith.subf %838, %841 : vector<8x128xf32>
    %843 = math.exp %842 : vector<8x128xf32>
    %cst_309 = arith.constant dense<0.000000e+00> : vector<8xf32>
    %844 = vector.multi_reduction <add>, %843, %cst_309 [1] : vector<8x128xf32> to vector<8xf32>
    %845 = vector.shape_cast %844 : vector<8xf32> to vector<8x1xf32>
    %846 = math.log %845 : vector<8x1xf32>
    %847 = arith.addf %840, %846 : vector<8x1xf32>
    %c1_i32_310 = arith.constant 1 : i32
    %848 = arith.addi %c6_i32_305, %c1_i32_310 : i32
    %849 = vector.broadcast %848 : i32 to vector<1x128xi32>
    %850 = arith.cmpi eq, %0, %849 : vector<1x128xi32>
    %851 = vector.shape_cast %850 : vector<1x128xi1> to vector<1x128xi1>
    %852 = vector.broadcast %851 : vector<1x128xi1> to vector<8x128xi1>
    %853 = vector.shape_cast %847 : vector<8x1xf32> to vector<8x1xf32>
    %854 = vector.broadcast %853 : vector<8x1xf32> to vector<8x128xf32>
    %855 = arith.select %852, %854, %817 : vector<8x128xi1>, vector<8x128xf32>
    %c7_i32_311 = arith.constant 7 : i32
    %856 = arith.index_cast %c7_i32_311 : i32 to index
    %c0_312 = arith.constant 0 : index
    %857 = tpu.strided_load %arg10[%856, %c0_312] {strides = array<i32: 128, 1>} : memref<1024x128xf32, #tpu.memory_space<vmem>>, vector<8x128xf32>
    %c0_i32_313 = arith.constant 0 : i32
    %858 = vector.broadcast %c0_i32_313 : i32 to vector<1x128xi32>
    %859 = arith.cmpi eq, %0, %858 : vector<1x128xi32>
    %860 = vector.shape_cast %859 : vector<1x128xi1> to vector<1x128xi1>
    %861 = vector.broadcast %860 : vector<1x128xi1> to vector<8x128xi1>
    %862 = vector.shape_cast %847 : vector<8x1xf32> to vector<8x1xf32>
    %863 = vector.broadcast %862 : vector<8x1xf32> to vector<8x128xf32>
    %864 = arith.select %861, %863, %855 : vector<8x128xi1>, vector<8x128xf32>
    %865 = arith.addf %864, %857 : vector<8x128xf32>
    %866 = vector.broadcast %c7_i32_311 : i32 to vector<8x1xi32>
    %867 = arith.cmpi eq, %624, %866 : vector<8x1xi32>
    %868 = vector.shape_cast %867 : vector<8x1xi1> to vector<8x1xi1>
    %869 = vector.broadcast %868 : vector<8x1xi1> to vector<8x128xi1>
    %870 = arith.select %869, %865, %832 : vector<8x128xi1>, vector<8x128xf32>
    %871 = vector.broadcast %c7_i32_311 : i32 to vector<1x128xi32>
    %872 = arith.cmpi sle, %0, %871 : vector<1x128xi32>
    %873 = vector.shape_cast %872 : vector<1x128xi1> to vector<1x128xi1>
    %874 = vector.broadcast %873 : vector<1x128xi1> to vector<8x128xi1>
    %875 = vector.broadcast %cst_274 : f32 to vector<8x128xf32>
    %876 = arith.select %874, %865, %875 : vector<8x128xi1>, vector<8x128xf32>
    %cst_314 = arith.constant dense<0xFF800000> : vector<8xf32>
    %877 = vector.multi_reduction <maximumf>, %876, %cst_314 [1] : vector<8x128xf32> to vector<8xf32>
    %878 = vector.shape_cast %877 : vector<8xf32> to vector<8x1xf32>
    %879 = vector.broadcast %878 : vector<8x1xf32> to vector<8x128xf32>
    %880 = arith.subf %876, %879 : vector<8x128xf32>
    %881 = math.exp %880 : vector<8x128xf32>
    %cst_315 = arith.constant dense<0.000000e+00> : vector<8xf32>
    %882 = vector.multi_reduction <add>, %881, %cst_315 [1] : vector<8x128xf32> to vector<8xf32>
    %883 = vector.shape_cast %882 : vector<8xf32> to vector<8x1xf32>
    %884 = math.log %883 : vector<8x1xf32>
    %885 = arith.addf %878, %884 : vector<8x1xf32>
    %c1_i32_316 = arith.constant 1 : i32
    %886 = arith.addi %c7_i32_311, %c1_i32_316 : i32
    %887 = vector.broadcast %886 : i32 to vector<1x128xi32>
    %888 = arith.cmpi eq, %0, %887 : vector<1x128xi32>
    %889 = vector.shape_cast %888 : vector<1x128xi1> to vector<1x128xi1>
    %890 = vector.broadcast %889 : vector<1x128xi1> to vector<8x128xi1>
    %891 = vector.shape_cast %885 : vector<8x1xf32> to vector<8x1xf32>
    %892 = vector.broadcast %891 : vector<8x1xf32> to vector<8x128xf32>
    %893 = arith.select %890, %892, %855 : vector<8x128xi1>, vector<8x128xf32>
    %c8_i32 = arith.constant 8 : i32
    %894 = arith.index_cast %c8_i32 : i32 to index
    %c0_317 = arith.constant 0 : index
    %895 = tpu.strided_load %arg10[%894, %c0_317] {strides = array<i32: 128, 1>} : memref<1024x128xf32, #tpu.memory_space<vmem>>, vector<8x128xf32>
    %c0_i32_318 = arith.constant 0 : i32
    %896 = vector.broadcast %c0_i32_318 : i32 to vector<1x128xi32>
    %897 = arith.cmpi eq, %0, %896 : vector<1x128xi32>
    %898 = vector.shape_cast %897 : vector<1x128xi1> to vector<1x128xi1>
    %899 = vector.broadcast %898 : vector<1x128xi1> to vector<8x128xi1>
    %900 = vector.shape_cast %885 : vector<8x1xf32> to vector<8x1xf32>
    %901 = vector.broadcast %900 : vector<8x1xf32> to vector<8x128xf32>
    %902 = arith.select %899, %901, %893 : vector<8x128xi1>, vector<8x128xf32>
    %903 = arith.addf %902, %895 : vector<8x128xf32>
    %904 = vector.broadcast %c8_i32 : i32 to vector<8x1xi32>
    %905 = arith.cmpi eq, %624, %904 : vector<8x1xi32>
    %906 = vector.shape_cast %905 : vector<8x1xi1> to vector<8x1xi1>
    %907 = vector.broadcast %906 : vector<8x1xi1> to vector<8x128xi1>
    %908 = arith.select %907, %903, %870 : vector<8x128xi1>, vector<8x128xf32>
    %909 = vector.broadcast %c8_i32 : i32 to vector<1x128xi32>
    %910 = arith.cmpi sle, %0, %909 : vector<1x128xi32>
    %911 = vector.shape_cast %910 : vector<1x128xi1> to vector<1x128xi1>
    %912 = vector.broadcast %911 : vector<1x128xi1> to vector<8x128xi1>
    %913 = vector.broadcast %cst_274 : f32 to vector<8x128xf32>
    %914 = arith.select %912, %903, %913 : vector<8x128xi1>, vector<8x128xf32>
    %cst_319 = arith.constant dense<0xFF800000> : vector<8xf32>
    %915 = vector.multi_reduction <maximumf>, %914, %cst_319 [1] : vector<8x128xf32> to vector<8xf32>
    %916 = vector.shape_cast %915 : vector<8xf32> to vector<8x1xf32>
    %917 = vector.broadcast %916 : vector<8x1xf32> to vector<8x128xf32>
    %918 = arith.subf %914, %917 : vector<8x128xf32>
    %919 = math.exp %918 : vector<8x128xf32>
    %cst_320 = arith.constant dense<0.000000e+00> : vector<8xf32>
    %920 = vector.multi_reduction <add>, %919, %cst_320 [1] : vector<8x128xf32> to vector<8xf32>
    %921 = vector.shape_cast %920 : vector<8xf32> to vector<8x1xf32>
    %922 = math.log %921 : vector<8x1xf32>
    %923 = arith.addf %916, %922 : vector<8x1xf32>
    %c1_i32_321 = arith.constant 1 : i32
    %924 = arith.addi %c8_i32, %c1_i32_321 : i32
    %925 = vector.broadcast %924 : i32 to vector<1x128xi32>
    %926 = arith.cmpi eq, %0, %925 : vector<1x128xi32>
    %927 = vector.shape_cast %926 : vector<1x128xi1> to vector<1x128xi1>
    %928 = vector.broadcast %927 : vector<1x128xi1> to vector<8x128xi1>
    %929 = vector.shape_cast %923 : vector<8x1xf32> to vector<8x1xf32>
    %930 = vector.broadcast %929 : vector<8x1xf32> to vector<8x128xf32>
    %931 = arith.select %928, %930, %893 : vector<8x128xi1>, vector<8x128xf32>
    %c8_i32_322 = arith.constant 8 : i32
    %932 = vector.broadcast %0 : vector<1x128xi32> to vector<8x128xi32>
    %933 = vector.broadcast %624 : vector<8x1xi32> to vector<8x128xi32>
    %934 = arith.cmpi sle, %932, %933 : vector<8x128xi32>
    %cst_323 = arith.constant 0.000000e+00 : f32
    %935 = vector.broadcast %cst_323 : f32 to vector<8x128xf32>
    %936 = arith.select %934, %908, %935 : vector<8x128xi1>, vector<8x128xf32>
    %937 = math.log %619 : vector<8x128xf32>
    %938 = arith.addf %936, %937 : vector<8x128xf32>
    %cst_324 = arith.constant dense<0xFF800000> : vector<8xf32>
    %939 = vector.multi_reduction <maximumf>, %938, %cst_324 [1] : vector<8x128xf32> to vector<8xf32>
    %940 = vector.shape_cast %939 : vector<8xf32> to vector<8x1xf32>
    %941 = vector.broadcast %940 : vector<8x1xf32> to vector<8x128xf32>
    %942 = arith.subf %938, %941 : vector<8x128xf32>
    %943 = math.exp %942 : vector<8x128xf32>
    %cst_325 = arith.constant dense<0.000000e+00> : vector<8xf32>
    %944 = vector.multi_reduction <add>, %943, %cst_325 [1] : vector<8x128xf32> to vector<8xf32>
    %945 = vector.shape_cast %944 : vector<8xf32> to vector<8x1xf32>
    %946 = math.log %945 : vector<8x1xf32>
    %947 = arith.addf %940, %946 : vector<8x1xf32>
    %948 = arith.subf %617, %947 : vector<8x1xf32>
    %949 = vector.shape_cast %948 : vector<8x1xf32> to vector<8x1xf32>
    %950 = vector.broadcast %949 : vector<8x1xf32> to vector<8x128xf32>
    %c0_326 = arith.constant 0 : index
    %c0_327 = arith.constant 0 : index
    %951 = vector.load %arg9[%c0_326, %c0_327] : memref<8x128xf32, #tpu.memory_space<vmem>>, vector<8x128xf32>
    tpu.vector_store %arg9[%c0_326, %c0_327], %950 {strides = array<i32>} : memref<8x128xf32, #tpu.memory_space<vmem>>, vector<8x128xf32>,
    return
  }
  func.func @transform_0(%arg0: i32) -> (i32, i32) {
    %c0_i32 = arith.constant 0 : i32
    %c0_i32_0 = arith.constant 0 : i32
    return %arg0, %c0_i32 : i32, i32
  }
  func.func @transform_1(%arg0: i32) -> (i32, i32) {
    %c0_i32 = arith.constant 0 : i32
    %c0_i32_0 = arith.constant 0 : i32
    return %arg0, %c0_i32 : i32, i32
  }
  func.func @transform_2(%arg0: i32) -> (i32, i32) {
    %c0_i32 = arith.constant 0 : i32
    %c0_i32_0 = arith.constant 0 : i32
    return %arg0, %c0_i32 : i32, i32
  }
  func.func @transform_3(%arg0: i32) -> (i32, i32, i32) {
    %c0_i32 = arith.constant 0 : i32
    %c0_i32_0 = arith.constant 0 : i32
    %c0_i32_1 = arith.constant 0 : i32
    return %arg0, %c0_i32, %c0_i32_0 : i32, i32, i32
  }
  func.func @transform_4(%arg0: i32) -> (i32, i32, i32) {
    %c0_i32 = arith.constant 0 : i32
    %c0_i32_0 = arith.constant 0 : i32
    %c0_i32_1 = arith.constant 0 : i32
    return %arg0, %c0_i32, %c0_i32_0 : i32, i32, i32
  }
  func.func @transform_5(%arg0: i32) -> (i32, i32, i32) {
    %c0_i32 = arith.constant 0 : i32
    %c0_i32_0 = arith.constant 0 : i32
    %c0_i32_1 = arith.constant 0 : i32
    return %arg0, %c0_i32, %c0_i32_0 : i32, i32, i32
  }
  func.func @transform_6(%arg0: i32) -> (i32, i32, i32) {
    %c0_i32 = arith.constant 0 : i32
    %c0_i32_0 = arith.constant 0 : i32
    %c0_i32_1 = arith.constant 0 : i32
    return %arg0, %c0_i32, %c0_i32_0 : i32, i32, i32
  }
  func.func @transform_7(%arg0: i32) -> (i32, i32) {
    %c0_i32 = arith.constant 0 : i32
    %c0_i32_0 = arith.constant 0 : i32
    return %arg0, %c0_i32 : i32, i32
  }
  func.func @transform_8(%arg0: i32) -> (i32, i32) {
    %c0_i32 = arith.constant 0 : i32
    %c0_i32_0 = arith.constant 0 : i32
    return %arg0, %c0_i32 : i32, i32
  }
}

</mosaic_0001>

<llo_original>
// kernel: tpu_custom_call.1
$region0: #{tpu_custom_call.1}
  #allocation0 [shape = 'u32[]', space=smem, size = 0x4, offset = 0x4, fixed_abs, tag = 'smem constant byte address 0x4 - core index']
  #allocation1 [shape = 'u32[72,128]{1,0:T(1,128)}', space=vmem, size = 0x9000, scoped, tag = 'internal scratch']
  #allocation2 [shape = 'f32[1024,128]{1,0:T(8,128)}', space=vmem, size = 0x80000, scoped, tag = 'scratch operand']
  %s0 = inlined_call_operand.vmem [shape: s32[8,128], index: 0, kind: input, shape index: {}]
  %s1 = inlined_call_operand.vmem [shape: s32[8,128], index: 1, kind: input, shape index: {}]
  %s2 = inlined_call_operand.vmem [shape: f32[8,128], index: 2, kind: input, shape index: {}]
  %s3 = inlined_call_operand.vmem [shape: s32[8,8,1], index: 3, kind: input, shape index: {}]
  %s4 = inlined_call_operand.vmem [shape: s32[8,8,1], index: 4, kind: input, shape index: {}]
  %s5 = inlined_call_operand.vmem [shape: f32[8,8,1], index: 5, kind: input, shape index: {}]
  %s6 = inlined_call_operand.vmem [shape: f32[8,8,1], index: 6, kind: input, shape index: {}]
  %s7 = inlined_call_operand.vmem [shape: f32[8,128], index: 7, kind: input, shape index: {}]
  %s8 = inlined_call_operand.hbm [shape: f32[8,128], index: 8, kind: output, shape index: {}]
  %s9 = sld [smem:[#allocation0]]
  $region42: #{tpu_custom_call.1} parent=0
    _
  %s11 = ssub.s32 1, %s9
  %s12 = scalar_select 0, %s11, %s9
  $region1: #{tpu_custom_call.1} parent=0
    #allocation3 [shape = 'u8[4096]{0}', space=vmem, size = 0x1000, scoped, tag = 'output window, operand 0, single buffered']
    #allocation4 [shape = 's32[1]{0}', space=sflag, size = 0x4, scoped, tag = 'scoped memory for tpu_custom_call.1']
    %13 = vsyncpa [#allocation4], 0
    // Predicated region
    $region2: #{tpu_custom_call.1} parent=1 // pred_check
      _
    $region3: #{tpu_custom_call.1} parent=1 // pred_check_branch
      %15 = sbr.rel (0) target = $region5
    $region4: #{tpu_custom_call.1} parent=1 // pred_region
      _
    $region5: #{tpu_custom_call.1} parent=1 // pred_fallthru
      _
    // Predicated region
    $region6: #{tpu_custom_call.1} parent=1 // pred_check
      _
    $region7: #{tpu_custom_call.1} parent=1 // pred_check_branch
      %17 = sbr.rel (0) target = $region9
    $region8: #{tpu_custom_call.1} parent=1 // pred_region
      _
    $region9: #{tpu_custom_call.1} parent=1 // pred_fallthru
      _
    // Predicated region
    $region10: #{tpu_custom_call.1} parent=1 // pred_check
      _
    $region11: #{tpu_custom_call.1} parent=1 // pred_check_branch
      %19 = sbr.rel (0) target = $region13
    $region12: #{tpu_custom_call.1} parent=1 // pred_region
      _
    $region13: #{tpu_custom_call.1} parent=1 // pred_fallthru
      _
    // Predicated region
    $region14: #{tpu_custom_call.1} parent=1 // pred_check
      _
    $region15: #{tpu_custom_call.1} parent=1 // pred_check_branch
      %21 = sbr.rel (0) target = $region17
    $region16: #{tpu_custom_call.1} parent=1 // pred_region
      _
    $region17: #{tpu_custom_call.1} parent=1 // pred_fallthru
      _
    // Predicated region
    $region18: #{tpu_custom_call.1} parent=1 // pred_check
      _
    $region19: #{tpu_custom_call.1} parent=1 // pred_check_branch
      %23 = sbr.rel (0) target = $region21
    $region20: #{tpu_custom_call.1} parent=1 // pred_region
      _
    $region21: #{tpu_custom_call.1} parent=1 // pred_fallthru
      _
    // Predicated region
    $region22: #{tpu_custom_call.1} parent=1 // pred_check
      _
    $region23: #{tpu_custom_call.1} parent=1 // pred_check_branch
      %25 = sbr.rel (0) target = $region25
    $region24: #{tpu_custom_call.1} parent=1 // pred_region
      _
    $region25: #{tpu_custom_call.1} parent=1 // pred_fallthru
      _
    // Predicated region
    $region26: #{tpu_custom_call.1} parent=1 // pred_check
      _
    $region27: #{tpu_custom_call.1} parent=1 // pred_check_branch
      %27 = sbr.rel (0) target = $region29
    $region28: #{tpu_custom_call.1} parent=1 // pred_region
      _
    $region29: #{tpu_custom_call.1} parent=1 // pred_fallthru
      _
    // Predicated region
    $region30: #{tpu_custom_call.1} parent=1 // pred_check
      _
    $region31: #{tpu_custom_call.1} parent=1 // pred_check_branch
      %29 = sbr.rel (0) target = $region33
    $region32: #{tpu_custom_call.1} parent=1 // pred_region
      _
    $region33: #{tpu_custom_call.1} parent=1 // pred_fallthru
      _
    %v30 = vlaneseq
    %v31 = vand.u32 %v30, 127
    %v32 = vlaneseq
    %v33 = vshrl.u32 %v32, 7
    %v34 = vadd.s32 %v33, 8
    %v35 = vadd.s32 %v33, 16
    %v36 = vadd.s32 %v33, 24
    %v37 = vadd.s32 %v33, 32
    %v38 = vadd.s32 %v33, 40
    %v39 = vadd.s32 %v33, 48
    %v40 = vadd.s32 %v33, 56
    %v41 = vadd.s32 %v33, 64
    %v42 = vadd.s32 %v33, 72
    %v43 = vadd.s32 %v33, 80
    %v44 = vadd.s32 %v33, 88
    %v45 = vadd.s32 %v33, 96
    %v46 = vadd.s32 %v33, 104
    %v47 = vadd.s32 %v33, 112
    %v48 = vadd.s32 %v33, 120
    %v49 = vsub.s32 %v33, 1
    %v50 = vsub.s32 %v34, 1
    %v51 = vsub.s32 %v35, 1
    %v52 = vsub.s32 %v36, 1
    %v53 = vsub.s32 %v37, 1
    %v54 = vsub.s32 %v38, 1
    %v55 = vsub.s32 %v39, 1
    %v56 = vsub.s32 %v40, 1
    %v57 = vsub.s32 %v41, 1
    %v58 = vsub.s32 %v42, 1
    %v59 = vsub.s32 %v43, 1
    %v60 = vsub.s32 %v44, 1
    %v61 = vsub.s32 %v45, 1
    %v62 = vsub.s32 %v46, 1
    %v63 = vsub.s32 %v47, 1
    %v64 = vsub.s32 %v48, 1
    %vm65 = vcmp.eq.s32.totalorder %v33, %v31
    %vm66 = vcmp.eq.s32.totalorder %v34, %v31
    %vm67 = vcmp.eq.s32.totalorder %v35, %v31
    %vm68 = vcmp.eq.s32.totalorder %v36, %v31
    %vm69 = vcmp.eq.s32.totalorder %v37, %v31
    %vm70 = vcmp.eq.s32.totalorder %v38, %v31
    %vm71 = vcmp.eq.s32.totalorder %v39, %v31
    %vm72 = vcmp.eq.s32.totalorder %v40, %v31
    %vm73 = vcmp.eq.s32.totalorder %v41, %v31
    %vm74 = vcmp.eq.s32.totalorder %v42, %v31
    %vm75 = vcmp.eq.s32.totalorder %v43, %v31
    %vm76 = vcmp.eq.s32.totalorder %v44, %v31
    %vm77 = vcmp.eq.s32.totalorder %v45, %v31
    %vm78 = vcmp.eq.s32.totalorder %v46, %v31
    %vm79 = vcmp.eq.s32.totalorder %v47, %v31
    %vm80 = vcmp.eq.s32.totalorder %v48, %v31
    %vm81 = vcmp.eq.s32.totalorder %v31, 0
    %v82 = vld [vmem:[%s0] sm:$0x1]
    %v83 = vld [vmem:[%s1] sm:$0x1]
    %v84 = vld [vmem:[%s2] sm:$0x1]
    %v85 = vperm.slane %v82, 0
    %vm86 = vcmp.eq.s32.totalorder %v85, %v49
    %vm87 = vcmp.eq.s32.totalorder %v85, %v50
    %vm88 = vcmp.eq.s32.totalorder %v85, %v51
    %vm89 = vcmp.eq.s32.totalorder %v85, %v52
    %vm90 = vcmp.eq.s32.totalorder %v85, %v53
    %vm91 = vcmp.eq.s32.totalorder %v85, %v54
    %vm92 = vcmp.eq.s32.totalorder %v85, %v55
    %vm93 = vcmp.eq.s32.totalorder %v85, %v56
    %vm94 = vcmp.eq.s32.totalorder %v85, %v57
    %vm95 = vcmp.eq.s32.totalorder %v85, %v58
    %vm96 = vcmp.eq.s32.totalorder %v85, %v59
    %vm97 = vcmp.eq.s32.totalorder %v85, %v60
    %vm98 = vcmp.eq.s32.totalorder %v85, %v61
    %vm99 = vcmp.eq.s32.totalorder %v85, %v62
    %vm100 = vcmp.eq.s32.totalorder %v85, %v63
    %vm101 = vcmp.eq.s32.totalorder %v85, %v64
    %v102 = vsel %vm86, 1, 0
    %v103 = vsel %vm87, 1, 0
    %v104 = vsel %vm88, 1, 0
    %v105 = vsel %vm89, 1, 0
    %v106 = vsel %vm90, 1, 0
    %v107 = vsel %vm91, 1, 0
    %v108 = vsel %vm92, 1, 0
    %v109 = vsel %vm93, 1, 0
    %v110 = vsel %vm94, 1, 0
    %v111 = vsel %vm95, 1, 0
    %v112 = vsel %vm96, 1, 0
    %v113 = vsel %vm97, 1, 0
    %v114 = vsel %vm98, 1, 0
    %v115 = vsel %vm99, 1, 0
    %v116 = vsel %vm100, 1, 0
    %v117 = vsel %vm101, 1, 0
    %v118 = vcvt.s32.f32 %v102
    %v119 = vcvt.s32.f32 %v103
    %v120 = vcvt.s32.f32 %v104
    %v121 = vcvt.s32.f32 %v105
    %v122 = vcvt.s32.f32 %v106
    %v123 = vcvt.s32.f32 %v107
    %v124 = vcvt.s32.f32 %v108
    %v125 = vcvt.s32.f32 %v109
    %v126 = vcvt.s32.f32 %v110
    %v127 = vcvt.s32.f32 %v111
    %v128 = vcvt.s32.f32 %v112
    %v129 = vcvt.s32.f32 %v113
    %v130 = vcvt.s32.f32 %v114
    %v131 = vcvt.s32.f32 %v115
    %v132 = vcvt.s32.f32 %v116
    %v133 = vcvt.s32.f32 %v117
    %v134 = vpack.c.bf16 %v119, %v118
    %v135 = vpack.c.bf16 %v121, %v120
    %v136 = vpack.c.bf16 %v123, %v122
    %v137 = vpack.c.bf16 %v125, %v124
    %v138 = vpack.c.bf16 %v127, %v126
    %v139 = vpack.c.bf16 %v129, %v128
    %v140 = vpack.c.bf16 %v131, %v130
    %v141 = vpack.c.bf16 %v133, %v132
    %v142 = vperm.slane %v83, 0
    %vm143 = vcmp.eq.s32.totalorder %v142, %v49
    %vm144 = vcmp.eq.s32.totalorder %v142, %v50
    %vm145 = vcmp.eq.s32.totalorder %v142, %v51
    %vm146 = vcmp.eq.s32.totalorder %v142, %v52
    %vm147 = vcmp.eq.s32.totalorder %v142, %v53
    %vm148 = vcmp.eq.s32.totalorder %v142, %v54
    %vm149 = vcmp.eq.s32.totalorder %v142, %v55
    %vm150 = vcmp.eq.s32.totalorder %v142, %v56
    %vm151 = vcmp.eq.s32.totalorder %v142, %v57
    %vm152 = vcmp.eq.s32.totalorder %v142, %v58
    %vm153 = vcmp.eq.s32.totalorder %v142, %v59
    %vm154 = vcmp.eq.s32.totalorder %v142, %v60
    %vm155 = vcmp.eq.s32.totalorder %v142, %v61
    %vm156 = vcmp.eq.s32.totalorder %v142, %v62
    %vm157 = vcmp.eq.s32.totalorder %v142, %v63
    %vm158 = vcmp.eq.s32.totalorder %v142, %v64
    %v159 = vperm.slane %v84, 0
    %v160 = vsel %vm143, %v159, 0.0
    %v161 = vsel %vm144, %v159, 0.0
    %v162 = vsel %vm145, %v159, 0.0
    %v163 = vsel %vm146, %v159, 0.0
    %v164 = vsel %vm147, %v159, 0.0
    %v165 = vsel %vm148, %v159, 0.0
    %v166 = vsel %vm149, %v159, 0.0
    %v167 = vsel %vm150, %v159, 0.0
    %v168 = vsel %vm151, %v159, 0.0
    %v169 = vsel %vm152, %v159, 0.0
    %v170 = vsel %vm153, %v159, 0.0
    %v171 = vsel %vm154, %v159, 0.0
    %v172 = vsel %vm155, %v159, 0.0
    %v173 = vsel %vm156, %v159, 0.0
    %v174 = vsel %vm157, %v159, 0.0
    %v175 = vsel %vm158, %v159, 0.0
    %v176 = vpack.c.bf16 %v160, %v160
    %v177 = vpack.c.bf16 %v161, %v161
    %v178 = vpack.c.bf16 %v162, %v162
    %v179 = vpack.c.bf16 %v163, %v163
    %v180 = vpack.c.bf16 %v164, %v164
    %v181 = vpack.c.bf16 %v165, %v165
    %v182 = vpack.c.bf16 %v166, %v166
    %v183 = vpack.c.bf16 %v167, %v167
    %v184 = vpack.c.bf16 %v168, %v168
    %v185 = vpack.c.bf16 %v169, %v169
    %v186 = vpack.c.bf16 %v170, %v170
    %v187 = vpack.c.bf16 %v171, %v171
    %v188 = vpack.c.bf16 %v172, %v172
    %v189 = vpack.c.bf16 %v173, %v173
    %v190 = vpack.c.bf16 %v174, %v174
    %v191 = vpack.c.bf16 %v175, %v175
    %v192 = vunpack.c.l.bf16 %v176
    %v193 = vunpack.c.l.bf16 %v177
    %v194 = vunpack.c.l.bf16 %v178
    %v195 = vunpack.c.l.bf16 %v179
    %v196 = vunpack.c.l.bf16 %v180
    %v197 = vunpack.c.l.bf16 %v181
    %v198 = vunpack.c.l.bf16 %v182
    %v199 = vunpack.c.l.bf16 %v183
    %v200 = vunpack.c.l.bf16 %v184
    %v201 = vunpack.c.l.bf16 %v185
    %v202 = vunpack.c.l.bf16 %v186
    %v203 = vunpack.c.l.bf16 %v187
    %v204 = vunpack.c.l.bf16 %v188
    %v205 = vunpack.c.l.bf16 %v189
    %v206 = vunpack.c.l.bf16 %v190
    %v207 = vunpack.c.l.bf16 %v191
    %v208 = vsub.f32 %v160, %v192
    %v209 = vsub.f32 %v161, %v193
    %v210 = vsub.f32 %v162, %v194
    %v211 = vsub.f32 %v163, %v195
    %v212 = vsub.f32 %v164, %v196
    %v213 = vsub.f32 %v165, %v197
    %v214 = vsub.f32 %v166, %v198
    %v215 = vsub.f32 %v167, %v199
    %v216 = vsub.f32 %v168, %v200
    %v217 = vsub.f32 %v169, %v201
    %v218 = vsub.f32 %v170, %v202
    %v219 = vsub.f32 %v171, %v203
    %v220 = vsub.f32 %v172, %v204
    %v221 = vsub.f32 %v173, %v205
    %v222 = vsub.f32 %v174, %v206
    %v223 = vsub.f32 %v175, %v207
    %v224 = vpack.c.bf16 %v209, %v208
    %v225 = vpack.c.bf16 %v211, %v210
    %v226 = vpack.c.bf16 %v213, %v212
    %v227 = vpack.c.bf16 %v215, %v214
    %v228 = vpack.c.bf16 %v217, %v216
    %v229 = vpack.c.bf16 %v219, %v218
    %v230 = vpack.c.bf16 %v221, %v220
    %v231 = vpack.c.bf16 %v223, %v222
    %232 = vmatpush.bf16.xpose.msra.mxu0 %v141
    %233 = vmatpush.bf16.xpose.msra.mxu0 %v140
    %234 = vmatpush.bf16.xpose.msra.mxu0 %v139
    %235 = vmatpush.bf16.xpose.msra.mxu0 %v138
    %236 = vmatpush.bf16.xpose.msra.mxu0 %v137
    %237 = vmatpush.bf16.xpose.msra.mxu0 %v136
    %238 = vmatpush.bf16.xpose.msra.mxu0 %v135
    %239 = vmatpush.bf16.xpose.msra.mxu0 %v134
    %240 = vmatmul.bf16.gmra.mxu0 %v224
    %v241 = vpop.f32.mrf.mxu0
    %v242 = vadd.f32 0.0, %v241
    %v243 = vpop.f32.mrf.mxu0
    %v244 = vadd.f32 0.0, %v243
    %245 = vmatmul.bf16.gmra.mxu0 %v225
    %v246 = vpop.f32.mrf.mxu0
    %v247 = vadd.f32 0.0, %v246
    %v248 = vpop.f32.mrf.mxu0
    %v249 = vadd.f32 0.0, %v248
    %250 = vmatmul.bf16.gmra.mxu0 %v226
    %v251 = vpop.f32.mrf.mxu0
    %v252 = vadd.f32 0.0, %v251
    %v253 = vpop.f32.mrf.mxu0
    %v254 = vadd.f32 0.0, %v253
    %255 = vmatmul.bf16.gmra.mxu0 %v227
    %v256 = vpop.f32.mrf.mxu0
    %v257 = vadd.f32 0.0, %v256
    %v258 = vpop.f32.mrf.mxu0
    %v259 = vadd.f32 0.0, %v258
    %260 = vmatmul.bf16.gmra.mxu0 %v228
    %v261 = vpop.f32.mrf.mxu0
    %v262 = vadd.f32 0.0, %v261
    %v263 = vpop.f32.mrf.mxu0
    %v264 = vadd.f32 0.0, %v263
    %265 = vmatmul.bf16.gmra.mxu0 %v229
    %v266 = vpop.f32.mrf.mxu0
    %v267 = vadd.f32 0.0, %v266
    %v268 = vpop.f32.mrf.mxu0
    %v269 = vadd.f32 0.0, %v268
    %270 = vmatmul.bf16.gmra.mxu0 %v230
    %v271 = vpop.f32.mrf.mxu0
    %v272 = vadd.f32 0.0, %v271
    %v273 = vpop.f32.mrf.mxu0
    %v274 = vadd.f32 0.0, %v273
    %275 = vmatmul.bf16.gmra.mxu0 %v231
    %v276 = vpop.f32.mrf.mxu0
    %v277 = vadd.f32 0.0, %v276
    %v278 = vpop.f32.mrf.mxu0
    %v279 = vadd.f32 0.0, %v278
    %280 = vdwg.mxu0
    %v297 = vunpack.c.l.b16 %v176
    %v298 = vunpack.c.l.b16 %v177
    %v299 = vunpack.c.l.b16 %v178
    %v300 = vunpack.c.l.b16 %v179
    %v301 = vunpack.c.l.b16 %v180
    %v302 = vunpack.c.l.b16 %v181
    %v303 = vunpack.c.l.b16 %v182
    %v304 = vunpack.c.l.b16 %v183
    %v305 = vunpack.c.l.b16 %v184
    %v306 = vunpack.c.l.b16 %v185
    %v307 = vunpack.c.l.b16 %v186
    %v308 = vunpack.c.l.b16 %v187
    %v309 = vunpack.c.l.b16 %v188
    %v310 = vunpack.c.l.b16 %v189
    %v311 = vunpack.c.l.b16 %v190
    %v312 = vunpack.c.l.b16 %v191
    %v313 = vpack.c.b16 %v298, %v297
    %v314 = vpack.c.b16 %v300, %v299
    %v315 = vpack.c.b16 %v302, %v301
    %v316 = vpack.c.b16 %v304, %v303
    %v317 = vpack.c.b16 %v306, %v305
    %v318 = vpack.c.b16 %v308, %v307
    %v319 = vpack.c.b16 %v310, %v309
    %v320 = vpack.c.b16 %v312, %v311
    %329 = vmatpush.bf16.xpose.msra.mxu0 %v141
    %330 = vmatpush.bf16.xpose.msra.mxu0 %v140
    %331 = vmatpush.bf16.xpose.msra.mxu0 %v139
    %332 = vmatpush.bf16.xpose.msra.mxu0 %v138
    %333 = vmatpush.bf16.xpose.msra.mxu0 %v137
    %334 = vmatpush.bf16.xpose.msra.mxu0 %v136
    %335 = vmatpush.bf16.xpose.msra.mxu0 %v135
    %336 = vmatpush.bf16.xpose.msra.mxu0 %v134
    %337 = vmatmul.bf16.gmra.mxu0 %v313
    %v338 = vpop.f32.mrf.mxu0
    %v339 = vadd.f32 %v242, %v338
    %v340 = vpop.f32.mrf.mxu0
    %v341 = vadd.f32 %v244, %v340
    %342 = vmatmul.bf16.gmra.mxu0 %v314
    %v343 = vpop.f32.mrf.mxu0
    %v344 = vadd.f32 %v247, %v343
    %v345 = vpop.f32.mrf.mxu0
    %v346 = vadd.f32 %v249, %v345
    %347 = vmatmul.bf16.gmra.mxu0 %v315
    %v348 = vpop.f32.mrf.mxu0
    %v349 = vadd.f32 %v252, %v348
    %v350 = vpop.f32.mrf.mxu0
    %v351 = vadd.f32 %v254, %v350
    %352 = vmatmul.bf16.gmra.mxu0 %v316
    %v353 = vpop.f32.mrf.mxu0
    %v354 = vadd.f32 %v257, %v353
    %v355 = vpop.f32.mrf.mxu0
    %v356 = vadd.f32 %v259, %v355
    %357 = vmatmul.bf16.gmra.mxu0 %v317
    %v358 = vpop.f32.mrf.mxu0
    %v359 = vadd.f32 %v262, %v358
    %v360 = vpop.f32.mrf.mxu0
    %v361 = vadd.f32 %v264, %v360
    %362 = vmatmul.bf16.gmra.mxu0 %v318
    %v363 = vpop.f32.mrf.mxu0
    %v364 = vadd.f32 %v267, %v363
    %v365 = vpop.f32.mrf.mxu0
    %v366 = vadd.f32 %v269, %v365
    %367 = vmatmul.bf16.gmra.mxu0 %v319
    %v368 = vpop.f32.mrf.mxu0
    %v369 = vadd.f32 %v272, %v368
    %v370 = vpop.f32.mrf.mxu0
    %v371 = vadd.f32 %v274, %v370
    %372 = vmatmul.bf16.gmra.mxu0 %v320
    %v373 = vpop.f32.mrf.mxu0
    %v374 = vadd.f32 %v277, %v373
    %v375 = vpop.f32.mrf.mxu0
    %v376 = vadd.f32 %v279, %v375
    %377 = vdwg.mxu0
    %v378 = vsel %vm65, %v339, 0.0
    %v379 = vsel %vm66, %v341, 0.0
    %v380 = vsel %vm67, %v344, 0.0
    %v381 = vsel %vm68, %v346, 0.0
    %v382 = vsel %vm69, %v349, 0.0
    %v383 = vsel %vm70, %v351, 0.0
    %v384 = vsel %vm71, %v354, 0.0
    %v385 = vsel %vm72, %v356, 0.0
    %v386 = vsel %vm73, %v359, 0.0
    %v387 = vsel %vm74, %v361, 0.0
    %v388 = vsel %vm75, %v364, 0.0
    %v389 = vsel %vm76, %v366, 0.0
    %v390 = vsel %vm77, %v369, 0.0
    %v391 = vsel %vm78, %v371, 0.0
    %v392 = vsel %vm79, %v374, 0.0
    %v393 = vsel %vm80, %v376, 0.0
    %394 = vadd.xlane.f32.xlu0 %v378
    %v395 = vpop.xlane.xlu0 %394
    %396 = vadd.xlane.f32.xlu0 %v379
    %v397 = vpop.xlane.xlu0 %396
    %398 = vadd.xlane.f32.xlu0 %v380
    %v399 = vpop.xlane.xlu0 %398
    %400 = vadd.xlane.f32.xlu0 %v381
    %v401 = vpop.xlane.xlu0 %400
    %402 = vadd.xlane.f32.xlu0 %v382
    %v403 = vpop.xlane.xlu0 %402
    %404 = vadd.xlane.f32.xlu0 %v383
    %v405 = vpop.xlane.xlu0 %404
    %406 = vadd.xlane.f32.xlu0 %v384
    %v407 = vpop.xlane.xlu0 %406
    %408 = vadd.xlane.f32.xlu0 %v385
    %v409 = vpop.xlane.xlu0 %408
    %410 = vadd.xlane.f32.xlu0 %v386
    %v411 = vpop.xlane.xlu0 %410
    %412 = vadd.xlane.f32.xlu0 %v387
    %v413 = vpop.xlane.xlu0 %412
    %414 = vadd.xlane.f32.xlu0 %v388
    %v415 = vpop.xlane.xlu0 %414
    %416 = vadd.xlane.f32.xlu0 %v389
    %v417 = vpop.xlane.xlu0 %416
    %418 = vadd.xlane.f32.xlu0 %v390
    %v419 = vpop.xlane.xlu0 %418
    %420 = vadd.xlane.f32.xlu0 %v391
    %v421 = vpop.xlane.xlu0 %420
    %422 = vadd.xlane.f32.xlu0 %v392
    %v423 = vpop.xlane.xlu0 %422
    %424 = vadd.xlane.f32.xlu0 %v393
    %v425 = vpop.xlane.xlu0 %424
    %v426 = vsub.f32 0.0, %v395
    %v427 = vsub.f32 0.0, %v397
    %v428 = vsub.f32 0.0, %v399
    %v429 = vsub.f32 0.0, %v401
    %v430 = vsub.f32 0.0, %v403
    %v431 = vsub.f32 0.0, %v405
    %v432 = vsub.f32 0.0, %v407
    %v433 = vsub.f32 0.0, %v409
    %v434 = vsub.f32 0.0, %v411
    %v435 = vsub.f32 0.0, %v413
    %v436 = vsub.f32 0.0, %v415
    %v437 = vsub.f32 0.0, %v417
    %v438 = vsub.f32 0.0, %v419
    %v439 = vsub.f32 0.0, %v421
    %v440 = vsub.f32 0.0, %v423
    %v441 = vsub.f32 0.0, %v425
    %v442 = vsel %vm81, %v426, %v339
    %v443 = vsel %vm81, %v427, %v341
    %v444 = vsel %vm81, %v428, %v344
    %v445 = vsel %vm81, %v429, %v346
    %v446 = vsel %vm81, %v430, %v349
    %v447 = vsel %vm81, %v431, %v351
    %v448 = vsel %vm81, %v432, %v354
    %v449 = vsel %vm81, %v433, %v356
    %v450 = vsel %vm81, %v434, %v359
    %v451 = vsel %vm81, %v435, %v361
    %v452 = vsel %vm81, %v436, %v364
    %v453 = vsel %vm81, %v437, %v366
    %v454 = vsel %vm81, %v438, %v369
    %v455 = vsel %vm81, %v439, %v371
    %v456 = vsel %vm81, %v440, %v374
    %v457 = vsel %vm81, %v441, %v376
    %v458 = vld [vmem:[%s3] sm:$0xff]
    %v459 = vld [vmem:[%s4] sm:$0xff]
    %v460 = vadd.s32 %v459, 1
    %461 = vset.pattern.permute.xlu0 0
    %462 = vperm.xlu0 %461, %v460
    %v463 = vpop.permute.xlu0 %462
    %vm464 = vcmp.eq.s32.totalorder %v463, %v31
    %v465 = vsel %vm464, 1, 0
    %v466 = vcvt.s32.f32 %v465
    %v467 = vadd.s32 %v458, 1
    %468 = vset.pattern.permute.xlu0 0
    %469 = vperm.xlu0 %468, %v467
    %v470 = vpop.permute.xlu0 %469
    %vm471 = vcmp.eq.s32.totalorder %v470, %v31
    %v472 = vsel %vm471, 1, 0
    %v473 = vcvt.s32.f32 %v472
    %474 = vmatpush.msra.mxu0 %v457
    %475 = vmatpush.msra.mxu0 %v456
    %476 = vmatpush.msra.mxu0 %v455
    %477 = vmatpush.msra.mxu0 %v454
    %478 = vmatpush.msra.mxu0 %v453
    %479 = vmatpush.msra.mxu0 %v452
    %480 = vmatpush.msra.mxu0 %v451
    %481 = vmatpush.msra.mxu0 %v450
    %482 = vmatpush.msra.mxu0 %v449
    %483 = vmatpush.msra.mxu0 %v448
    %484 = vmatpush.msra.mxu0 %v447
    %485 = vmatpush.msra.mxu0 %v446
    %486 = vmatpush.msra.mxu0 %v445
    %487 = vmatpush.msra.mxu0 %v444
    %488 = vmatpush.msra.mxu0 %v443
    %489 = vmatpush.msra.mxu0 %v442
    %490 = vmatmul.f32.gmra.mxu0 %v466
    %v491 = vpop.f32.mrf.mxu0
    %v492 = vadd.f32 0.0, %v491
    %493 = vdwg.mxu0
    %v494 = vmul.f32 %v492, %v473
    %495 = vadd.xlane.f32.xlu0 %v494
    %v496 = vpop.xlane.xlu0 %495
    %v497 = vld [vmem:[%s6] sm:$0xff]
    %v498 = vld [vmem:[%s5] sm:$0xff]
    %v499 = vmul.f32 %v498, 2.0
    %v500 = vsub.f32 %v499, 1.0
    %v501 = vmul.f32 %v497, %v500
    %v502 = vmul.f32 %v496, %v501
    %vm503 = vcmask 7168
    %v504 = vsel %vm503, %v502, 0.0
    %v505 = vrot.slane %v504, 4
    %v506 = vadd.f32 %v504, %v505
    %v507 = vrot.slane %v506, 2
    %v508 = vadd.f32 %v506, %v507
    %v509 = vrot.slane %v508, 1
    %v510 = vadd.f32 %v508, %v509
    %vm511 = vcmp.eq.s32.totalorder %v33, 0
    %v512 = vsel %vm511, %v510, 0.0
    %v513 = vadd.f32 %v512, 0.0
    %514 = vst [vmem:[#allocation2] sm:$0xff] %v442
    %515 = vst [vmem:[#allocation2 + $0x8] sm:$0xff] %v443
    %516 = vst [vmem:[#allocation2 + $0x10] sm:$0xff] %v444
    %517 = vst [vmem:[#allocation2 + $0x18] sm:$0xff] %v445
    %518 = vst [vmem:[#allocation2 + $0x20] sm:$0xff] %v446
    %519 = vst [vmem:[#allocation2 + $0x28] sm:$0xff] %v447
    %520 = vst [vmem:[#allocation2 + $0x30] sm:$0xff] %v448
    %521 = vst [vmem:[#allocation2 + $0x38] sm:$0xff] %v449
    %522 = vst [vmem:[#allocation2 + $0x40] sm:$0xff] %v450
    %523 = vst [vmem:[#allocation2 + $0x48] sm:$0xff] %v451
    %524 = vst [vmem:[#allocation2 + $0x50] sm:$0xff] %v452
    %525 = vst [vmem:[#allocation2 + $0x58] sm:$0xff] %v453
    %526 = vst [vmem:[#allocation2 + $0x60] sm:$0xff] %v454
    %527 = vst [vmem:[#allocation2 + $0x68] sm:$0xff] %v455
    %528 = vst [vmem:[#allocation2 + $0x70] sm:$0xff] %v456
    %529 = vst [vmem:[#allocation2 + $0x78] sm:$0xff] %v457
    %v530 = vld [vmem:[%s0 + $0x1] sm:$0x1]
    %v531 = vld [vmem:[%s1 + $0x1] sm:$0x1]
    %v532 = vld [vmem:[%s2 + $0x1] sm:$0x1]
    %v533 = vperm.slane %v530, 0
    %vm534 = vcmp.eq.s32.totalorder %v533, %v49
    %vm535 = vcmp.eq.s32.totalorder %v533, %v50
    %vm536 = vcmp.eq.s32.totalorder %v533, %v51
    %vm537 = vcmp.eq.s32.totalorder %v533, %v52
    %vm538 = vcmp.eq.s32.totalorder %v533, %v53
    %vm539 = vcmp.eq.s32.totalorder %v533, %v54
    %vm540 = vcmp.eq.s32.totalorder %v533, %v55
    %vm541 = vcmp.eq.s32.totalorder %v533, %v56
    %vm542 = vcmp.eq.s32.totalorder %v533, %v57
    %vm543 = vcmp.eq.s32.totalorder %v533, %v58
    %vm544 = vcmp.eq.s32.totalorder %v533, %v59
    %vm545 = vcmp.eq.s32.totalorder %v533, %v60
    %vm546 = vcmp.eq.s32.totalorder %v533, %v61
    %vm547 = vcmp.eq.s32.totalorder %v533, %v62
    %vm548 = vcmp.eq.s32.totalorder %v533, %v63
    %vm549 = vcmp.eq.s32.totalorder %v533, %v64
    %v550 = vsel %vm534, 1, 0
    %v551 = vsel %vm535, 1, 0
    %v552 = vsel %vm536, 1, 0
    %v553 = vsel %vm537, 1, 0
    %v554 = vsel %vm538, 1, 0
    %v555 = vsel %vm539, 1, 0
    %v556 = vsel %vm540, 1, 0
    %v557 = vsel %vm541, 1, 0
    %v558 = vsel %vm542, 1, 0
    %v559 = vsel %vm543, 1, 0
    %v560 = vsel %vm544, 1, 0
    %v561 = vsel %vm545, 1, 0
    %v562 = vsel %vm546, 1, 0
    %v563 = vsel %vm547, 1, 0
    %v564 = vsel %vm548, 1, 0
    %v565 = vsel %vm549, 1, 0
    %v566 = vcvt.s32.f32 %v550
    %v567 = vcvt.s32.f32 %v551
    %v568 = vcvt.s32.f32 %v552
    %v569 = vcvt.s32.f32 %v553
    %v570 = vcvt.s32.f32 %v554
    %v571 = vcvt.s32.f32 %v555
    %v572 = vcvt.s32.f32 %v556
    %v573 = vcvt.s32.f32 %v557
    %v574 = vcvt.s32.f32 %v558
    %v575 = vcvt.s32.f32 %v559
    %v576 = vcvt.s32.f32 %v560
    %v577 = vcvt.s32.f32 %v561
    %v578 = vcvt.s32.f32 %v562
    %v579 = vcvt.s32.f32 %v563
    %v580 = vcvt.s32.f32 %v564
    %v581 = vcvt.s32.f32 %v565
    %v582 = vpack.c.bf16 %v567, %v566
    %v583 = vpack.c.bf16 %v569, %v568
    %v584 = vpack.c.bf16 %v571, %v570
    %v585 = vpack.c.bf16 %v573, %v572
    %v586 = vpack.c.bf16 %v575, %v574
    %v587 = vpack.c.bf16 %v577, %v576
    %v588 = vpack.c.bf16 %v579, %v578
    %v589 = vpack.c.bf16 %v581, %v580
    %v590 = vperm.slane %v531, 0
    %vm591 = vcmp.eq.s32.totalorder %v590, %v49
    %vm592 = vcmp.eq.s32.totalorder %v590, %v50
    %vm593 = vcmp.eq.s32.totalorder %v590, %v51
    %vm594 = vcmp.eq.s32.totalorder %v590, %v52
    %vm595 = vcmp.eq.s32.totalorder %v590, %v53
    %vm596 = vcmp.eq.s32.totalorder %v590, %v54
    %vm597 = vcmp.eq.s32.totalorder %v590, %v55
    %vm598 = vcmp.eq.s32.totalorder %v590, %v56
    %vm599 = vcmp.eq.s32.totalorder %v590, %v57
    %vm600 = vcmp.eq.s32.totalorder %v590, %v58
    %vm601 = vcmp.eq.s32.totalorder %v590, %v59
    %vm602 = vcmp.eq.s32.totalorder %v590, %v60
    %vm603 = vcmp.eq.s32.totalorder %v590, %v61
    %vm604 = vcmp.eq.s32.totalorder %v590, %v62
    %vm605 = vcmp.eq.s32.totalorder %v590, %v63
    %vm606 = vcmp.eq.s32.totalorder %v590, %v64
    %v607 = vperm.slane %v532, 0
    %v608 = vsel %vm591, %v607, 0.0
    %v609 = vsel %vm592, %v607, 0.0
    %v610 = vsel %vm593, %v607, 0.0
    %v611 = vsel %vm594, %v607, 0.0
    %v612 = vsel %vm595, %v607, 0.0
    %v613 = vsel %vm596, %v607, 0.0
    %v614 = vsel %vm597, %v607, 0.0
    %v615 = vsel %vm598, %v607, 0.0
    %v616 = vsel %vm599, %v607, 0.0
    %v617 = vsel %vm600, %v607, 0.0
    %v618 = vsel %vm601, %v607, 0.0
    %v619 = vsel %vm602, %v607, 0.0
    %v620 = vsel %vm603, %v607, 0.0
    %v621 = vsel %vm604, %v607, 0.0
    %v622 = vsel %vm605, %v607, 0.0
    %v623 = vsel %vm606, %v607, 0.0
    %v624 = vpack.c.bf16 %v608, %v608
    %v625 = vpack.c.bf16 %v609, %v609
    %v626 = vpack.c.bf16 %v610, %v610
    %v627 = vpack.c.bf16 %v611, %v611
    %v628 = vpack.c.bf16 %v612, %v612
    %v629 = vpack.c.bf16 %v613, %v613
    %v630 = vpack.c.bf16 %v614, %v614
    %v631 = vpack.c.bf16 %v615, %v615
    %v632 = vpack.c.bf16 %v616, %v616
    %v633 = vpack.c.bf16 %v617, %v617
    %v634 = vpack.c.bf16 %v618, %v618
    %v635 = vpack.c.bf16 %v619, %v619
    %v636 = vpack.c.bf16 %v620, %v620
    %v637 = vpack.c.bf16 %v621, %v621
    %v638 = vpack.c.bf16 %v622, %v622
    %v639 = vpack.c.bf16 %v623, %v623
    %v640 = vunpack.c.l.bf16 %v624
    %v641 = vunpack.c.l.bf16 %v625
    %v642 = vunpack.c.l.bf16 %v626
    %v643 = vunpack.c.l.bf16 %v627
    %v644 = vunpack.c.l.bf16 %v628
    %v645 = vunpack.c.l.bf16 %v629
    %v646 = vunpack.c.l.bf16 %v630
    %v647 = vunpack.c.l.bf16 %v631
    %v648 = vunpack.c.l.bf16 %v632
    %v649 = vunpack.c.l.bf16 %v633
    %v650 = vunpack.c.l.bf16 %v634
    %v651 = vunpack.c.l.bf16 %v635
    %v652 = vunpack.c.l.bf16 %v636
    %v653 = vunpack.c.l.bf16 %v637
    %v654 = vunpack.c.l.bf16 %v638
    %v655 = vunpack.c.l.bf16 %v639
    %v656 = vsub.f32 %v608, %v640
    %v657 = vsub.f32 %v609, %v641
    %v658 = vsub.f32 %v610, %v642
    %v659 = vsub.f32 %v611, %v643
    %v660 = vsub.f32 %v612, %v644
    %v661 = vsub.f32 %v613, %v645
    %v662 = vsub.f32 %v614, %v646
    %v663 = vsub.f32 %v615, %v647
    %v664 = vsub.f32 %v616, %v648
    %v665 = vsub.f32 %v617, %v649
    %v666 = vsub.f32 %v618, %v650
    %v667 = vsub.f32 %v619, %v651
    %v668 = vsub.f32 %v620, %v652
    %v669 = vsub.f32 %v621, %v653
    %v670 = vsub.f32 %v622, %v654
    %v671 = vsub.f32 %v623, %v655
    %v672 = vpack.c.bf16 %v657, %v656
    %v673 = vpack.c.bf16 %v659, %v658
    %v674 = vpack.c.bf16 %v661, %v660
    %v675 = vpack.c.bf16 %v663, %v662
    %v676 = vpack.c.bf16 %v665, %v664
    %v677 = vpack.c.bf16 %v667, %v666
    %v678 = vpack.c.bf16 %v669, %v668
    %v679 = vpack.c.bf16 %v671, %v670
    %680 = vmatpush.bf16.xpose.msra.mxu0 %v589
    %681 = vmatpush.bf16.xpose.msra.mxu0 %v588
    %682 = vmatpush.bf16.xpose.msra.mxu0 %v587
    %683 = vmatpush.bf16.xpose.msra.mxu0 %v586
    %684 = vmatpush.bf16.xpose.msra.mxu0 %v585
    %685 = vmatpush.bf16.xpose.msra.mxu0 %v584
    %686 = vmatpush.bf16.xpose.msra.mxu0 %v583
    %687 = vmatpush.bf16.xpose.msra.mxu0 %v582
    %688 = vmatmul.bf16.gmra.mxu0 %v672
    %v689 = vpop.f32.mrf.mxu0
    %v690 = vadd.f32 0.0, %v689
    %v691 = vpop.f32.mrf.mxu0
    %v692 = vadd.f32 0.0, %v691
    %693 = vmatmul.bf16.gmra.mxu0 %v673
    %v694 = vpop.f32.mrf.mxu0
    %v695 = vadd.f32 0.0, %v694
    %v696 = vpop.f32.mrf.mxu0
    %v697 = vadd.f32 0.0, %v696
    %698 = vmatmul.bf16.gmra.mxu0 %v674
    %v699 = vpop.f32.mrf.mxu0
    %v700 = vadd.f32 0.0, %v699
    %v701 = vpop.f32.mrf.mxu0
    %v702 = vadd.f32 0.0, %v701
    %703 = vmatmul.bf16.gmra.mxu0 %v675
    %v704 = vpop.f32.mrf.mxu0
    %v705 = vadd.f32 0.0, %v704
    %v706 = vpop.f32.mrf.mxu0
    %v707 = vadd.f32 0.0, %v706
    %708 = vmatmul.bf16.gmra.mxu0 %v676
    %v709 = vpop.f32.mrf.mxu0
    %v710 = vadd.f32 0.0, %v709
    %v711 = vpop.f32.mrf.mxu0
    %v712 = vadd.f32 0.0, %v711
    %713 = vmatmul.bf16.gmra.mxu0 %v677
    %v714 = vpop.f32.mrf.mxu0
    %v715 = vadd.f32 0.0, %v714
    %v716 = vpop.f32.mrf.mxu0
    %v717 = vadd.f32 0.0, %v716
    %718 = vmatmul.bf16.gmra.mxu0 %v678
    %v719 = vpop.f32.mrf.mxu0
    %v720 = vadd.f32 0.0, %v719
    %v721 = vpop.f32.mrf.mxu0
    %v722 = vadd.f32 0.0, %v721
    %723 = vmatmul.bf16.gmra.mxu0 %v679
    %v724 = vpop.f32.mrf.mxu0
    %v725 = vadd.f32 0.0, %v724
    %v726 = vpop.f32.mrf.mxu0
    %v727 = vadd.f32 0.0, %v726
    %728 = vdwg.mxu0
    %v745 = vunpack.c.l.b16 %v624
    %v746 = vunpack.c.l.b16 %v625
    %v747 = vunpack.c.l.b16 %v626
    %v748 = vunpack.c.l.b16 %v627
    %v749 = vunpack.c.l.b16 %v628
    %v750 = vunpack.c.l.b16 %v629
    %v751 = vunpack.c.l.b16 %v630
    %v752 = vunpack.c.l.b16 %v631
    %v753 = vunpack.c.l.b16 %v632
    %v754 = vunpack.c.l.b16 %v633
    %v755 = vunpack.c.l.b16 %v634
    %v756 = vunpack.c.l.b16 %v635
    %v757 = vunpack.c.l.b16 %v636
    %v758 = vunpack.c.l.b16 %v637
    %v759 = vunpack.c.l.b16 %v638
    %v760 = vunpack.c.l.b16 %v639
    %v761 = vpack.c.b16 %v746, %v745
    %v762 = vpack.c.b16 %v748, %v747
    %v763 = vpack.c.b16 %v750, %v749
    %v764 = vpack.c.b16 %v752, %v751
    %v765 = vpack.c.b16 %v754, %v753
    %v766 = vpack.c.b16 %v756, %v755
    %v767 = vpack.c.b16 %v758, %v757
    %v768 = vpack.c.b16 %v760, %v759
    %777 = vmatpush.bf16.xpose.msra.mxu0 %v589
    %778 = vmatpush.bf16.xpose.msra.mxu0 %v588
    %779 = vmatpush.bf16.xpose.msra.mxu0 %v587
    %780 = vmatpush.bf16.xpose.msra.mxu0 %v586
    %781 = vmatpush.bf16.xpose.msra.mxu0 %v585
    %782 = vmatpush.bf16.xpose.msra.mxu0 %v584
    %783 = vmatpush.bf16.xpose.msra.mxu0 %v583
    %784 = vmatpush.bf16.xpose.msra.mxu0 %v582
    %785 = vmatmul.bf16.gmra.mxu0 %v761
    %v786 = vpop.f32.mrf.mxu0
    %v787 = vadd.f32 %v690, %v786
    %v788 = vpop.f32.mrf.mxu0
    %v789 = vadd.f32 %v692, %v788
    %790 = vmatmul.bf16.gmra.mxu0 %v762
    %v791 = vpop.f32.mrf.mxu0
    %v792 = vadd.f32 %v695, %v791
    %v793 = vpop.f32.mrf.mxu0
    %v794 = vadd.f32 %v697, %v793
    %795 = vmatmul.bf16.gmra.mxu0 %v763
    %v796 = vpop.f32.mrf.mxu0
    %v797 = vadd.f32 %v700, %v796
    %v798 = vpop.f32.mrf.mxu0
    %v799 = vadd.f32 %v702, %v798
    %800 = vmatmul.bf16.gmra.mxu0 %v764
    %v801 = vpop.f32.mrf.mxu0
    %v802 = vadd.f32 %v705, %v801
    %v803 = vpop.f32.mrf.mxu0
    %v804 = vadd.f32 %v707, %v803
    %805 = vmatmul.bf16.gmra.mxu0 %v765
    %v806 = vpop.f32.mrf.mxu0
    %v807 = vadd.f32 %v710, %v806
    %v808 = vpop.f32.mrf.mxu0
    %v809 = vadd.f32 %v712, %v808
    %810 = vmatmul.bf16.gmra.mxu0 %v766
    %v811 = vpop.f32.mrf.mxu0
    %v812 = vadd.f32 %v715, %v811
    %v813 = vpop.f32.mrf.mxu0
    %v814 = vadd.f32 %v717, %v813
    %815 = vmatmul.bf16.gmra.mxu0 %v767
    %v816 = vpop.f32.mrf.mxu0
    %v817 = vadd.f32 %v720, %v816
    %v818 = vpop.f32.mrf.mxu0
    %v819 = vadd.f32 %v722, %v818
    %820 = vmatmul.bf16.gmra.mxu0 %v768
    %v821 = vpop.f32.mrf.mxu0
    %v822 = vadd.f32 %v725, %v821
    %v823 = vpop.f32.mrf.mxu0
    %v824 = vadd.f32 %v727, %v823
    %825 = vdwg.mxu0
    %v826 = vsel %vm65, %v787, 0.0
    %v827 = vsel %vm66, %v789, 0.0
    %v828 = vsel %vm67, %v792, 0.0
    %v829 = vsel %vm68, %v794, 0.0
    %v830 = vsel %vm69, %v797, 0.0
    %v831 = vsel %vm70, %v799, 0.0
    %v832 = vsel %vm71, %v802, 0.0
    %v833 = vsel %vm72, %v804, 0.0
    %v834 = vsel %vm73, %v807, 0.0
    %v835 = vsel %vm74, %v809, 0.0
    %v836 = vsel %vm75, %v812, 0.0
    %v837 = vsel %vm76, %v814, 0.0
    %v838 = vsel %vm77, %v817, 0.0
    %v839 = vsel %vm78, %v819, 0.0
    %v840 = vsel %vm79, %v822, 0.0
    %v841 = vsel %vm80, %v824, 0.0
    %842 = vadd.xlane.f32.xlu0 %v826
    %v843 = vpop.xlane.xlu0 %842
    %844 = vadd.xlane.f32.xlu0 %v827
    %v845 = vpop.xlane.xlu0 %844
    %846 = vadd.xlane.f32.xlu0 %v828
    %v847 = vpop.xlane.xlu0 %846
    %848 = vadd.xlane.f32.xlu0 %v829
    %v849 = vpop.xlane.xlu0 %848
    %850 = vadd.xlane.f32.xlu0 %v830
    %v851 = vpop.xlane.xlu0 %850
    %852 = vadd.xlane.f32.xlu0 %v831
    %v853 = vpop.xlane.xlu0 %852
    %854 = vadd.xlane.f32.xlu0 %v832
    %v855 = vpop.xlane.xlu0 %854
    %856 = vadd.xlane.f32.xlu0 %v833
    %v857 = vpop.xlane.xlu0 %856
    %858 = vadd.xlane.f32.xlu0 %v834
    %v859 = vpop.xlane.xlu0 %858
    %860 = vadd.xlane.f32.xlu0 %v835
    %v861 = vpop.xlane.xlu0 %860
    %862 = vadd.xlane.f32.xlu0 %v836
    %v863 = vpop.xlane.xlu0 %862
    %864 = vadd.xlane.f32.xlu0 %v837
    %v865 = vpop.xlane.xlu0 %864
    %866 = vadd.xlane.f32.xlu0 %v838
    %v867 = vpop.xlane.xlu0 %866
    %868 = vadd.xlane.f32.xlu0 %v839
    %v869 = vpop.xlane.xlu0 %868
    %870 = vadd.xlane.f32.xlu0 %v840
    %v871 = vpop.xlane.xlu0 %870
    %872 = vadd.xlane.f32.xlu0 %v841
    %v873 = vpop.xlane.xlu0 %872
    %v874 = vsub.f32 0.0, %v843
    %v875 = vsub.f32 0.0, %v845
    %v876 = vsub.f32 0.0, %v847
    %v877 = vsub.f32 0.0, %v849
    %v878 = vsub.f32 0.0, %v851
    %v879 = vsub.f32 0.0, %v853
    %v880 = vsub.f32 0.0, %v855
    %v881 = vsub.f32 0.0, %v857
    %v882 = vsub.f32 0.0, %v859
    %v883 = vsub.f32 0.0, %v861
    %v884 = vsub.f32 0.0, %v863
    %v885 = vsub.f32 0.0, %v865
    %v886 = vsub.f32 0.0, %v867
    %v887 = vsub.f32 0.0, %v869
    %v888 = vsub.f32 0.0, %v871
    %v889 = vsub.f32 0.0, %v873
    %v890 = vsel %vm81, %v874, %v787
    %v891 = vsel %vm81, %v875, %v789
    %v892 = vsel %vm81, %v876, %v792
    %v893 = vsel %vm81, %v877, %v794
    %v894 = vsel %vm81, %v878, %v797
    %v895 = vsel %vm81, %v879, %v799
    %v896 = vsel %vm81, %v880, %v802
    %v897 = vsel %vm81, %v881, %v804
    %v898 = vsel %vm81, %v882, %v807
    %v899 = vsel %vm81, %v883, %v809
    %v900 = vsel %vm81, %v884, %v812
    %v901 = vsel %vm81, %v885, %v814
    %v902 = vsel %vm81, %v886, %v817
    %v903 = vsel %vm81, %v887, %v819
    %v904 = vsel %vm81, %v888, %v822
    %v905 = vsel %vm81, %v889, %v824
    %s906 = scalar_lea.vmem %s3, 8
    %v907 = vld [vmem:[%s906] sm:$0xff]
    %s908 = scalar_lea.vmem %s4, 8
    %v909 = vld [vmem:[%s908] sm:$0xff]
    %v910 = vadd.s32 %v909, 1
    %911 = vset.pattern.permute.xlu0 0
    %912 = vperm.xlu0 %911, %v910
    %v913 = vpop.permute.xlu0 %912
    %vm914 = vcmp.eq.s32.totalorder %v913, %v31
    %v915 = vsel %vm914, 1, 0
    %v916 = vcvt.s32.f32 %v915
    %v917 = vadd.s32 %v907, 1
    %918 = vset.pattern.permute.xlu0 0
    %919 = vperm.xlu0 %918, %v917
    %v920 = vpop.permute.xlu0 %919
    %vm921 = vcmp.eq.s32.totalorder %v920, %v31
    %v922 = vsel %vm921, 1, 0
    %v923 = vcvt.s32.f32 %v922
    %924 = vmatpush.msra.mxu0 %v905
    %925 = vmatpush.msra.mxu0 %v904
    %926 = vmatpush.msra.mxu0 %v903
    %927 = vmatpush.msra.mxu0 %v902
    %928 = vmatpush.msra.mxu0 %v901
    %929 = vmatpush.msra.mxu0 %v900
    %930 = vmatpush.msra.mxu0 %v899
    %931 = vmatpush.msra.mxu0 %v898
    %932 = vmatpush.msra.mxu0 %v897
    %933 = vmatpush.msra.mxu0 %v896
    %934 = vmatpush.msra.mxu0 %v895
    %935 = vmatpush.msra.mxu0 %v894
    %936 = vmatpush.msra.mxu0 %v893
    %937 = vmatpush.msra.mxu0 %v892
    %938 = vmatpush.msra.mxu0 %v891
    %939 = vmatpush.msra.mxu0 %v890
    %940 = vmatmul.f32.gmra.mxu0 %v916
    %v941 = vpop.f32.mrf.mxu0
    %v942 = vadd.f32 0.0, %v941
    %943 = vdwg.mxu0
    %v944 = vmul.f32 %v942, %v923
    %945 = vadd.xlane.f32.xlu0 %v944
    %v946 = vpop.xlane.xlu0 %945
    %s947 = scalar_lea.vmem %s6, 8
    %v948 = vld [vmem:[%s947] sm:$0xff]
    %s949 = scalar_lea.vmem %s5, 8
    %v950 = vld [vmem:[%s949] sm:$0xff]
    %v951 = vmul.f32 %v950, 2.0
    %v952 = vsub.f32 %v951, 1.0
    %v953 = vmul.f32 %v948, %v952
    %v954 = vmul.f32 %v946, %v953
    %v955 = vsel %vm503, %v954, 0.0
    %v956 = vrot.slane %v955, 4
    %v957 = vadd.f32 %v955, %v956
    %v958 = vrot.slane %v957, 2
    %v959 = vadd.f32 %v957, %v958
    %v960 = vrot.slane %v959, 1
    %v961 = vadd.f32 %v959, %v960
    %vm962 = vcmp.eq.s32.totalorder %v33, 1
    %v963 = vsel %vm962, %v961, 0.0
    %v964 = vadd.f32 %v513, %v963
    %965 = vst [vmem:[#allocation2 + $0x80] sm:$0xff] %v890
    %966 = vst [vmem:[#allocation2 + $0x88] sm:$0xff] %v891
    %967 = vst [vmem:[#allocation2 + $0x90] sm:$0xff] %v892
    %968 = vst [vmem:[#allocation2 + $0x98] sm:$0xff] %v893
    %969 = vst [vmem:[#allocation2 + $0xa0] sm:$0xff] %v894
    %970 = vst [vmem:[#allocation2 + $0xa8] sm:$0xff] %v895
    %971 = vst [vmem:[#allocation2 + $0xb0] sm:$0xff] %v896
    %972 = vst [vmem:[#allocation2 + $0xb8] sm:$0xff] %v897
    %973 = vst [vmem:[#allocation2 + $0xc0] sm:$0xff] %v898
    %974 = vst [vmem:[#allocation2 + $0xc8] sm:$0xff] %v899
    %975 = vst [vmem:[#allocation2 + $0xd0] sm:$0xff] %v900
    %976 = vst [vmem:[#allocation2 + $0xd8] sm:$0xff] %v901
    %977 = vst [vmem:[#allocation2 + $0xe0] sm:$0xff] %v902
    %978 = vst [vmem:[#allocation2 + $0xe8] sm:$0xff] %v903
    %979 = vst [vmem:[#allocation2 + $0xf0] sm:$0xff] %v904
    %980 = vst [vmem:[#allocation2 + $0xf8] sm:$0xff] %v905
    %v981 = vld [vmem:[%s0 + $0x2] sm:$0x1]
    %v982 = vld [vmem:[%s1 + $0x2] sm:$0x1]
    %v983 = vld [vmem:[%s2 + $0x2] sm:$0x1]
    %v984 = vperm.slane %v981, 0
    %vm985 = vcmp.eq.s32.totalorder %v984, %v49
    %vm986 = vcmp.eq.s32.totalorder %v984, %v50
    %vm987 = vcmp.eq.s32.totalorder %v984, %v51
    %vm988 = vcmp.eq.s32.totalorder %v984, %v52
    %vm989 = vcmp.eq.s32.totalorder %v984, %v53
    %vm990 = vcmp.eq.s32.totalorder %v984, %v54
    %vm991 = vcmp.eq.s32.totalorder %v984, %v55
    %vm992 = vcmp.eq.s32.totalorder %v984, %v56
    %vm993 = vcmp.eq.s32.totalorder %v984, %v57
    %vm994 = vcmp.eq.s32.totalorder %v984, %v58
    %vm995 = vcmp.eq.s32.totalorder %v984, %v59
    %vm996 = vcmp.eq.s32.totalorder %v984, %v60
    %vm997 = vcmp.eq.s32.totalorder %v984, %v61
    %vm998 = vcmp.eq.s32.totalorder %v984, %v62
    %vm999 = vcmp.eq.s32.totalorder %v984, %v63
    %vm1000 = vcmp.eq.s32.totalorder %v984, %v64
    %v1001 = vsel %vm985, 1, 0
    %v1002 = vsel %vm986, 1, 0
    %v1003 = vsel %vm987, 1, 0
    %v1004 = vsel %vm988, 1, 0
    %v1005 = vsel %vm989, 1, 0
    %v1006 = vsel %vm990, 1, 0
    %v1007 = vsel %vm991, 1, 0
    %v1008 = vsel %vm992, 1, 0
    %v1009 = vsel %vm993, 1, 0
    %v1010 = vsel %vm994, 1, 0
    %v1011 = vsel %vm995, 1, 0
    %v1012 = vsel %vm996, 1, 0
    %v1013 = vsel %vm997, 1, 0
    %v1014 = vsel %vm998, 1, 0
    %v1015 = vsel %vm999, 1, 0
    %v1016 = vsel %vm1000, 1, 0
    %v1017 = vcvt.s32.f32 %v1001
    %v1018 = vcvt.s32.f32 %v1002
    %v1019 = vcvt.s32.f32 %v1003
    %v1020 = vcvt.s32.f32 %v1004
    %v1021 = vcvt.s32.f32 %v1005
    %v1022 = vcvt.s32.f32 %v1006
    %v1023 = vcvt.s32.f32 %v1007
    %v1024 = vcvt.s32.f32 %v1008
    %v1025 = vcvt.s32.f32 %v1009
    %v1026 = vcvt.s32.f32 %v1010
    %v1027 = vcvt.s32.f32 %v1011
    %v1028 = vcvt.s32.f32 %v1012
    %v1029 = vcvt.s32.f32 %v1013
    %v1030 = vcvt.s32.f32 %v1014
    %v1031 = vcvt.s32.f32 %v1015
    %v1032 = vcvt.s32.f32 %v1016
    %v1033 = vpack.c.bf16 %v1018, %v1017
    %v1034 = vpack.c.bf16 %v1020, %v1019
    %v1035 = vpack.c.bf16 %v1022, %v1021
    %v1036 = vpack.c.bf16 %v1024, %v1023
    %v1037 = vpack.c.bf16 %v1026, %v1025
    %v1038 = vpack.c.bf16 %v1028, %v1027
    %v1039 = vpack.c.bf16 %v1030, %v1029
    %v1040 = vpack.c.bf16 %v1032, %v1031
    %v1041 = vperm.slane %v982, 0
    %vm1042 = vcmp.eq.s32.totalorder %v1041, %v49
    %vm1043 = vcmp.eq.s32.totalorder %v1041, %v50
    %vm1044 = vcmp.eq.s32.totalorder %v1041, %v51
    %vm1045 = vcmp.eq.s32.totalorder %v1041, %v52
    %vm1046 = vcmp.eq.s32.totalorder %v1041, %v53
    %vm1047 = vcmp.eq.s32.totalorder %v1041, %v54
    %vm1048 = vcmp.eq.s32.totalorder %v1041, %v55
    %vm1049 = vcmp.eq.s32.totalorder %v1041, %v56
    %vm1050 = vcmp.eq.s32.totalorder %v1041, %v57
    %vm1051 = vcmp.eq.s32.totalorder %v1041, %v58
    %vm1052 = vcmp.eq.s32.totalorder %v1041, %v59
    %vm1053 = vcmp.eq.s32.totalorder %v1041, %v60
    %vm1054 = vcmp.eq.s32.totalorder %v1041, %v61
    %vm1055 = vcmp.eq.s32.totalorder %v1041, %v62
    %vm1056 = vcmp.eq.s32.totalorder %v1041, %v63
    %vm1057 = vcmp.eq.s32.totalorder %v1041, %v64
    %v1058 = vperm.slane %v983, 0
    %v1059 = vsel %vm1042, %v1058, 0.0
    %v1060 = vsel %vm1043, %v1058, 0.0
    %v1061 = vsel %vm1044, %v1058, 0.0
    %v1062 = vsel %vm1045, %v1058, 0.0
    %v1063 = vsel %vm1046, %v1058, 0.0
    %v1064 = vsel %vm1047, %v1058, 0.0
    %v1065 = vsel %vm1048, %v1058, 0.0
    %v1066 = vsel %vm1049, %v1058, 0.0
    %v1067 = vsel %vm1050, %v1058, 0.0
    %v1068 = vsel %vm1051, %v1058, 0.0
    %v1069 = vsel %vm1052, %v1058, 0.0
    %v1070 = vsel %vm1053, %v1058, 0.0
    %v1071 = vsel %vm1054, %v1058, 0.0
    %v1072 = vsel %vm1055, %v1058, 0.0
    %v1073 = vsel %vm1056, %v1058, 0.0
    %v1074 = vsel %vm1057, %v1058, 0.0
    %v1075 = vpack.c.bf16 %v1059, %v1059
    %v1076 = vpack.c.bf16 %v1060, %v1060
    %v1077 = vpack.c.bf16 %v1061, %v1061
    %v1078 = vpack.c.bf16 %v1062, %v1062
    %v1079 = vpack.c.bf16 %v1063, %v1063
    %v1080 = vpack.c.bf16 %v1064, %v1064
    %v1081 = vpack.c.bf16 %v1065, %v1065
    %v1082 = vpack.c.bf16 %v1066, %v1066
    %v1083 = vpack.c.bf16 %v1067, %v1067
    %v1084 = vpack.c.bf16 %v1068, %v1068
    %v1085 = vpack.c.bf16 %v1069, %v1069
    %v1086 = vpack.c.bf16 %v1070, %v1070
    %v1087 = vpack.c.bf16 %v1071, %v1071
    %v1088 = vpack.c.bf16 %v1072, %v1072
    %v1089 = vpack.c.bf16 %v1073, %v1073
    %v1090 = vpack.c.bf16 %v1074, %v1074
    %v1091 = vunpack.c.l.bf16 %v1075
    %v1092 = vunpack.c.l.bf16 %v1076
    %v1093 = vunpack.c.l.bf16 %v1077
    %v1094 = vunpack.c.l.bf16 %v1078
    %v1095 = vunpack.c.l.bf16 %v1079
    %v1096 = vunpack.c.l.bf16 %v1080
    %v1097 = vunpack.c.l.bf16 %v1081
    %v1098 = vunpack.c.l.bf16 %v1082
    %v1099 = vunpack.c.l.bf16 %v1083
    %v1100 = vunpack.c.l.bf16 %v1084
    %v1101 = vunpack.c.l.bf16 %v1085
    %v1102 = vunpack.c.l.bf16 %v1086
    %v1103 = vunpack.c.l.bf16 %v1087
    %v1104 = vunpack.c.l.bf16 %v1088
    %v1105 = vunpack.c.l.bf16 %v1089
    %v1106 = vunpack.c.l.bf16 %v1090
    %v1107 = vsub.f32 %v1059, %v1091
    %v1108 = vsub.f32 %v1060, %v1092
    %v1109 = vsub.f32 %v1061, %v1093
    %v1110 = vsub.f32 %v1062, %v1094
    %v1111 = vsub.f32 %v1063, %v1095
    %v1112 = vsub.f32 %v1064, %v1096
    %v1113 = vsub.f32 %v1065, %v1097
    %v1114 = vsub.f32 %v1066, %v1098
    %v1115 = vsub.f32 %v1067, %v1099
    %v1116 = vsub.f32 %v1068, %v1100
    %v1117 = vsub.f32 %v1069, %v1101
    %v1118 = vsub.f32 %v1070, %v1102
    %v1119 = vsub.f32 %v1071, %v1103
    %v1120 = vsub.f32 %v1072, %v1104
    %v1121 = vsub.f32 %v1073, %v1105
    %v1122 = vsub.f32 %v1074, %v1106
    %v1123 = vpack.c.bf16 %v1108, %v1107
    %v1124 = vpack.c.bf16 %v1110, %v1109
    %v1125 = vpack.c.bf16 %v1112, %v1111
    %v1126 = vpack.c.bf16 %v1114, %v1113
    %v1127 = vpack.c.bf16 %v1116, %v1115
    %v1128 = vpack.c.bf16 %v1118, %v1117
    %v1129 = vpack.c.bf16 %v1120, %v1119
    %v1130 = vpack.c.bf16 %v1122, %v1121
    %1131 = vmatpush.bf16.xpose.msra.mxu0 %v1040
    %1132 = vmatpush.bf16.xpose.msra.mxu0 %v1039
    %1133 = vmatpush.bf16.xpose.msra.mxu0 %v1038
    %1134 = vmatpush.bf16.xpose.msra.mxu0 %v1037
    %1135 = vmatpush.bf16.xpose.msra.mxu0 %v1036
    %1136 = vmatpush.bf16.xpose.msra.mxu0 %v1035
    %1137 = vmatpush.bf16.xpose.msra.mxu0 %v1034
    %1138 = vmatpush.bf16.xpose.msra.mxu0 %v1033
    %1139 = vmatmul.bf16.gmra.mxu0 %v1123
    %v1140 = vpop.f32.mrf.mxu0
    %v1141 = vadd.f32 0.0, %v1140
    %v1142 = vpop.f32.mrf.mxu0
    %v1143 = vadd.f32 0.0, %v1142
    %1144 = vmatmul.bf16.gmra.mxu0 %v1124
    %v1145 = vpop.f32.mrf.mxu0
    %v1146 = vadd.f32 0.0, %v1145
    %v1147 = vpop.f32.mrf.mxu0
    %v1148 = vadd.f32 0.0, %v1147
    %1149 = vmatmul.bf16.gmra.mxu0 %v1125
    %v1150 = vpop.f32.mrf.mxu0
    %v1151 = vadd.f32 0.0, %v1150
    %v1152 = vpop.f32.mrf.mxu0
    %v1153 = vadd.f32 0.0, %v1152
    %1154 = vmatmul.bf16.gmra.mxu0 %v1126
    %v1155 = vpop.f32.mrf.mxu0
    %v1156 = vadd.f32 0.0, %v1155
    %v1157 = vpop.f32.mrf.mxu0
    %v1158 = vadd.f32 0.0, %v1157
    %1159 = vmatmul.bf16.gmra.mxu0 %v1127
    %v1160 = vpop.f32.mrf.mxu0
    %v1161 = vadd.f32 0.0, %v1160
    %v1162 = vpop.f32.mrf.mxu0
    %v1163 = vadd.f32 0.0, %v1162
    %1164 = vmatmul.bf16.gmra.mxu0 %v1128
    %v1165 = vpop.f32.mrf.mxu0
    %v1166 = vadd.f32 0.0, %v1165
    %v1167 = vpop.f32.mrf.mxu0
    %v1168 = vadd.f32 0.0, %v1167
    %1169 = vmatmul.bf16.gmra.mxu0 %v1129
    %v1170 = vpop.f32.mrf.mxu0
    %v1171 = vadd.f32 0.0, %v1170
    %v1172 = vpop.f32.mrf.mxu0
    %v1173 = vadd.f32 0.0, %v1172
    %1174 = vmatmul.bf16.gmra.mxu0 %v1130
    %v1175 = vpop.f32.mrf.mxu0
    %v1176 = vadd.f32 0.0, %v1175
    %v1177 = vpop.f32.mrf.mxu0
    %v1178 = vadd.f32 0.0, %v1177
    %1179 = vdwg.mxu0
    %v1196 = vunpack.c.l.b16 %v1075
    %v1197 = vunpack.c.l.b16 %v1076
    %v1198 = vunpack.c.l.b16 %v1077
    %v1199 = vunpack.c.l.b16 %v1078
    %v1200 = vunpack.c.l.b16 %v1079
    %v1201 = vunpack.c.l.b16 %v1080
    %v1202 = vunpack.c.l.b16 %v1081
    %v1203 = vunpack.c.l.b16 %v1082
    %v1204 = vunpack.c.l.b16 %v1083
    %v1205 = vunpack.c.l.b16 %v1084
    %v1206 = vunpack.c.l.b16 %v1085
    %v1207 = vunpack.c.l.b16 %v1086
    %v1208 = vunpack.c.l.b16 %v1087
    %v1209 = vunpack.c.l.b16 %v1088
    %v1210 = vunpack.c.l.b16 %v1089
    %v1211 = vunpack.c.l.b16 %v1090
    %v1212 = vpack.c.b16 %v1197, %v1196
    %v1213 = vpack.c.b16 %v1199, %v1198
    %v1214 = vpack.c.b16 %v1201, %v1200
    %v1215 = vpack.c.b16 %v1203, %v1202
    %v1216 = vpack.c.b16 %v1205, %v1204
    %v1217 = vpack.c.b16 %v1207, %v1206
    %v1218 = vpack.c.b16 %v1209, %v1208
    %v1219 = vpack.c.b16 %v1211, %v1210
    %1228 = vmatpush.bf16.xpose.msra.mxu0 %v1040
    %1229 = vmatpush.bf16.xpose.msra.mxu0 %v1039
    %1230 = vmatpush.bf16.xpose.msra.mxu0 %v1038
    %1231 = vmatpush.bf16.xpose.msra.mxu0 %v1037
    %1232 = vmatpush.bf16.xpose.msra.mxu0 %v1036
    %1233 = vmatpush.bf16.xpose.msra.mxu0 %v1035
    %1234 = vmatpush.bf16.xpose.msra.mxu0 %v1034
    %1235 = vmatpush.bf16.xpose.msra.mxu0 %v1033
    %1236 = vmatmul.bf16.gmra.mxu0 %v1212
    %v1237 = vpop.f32.mrf.mxu0
    %v1238 = vadd.f32 %v1141, %v1237
    %v1239 = vpop.f32.mrf.mxu0
    %v1240 = vadd.f32 %v1143, %v1239
    %1241 = vmatmul.bf16.gmra.mxu0 %v1213
    %v1242 = vpop.f32.mrf.mxu0
    %v1243 = vadd.f32 %v1146, %v1242
    %v1244 = vpop.f32.mrf.mxu0
    %v1245 = vadd.f32 %v1148, %v1244
    %1246 = vmatmul.bf16.gmra.mxu0 %v1214
    %v1247 = vpop.f32.mrf.mxu0
    %v1248 = vadd.f32 %v1151, %v1247
    %v1249 = vpop.f32.mrf.mxu0
    %v1250 = vadd.f32 %v1153, %v1249
    %1251 = vmatmul.bf16.gmra.mxu0 %v1215
    %v1252 = vpop.f32.mrf.mxu0
    %v1253 = vadd.f32 %v1156, %v1252
    %v1254 = vpop.f32.mrf.mxu0
    %v1255 = vadd.f32 %v1158, %v1254
    %1256 = vmatmul.bf16.gmra.mxu0 %v1216
    %v1257 = vpop.f32.mrf.mxu0
    %v1258 = vadd.f32 %v1161, %v1257
    %v1259 = vpop.f32.mrf.mxu0
    %v1260 = vadd.f32 %v1163, %v1259
    %1261 = vmatmul.bf16.gmra.mxu0 %v1217
    %v1262 = vpop.f32.mrf.mxu0
    %v1263 = vadd.f32 %v1166, %v1262
    %v1264 = vpop.f32.mrf.mxu0
    %v1265 = vadd.f32 %v1168, %v1264
    %1266 = vmatmul.bf16.gmra.mxu0 %v1218
    %v1267 = vpop.f32.mrf.mxu0
    %v1268 = vadd.f32 %v1171, %v1267
    %v1269 = vpop.f32.mrf.mxu0
    %v1270 = vadd.f32 %v1173, %v1269
    %1271 = vmatmul.bf16.gmra.mxu0 %v1219
    %v1272 = vpop.f32.mrf.mxu0
    %v1273 = vadd.f32 %v1176, %v1272
    %v1274 = vpop.f32.mrf.mxu0
    %v1275 = vadd.f32 %v1178, %v1274
    %1276 = vdwg.mxu0
    %v1277 = vsel %vm65, %v1238, 0.0
    %v1278 = vsel %vm66, %v1240, 0.0
    %v1279 = vsel %vm67, %v1243, 0.0
    %v1280 = vsel %vm68, %v1245, 0.0
    %v1281 = vsel %vm69, %v1248, 0.0
    %v1282 = vsel %vm70, %v1250, 0.0
    %v1283 = vsel %vm71, %v1253, 0.0
    %v1284 = vsel %vm72, %v1255, 0.0
    %v1285 = vsel %vm73, %v1258, 0.0
    %v1286 = vsel %vm74, %v1260, 0.0
    %v1287 = vsel %vm75, %v1263, 0.0
    %v1288 = vsel %vm76, %v1265, 0.0
    %v1289 = vsel %vm77, %v1268, 0.0
    %v1290 = vsel %vm78, %v1270, 0.0
    %v1291 = vsel %vm79, %v1273, 0.0
    %v1292 = vsel %vm80, %v1275, 0.0
    %1293 = vadd.xlane.f32.xlu0 %v1277
    %v1294 = vpop.xlane.xlu0 %1293
    %1295 = vadd.xlane.f32.xlu0 %v1278
    %v1296 = vpop.xlane.xlu0 %1295
    %1297 = vadd.xlane.f32.xlu0 %v1279
    %v1298 = vpop.xlane.xlu0 %1297
    %1299 = vadd.xlane.f32.xlu0 %v1280
    %v1300 = vpop.xlane.xlu0 %1299
    %1301 = vadd.xlane.f32.xlu0 %v1281
    %v1302 = vpop.xlane.xlu0 %1301
    %1303 = vadd.xlane.f32.xlu0 %v1282
    %v1304 = vpop.xlane.xlu0 %1303
    %1305 = vadd.xlane.f32.xlu0 %v1283
    %v1306 = vpop.xlane.xlu0 %1305
    %1307 = vadd.xlane.f32.xlu0 %v1284
    %v1308 = vpop.xlane.xlu0 %1307
    %1309 = vadd.xlane.f32.xlu0 %v1285
    %v1310 = vpop.xlane.xlu0 %1309
    %1311 = vadd.xlane.f32.xlu0 %v1286
    %v1312 = vpop.xlane.xlu0 %1311
    %1313 = vadd.xlane.f32.xlu0 %v1287
    %v1314 = vpop.xlane.xlu0 %1313
    %1315 = vadd.xlane.f32.xlu0 %v1288
    %v1316 = vpop.xlane.xlu0 %1315
    %1317 = vadd.xlane.f32.xlu0 %v1289
    %v1318 = vpop.xlane.xlu0 %1317
    %1319 = vadd.xlane.f32.xlu0 %v1290
    %v1320 = vpop.xlane.xlu0 %1319
    %1321 = vadd.xlane.f32.xlu0 %v1291
    %v1322 = vpop.xlane.xlu0 %1321
    %1323 = vadd.xlane.f32.xlu0 %v1292
    %v1324 = vpop.xlane.xlu0 %1323
    %v1325 = vsub.f32 0.0, %v1294
    %v1326 = vsub.f32 0.0, %v1296
    %v1327 = vsub.f32 0.0, %v1298
    %v1328 = vsub.f32 0.0, %v1300
    %v1329 = vsub.f32 0.0, %v1302
    %v1330 = vsub.f32 0.0, %v1304
    %v1331 = vsub.f32 0.0, %v1306
    %v1332 = vsub.f32 0.0, %v1308
    %v1333 = vsub.f32 0.0, %v1310
    %v1334 = vsub.f32 0.0, %v1312
    %v1335 = vsub.f32 0.0, %v1314
    %v1336 = vsub.f32 0.0, %v1316
    %v1337 = vsub.f32 0.0, %v1318
    %v1338 = vsub.f32 0.0, %v1320
    %v1339 = vsub.f32 0.0, %v1322
    %v1340 = vsub.f32 0.0, %v1324
    %v1341 = vsel %vm81, %v1325, %v1238
    %v1342 = vsel %vm81, %v1326, %v1240
    %v1343 = vsel %vm81, %v1327, %v1243
    %v1344 = vsel %vm81, %v1328, %v1245
    %v1345 = vsel %vm81, %v1329, %v1248
    %v1346 = vsel %vm81, %v1330, %v1250
    %v1347 = vsel %vm81, %v1331, %v1253
    %v1348 = vsel %vm81, %v1332, %v1255
    %v1349 = vsel %vm81, %v1333, %v1258
    %v1350 = vsel %vm81, %v1334, %v1260
    %v1351 = vsel %vm81, %v1335, %v1263
    %v1352 = vsel %vm81, %v1336, %v1265
    %v1353 = vsel %vm81, %v1337, %v1268
    %v1354 = vsel %vm81, %v1338, %v1270
    %v1355 = vsel %vm81, %v1339, %v1273
    %v1356 = vsel %vm81, %v1340, %v1275
    %s1357 = scalar_lea.vmem %s3, 16
    %v1358 = vld [vmem:[%s1357] sm:$0xff]
    %s1359 = scalar_lea.vmem %s4, 16
    %v1360 = vld [vmem:[%s1359] sm:$0xff]
    %v1361 = vadd.s32 %v1360, 1
    %1362 = vset.pattern.permute.xlu0 0
    %1363 = vperm.xlu0 %1362, %v1361
    %v1364 = vpop.permute.xlu0 %1363
    %vm1365 = vcmp.eq.s32.totalorder %v1364, %v31
    %v1366 = vsel %vm1365, 1, 0
    %v1367 = vcvt.s32.f32 %v1366
    %v1368 = vadd.s32 %v1358, 1
    %1369 = vset.pattern.permute.xlu0 0
    %1370 = vperm.xlu0 %1369, %v1368
    %v1371 = vpop.permute.xlu0 %1370
    %vm1372 = vcmp.eq.s32.totalorder %v1371, %v31
    %v1373 = vsel %vm1372, 1, 0
    %v1374 = vcvt.s32.f32 %v1373
    %1375 = vmatpush.msra.mxu0 %v1356
    %1376 = vmatpush.msra.mxu0 %v1355
    %1377 = vmatpush.msra.mxu0 %v1354
    %1378 = vmatpush.msra.mxu0 %v1353
    %1379 = vmatpush.msra.mxu0 %v1352
    %1380 = vmatpush.msra.mxu0 %v1351
    %1381 = vmatpush.msra.mxu0 %v1350
    %1382 = vmatpush.msra.mxu0 %v1349
    %1383 = vmatpush.msra.mxu0 %v1348
    %1384 = vmatpush.msra.mxu0 %v1347
    %1385 = vmatpush.msra.mxu0 %v1346
    %1386 = vmatpush.msra.mxu0 %v1345
    %1387 = vmatpush.msra.mxu0 %v1344
    %1388 = vmatpush.msra.mxu0 %v1343
    %1389 = vmatpush.msra.mxu0 %v1342
    %1390 = vmatpush.msra.mxu0 %v1341
    %1391 = vmatmul.f32.gmra.mxu0 %v1367
    %v1392 = vpop.f32.mrf.mxu0
    %v1393 = vadd.f32 0.0, %v1392
    %1394 = vdwg.mxu0
    %v1395 = vmul.f32 %v1393, %v1374
    %1396 = vadd.xlane.f32.xlu0 %v1395
    %v1397 = vpop.xlane.xlu0 %1396
    %s1398 = scalar_lea.vmem %s6, 16
    %v1399 = vld [vmem:[%s1398] sm:$0xff]
    %s1400 = scalar_lea.vmem %s5, 16
    %v1401 = vld [vmem:[%s1400] sm:$0xff]
    %v1402 = vmul.f32 %v1401, 2.0
    %v1403 = vsub.f32 %v1402, 1.0
    %v1404 = vmul.f32 %v1399, %v1403
    %v1405 = vmul.f32 %v1397, %v1404
    %v1406 = vsel %vm503, %v1405, 0.0
    %v1407 = vrot.slane %v1406, 4
    %v1408 = vadd.f32 %v1406, %v1407
    %v1409 = vrot.slane %v1408, 2
    %v1410 = vadd.f32 %v1408, %v1409
    %v1411 = vrot.slane %v1410, 1
    %v1412 = vadd.f32 %v1410, %v1411
    %vm1413 = vcmp.eq.s32.totalorder %v33, 2
    %v1414 = vsel %vm1413, %v1412, 0.0
    %v1415 = vadd.f32 %v964, %v1414
    %1416 = vst [vmem:[#allocation2 + $0x100] sm:$0xff] %v1341
    %1417 = vst [vmem:[#allocation2 + $0x108] sm:$0xff] %v1342
    %1418 = vst [vmem:[#allocation2 + $0x110] sm:$0xff] %v1343
    %1419 = vst [vmem:[#allocation2 + $0x118] sm:$0xff] %v1344
    %1420 = vst [vmem:[#allocation2 + $0x120] sm:$0xff] %v1345
    %1421 = vst [vmem:[#allocation2 + $0x128] sm:$0xff] %v1346
    %1422 = vst [vmem:[#allocation2 + $0x130] sm:$0xff] %v1347
    %1423 = vst [vmem:[#allocation2 + $0x138] sm:$0xff] %v1348
    %1424 = vst [vmem:[#allocation2 + $0x140] sm:$0xff] %v1349
    %1425 = vst [vmem:[#allocation2 + $0x148] sm:$0xff] %v1350
    %1426 = vst [vmem:[#allocation2 + $0x150] sm:$0xff] %v1351
    %1427 = vst [vmem:[#allocation2 + $0x158] sm:$0xff] %v1352
    %1428 = vst [vmem:[#allocation2 + $0x160] sm:$0xff] %v1353
    %1429 = vst [vmem:[#allocation2 + $0x168] sm:$0xff] %v1354
    %1430 = vst [vmem:[#allocation2 + $0x170] sm:$0xff] %v1355
    %1431 = vst [vmem:[#allocation2 + $0x178] sm:$0xff] %v1356
    %v1432 = vld [vmem:[%s0 + $0x3] sm:$0x1]
    %v1433 = vld [vmem:[%s1 + $0x3] sm:$0x1]
    %v1434 = vld [vmem:[%s2 + $0x3] sm:$0x1]
    %v1435 = vperm.slane %v1432, 0
    %vm1436 = vcmp.eq.s32.totalorder %v1435, %v49
    %vm1437 = vcmp.eq.s32.totalorder %v1435, %v50
    %vm1438 = vcmp.eq.s32.totalorder %v1435, %v51
    %vm1439 = vcmp.eq.s32.totalorder %v1435, %v52
    %vm1440 = vcmp.eq.s32.totalorder %v1435, %v53
    %vm1441 = vcmp.eq.s32.totalorder %v1435, %v54
    %vm1442 = vcmp.eq.s32.totalorder %v1435, %v55
    %vm1443 = vcmp.eq.s32.totalorder %v1435, %v56
    %vm1444 = vcmp.eq.s32.totalorder %v1435, %v57
    %vm1445 = vcmp.eq.s32.totalorder %v1435, %v58
    %vm1446 = vcmp.eq.s32.totalorder %v1435, %v59
    %vm1447 = vcmp.eq.s32.totalorder %v1435, %v60
    %vm1448 = vcmp.eq.s32.totalorder %v1435, %v61
    %vm1449 = vcmp.eq.s32.totalorder %v1435, %v62
    %vm1450 = vcmp.eq.s32.totalorder %v1435, %v63
    %vm1451 = vcmp.eq.s32.totalorder %v1435, %v64
    %v1452 = vsel %vm1436, 1, 0
    %v1453 = vsel %vm1437, 1, 0
    %v1454 = vsel %vm1438, 1, 0
    %v1455 = vsel %vm1439, 1, 0
    %v1456 = vsel %vm1440, 1, 0
    %v1457 = vsel %vm1441, 1, 0
    %v1458 = vsel %vm1442, 1, 0
    %v1459 = vsel %vm1443, 1, 0
    %v1460 = vsel %vm1444, 1, 0
    %v1461 = vsel %vm1445, 1, 0
    %v1462 = vsel %vm1446, 1, 0
    %v1463 = vsel %vm1447, 1, 0
    %v1464 = vsel %vm1448, 1, 0
    %v1465 = vsel %vm1449, 1, 0
    %v1466 = vsel %vm1450, 1, 0
    %v1467 = vsel %vm1451, 1, 0
    %v1468 = vcvt.s32.f32 %v1452
    %v1469 = vcvt.s32.f32 %v1453
    %v1470 = vcvt.s32.f32 %v1454
    %v1471 = vcvt.s32.f32 %v1455
    %v1472 = vcvt.s32.f32 %v1456
    %v1473 = vcvt.s32.f32 %v1457
    %v1474 = vcvt.s32.f32 %v1458
    %v1475 = vcvt.s32.f32 %v1459
    %v1476 = vcvt.s32.f32 %v1460
    %v1477 = vcvt.s32.f32 %v1461
    %v1478 = vcvt.s32.f32 %v1462
    %v1479 = vcvt.s32.f32 %v1463
    %v1480 = vcvt.s32.f32 %v1464
    %v1481 = vcvt.s32.f32 %v1465
    %v1482 = vcvt.s32.f32 %v1466
    %v1483 = vcvt.s32.f32 %v1467
    %v1484 = vpack.c.bf16 %v1469, %v1468
    %v1485 = vpack.c.bf16 %v1471, %v1470
    %v1486 = vpack.c.bf16 %v1473, %v1472
    %v1487 = vpack.c.bf16 %v1475, %v1474
    %v1488 = vpack.c.bf16 %v1477, %v1476
    %v1489 = vpack.c.bf16 %v1479, %v1478
    %v1490 = vpack.c.bf16 %v1481, %v1480
    %v1491 = vpack.c.bf16 %v1483, %v1482
    %v1492 = vperm.slane %v1433, 0
    %vm1493 = vcmp.eq.s32.totalorder %v1492, %v49
    %vm1494 = vcmp.eq.s32.totalorder %v1492, %v50
    %vm1495 = vcmp.eq.s32.totalorder %v1492, %v51
    %vm1496 = vcmp.eq.s32.totalorder %v1492, %v52
    %vm1497 = vcmp.eq.s32.totalorder %v1492, %v53
    %vm1498 = vcmp.eq.s32.totalorder %v1492, %v54
    %vm1499 = vcmp.eq.s32.totalorder %v1492, %v55
    %vm1500 = vcmp.eq.s32.totalorder %v1492, %v56
    %vm1501 = vcmp.eq.s32.totalorder %v1492, %v57
    %vm1502 = vcmp.eq.s32.totalorder %v1492, %v58
    %vm1503 = vcmp.eq.s32.totalorder %v1492, %v59
    %vm1504 = vcmp.eq.s32.totalorder %v1492, %v60
    %vm1505 = vcmp.eq.s32.totalorder %v1492, %v61
    %vm1506 = vcmp.eq.s32.totalorder %v1492, %v62
    %vm1507 = vcmp.eq.s32.totalorder %v1492, %v63
    %vm1508 = vcmp.eq.s32.totalorder %v1492, %v64
    %v1509 = vperm.slane %v1434, 0
    %v1510 = vsel %vm1493, %v1509, 0.0
    %v1511 = vsel %vm1494, %v1509, 0.0
    %v1512 = vsel %vm1495, %v1509, 0.0
    %v1513 = vsel %vm1496, %v1509, 0.0
    %v1514 = vsel %vm1497, %v1509, 0.0
    %v1515 = vsel %vm1498, %v1509, 0.0
    %v1516 = vsel %vm1499, %v1509, 0.0
    %v1517 = vsel %vm1500, %v1509, 0.0
    %v1518 = vsel %vm1501, %v1509, 0.0
    %v1519 = vsel %vm1502, %v1509, 0.0
    %v1520 = vsel %vm1503, %v1509, 0.0
    %v1521 = vsel %vm1504, %v1509, 0.0
    %v1522 = vsel %vm1505, %v1509, 0.0
    %v1523 = vsel %vm1506, %v1509, 0.0
    %v1524 = vsel %vm1507, %v1509, 0.0
    %v1525 = vsel %vm1508, %v1509, 0.0
    %v1526 = vpack.c.bf16 %v1510, %v1510
    %v1527 = vpack.c.bf16 %v1511, %v1511
    %v1528 = vpack.c.bf16 %v1512, %v1512
    %v1529 = vpack.c.bf16 %v1513, %v1513
    %v1530 = vpack.c.bf16 %v1514, %v1514
    %v1531 = vpack.c.bf16 %v1515, %v1515
    %v1532 = vpack.c.bf16 %v1516, %v1516
    %v1533 = vpack.c.bf16 %v1517, %v1517
    %v1534 = vpack.c.bf16 %v1518, %v1518
    %v1535 = vpack.c.bf16 %v1519, %v1519
    %v1536 = vpack.c.bf16 %v1520, %v1520
    %v1537 = vpack.c.bf16 %v1521, %v1521
    %v1538 = vpack.c.bf16 %v1522, %v1522
    %v1539 = vpack.c.bf16 %v1523, %v1523
    %v1540 = vpack.c.bf16 %v1524, %v1524
    %v1541 = vpack.c.bf16 %v1525, %v1525
    %v1542 = vunpack.c.l.bf16 %v1526
    %v1543 = vunpack.c.l.bf16 %v1527
    %v1544 = vunpack.c.l.bf16 %v1528
    %v1545 = vunpack.c.l.bf16 %v1529
    %v1546 = vunpack.c.l.bf16 %v1530
    %v1547 = vunpack.c.l.bf16 %v1531
    %v1548 = vunpack.c.l.bf16 %v1532
    %v1549 = vunpack.c.l.bf16 %v1533
    %v1550 = vunpack.c.l.bf16 %v1534
    %v1551 = vunpack.c.l.bf16 %v1535
    %v1552 = vunpack.c.l.bf16 %v1536
    %v1553 = vunpack.c.l.bf16 %v1537
    %v1554 = vunpack.c.l.bf16 %v1538
    %v1555 = vunpack.c.l.bf16 %v1539
    %v1556 = vunpack.c.l.bf16 %v1540
    %v1557 = vunpack.c.l.bf16 %v1541
    %v1558 = vsub.f32 %v1510, %v1542
    %v1559 = vsub.f32 %v1511, %v1543
    %v1560 = vsub.f32 %v1512, %v1544
    %v1561 = vsub.f32 %v1513, %v1545
    %v1562 = vsub.f32 %v1514, %v1546
    %v1563 = vsub.f32 %v1515, %v1547
    %v1564 = vsub.f32 %v1516, %v1548
    %v1565 = vsub.f32 %v1517, %v1549
    %v1566 = vsub.f32 %v1518, %v1550
    %v1567 = vsub.f32 %v1519, %v1551
    %v1568 = vsub.f32 %v1520, %v1552
    %v1569 = vsub.f32 %v1521, %v1553
    %v1570 = vsub.f32 %v1522, %v1554
    %v1571 = vsub.f32 %v1523, %v1555
    %v1572 = vsub.f32 %v1524, %v1556
    %v1573 = vsub.f32 %v1525, %v1557
    %v1574 = vpack.c.bf16 %v1559, %v1558
    %v1575 = vpack.c.bf16 %v1561, %v1560
    %v1576 = vpack.c.bf16 %v1563, %v1562
    %v1577 = vpack.c.bf16 %v1565, %v1564
    %v1578 = vpack.c.bf16 %v1567, %v1566
    %v1579 = vpack.c.bf16 %v1569, %v1568
    %v1580 = vpack.c.bf16 %v1571, %v1570
    %v1581 = vpack.c.bf16 %v1573, %v1572
    %1582 = vmatpush.bf16.xpose.msra.mxu0 %v1491
    %1583 = vmatpush.bf16.xpose.msra.mxu0 %v1490
    %1584 = vmatpush.bf16.xpose.msra.mxu0 %v1489
    %1585 = vmatpush.bf16.xpose.msra.mxu0 %v1488
    %1586 = vmatpush.bf16.xpose.msra.mxu0 %v1487
    %1587 = vmatpush.bf16.xpose.msra.mxu0 %v1486
    %1588 = vmatpush.bf16.xpose.msra.mxu0 %v1485
    %1589 = vmatpush.bf16.xpose.msra.mxu0 %v1484
    %1590 = vmatmul.bf16.gmra.mxu0 %v1574
    %v1591 = vpop.f32.mrf.mxu0
    %v1592 = vadd.f32 0.0, %v1591
    %v1593 = vpop.f32.mrf.mxu0
    %v1594 = vadd.f32 0.0, %v1593
    %1595 = vmatmul.bf16.gmra.mxu0 %v1575
    %v1596 = vpop.f32.mrf.mxu0
    %v1597 = vadd.f32 0.0, %v1596
    %v1598 = vpop.f32.mrf.mxu0
    %v1599 = vadd.f32 0.0, %v1598
    %1600 = vmatmul.bf16.gmra.mxu0 %v1576
    %v1601 = vpop.f32.mrf.mxu0
    %v1602 = vadd.f32 0.0, %v1601
    %v1603 = vpop.f32.mrf.mxu0
    %v1604 = vadd.f32 0.0, %v1603
    %1605 = vmatmul.bf16.gmra.mxu0 %v1577
    %v1606 = vpop.f32.mrf.mxu0
    %v1607 = vadd.f32 0.0, %v1606
    %v1608 = vpop.f32.mrf.mxu0
    %v1609 = vadd.f32 0.0, %v1608
    %1610 = vmatmul.bf16.gmra.mxu0 %v1578
    %v1611 = vpop.f32.mrf.mxu0
    %v1612 = vadd.f32 0.0, %v1611
    %v1613 = vpop.f32.mrf.mxu0
    %v1614 = vadd.f32 0.0, %v1613
    %1615 = vmatmul.bf16.gmra.mxu0 %v1579
    %v1616 = vpop.f32.mrf.mxu0
    %v1617 = vadd.f32 0.0, %v1616
    %v1618 = vpop.f32.mrf.mxu0
    %v1619 = vadd.f32 0.0, %v1618
    %1620 = vmatmul.bf16.gmra.mxu0 %v1580
    %v1621 = vpop.f32.mrf.mxu0
    %v1622 = vadd.f32 0.0, %v1621
    %v1623 = vpop.f32.mrf.mxu0
    %v1624 = vadd.f32 0.0, %v1623
    %1625 = vmatmul.bf16.gmra.mxu0 %v1581
    %v1626 = vpop.f32.mrf.mxu0
    %v1627 = vadd.f32 0.0, %v1626
    %v1628 = vpop.f32.mrf.mxu0
    %v1629 = vadd.f32 0.0, %v1628
    %1630 = vdwg.mxu0
    %v1647 = vunpack.c.l.b16 %v1526
    %v1648 = vunpack.c.l.b16 %v1527
    %v1649 = vunpack.c.l.b16 %v1528
    %v1650 = vunpack.c.l.b16 %v1529
    %v1651 = vunpack.c.l.b16 %v1530
    %v1652 = vunpack.c.l.b16 %v1531
    %v1653 = vunpack.c.l.b16 %v1532
    %v1654 = vunpack.c.l.b16 %v1533
    %v1655 = vunpack.c.l.b16 %v1534
    %v1656 = vunpack.c.l.b16 %v1535
    %v1657 = vunpack.c.l.b16 %v1536
    %v1658 = vunpack.c.l.b16 %v1537
    %v1659 = vunpack.c.l.b16 %v1538
    %v1660 = vunpack.c.l.b16 %v1539
    %v1661 = vunpack.c.l.b16 %v1540
    %v1662 = vunpack.c.l.b16 %v1541
    %v1663 = vpack.c.b16 %v1648, %v1647
    %v1664 = vpack.c.b16 %v1650, %v1649
    %v1665 = vpack.c.b16 %v1652, %v1651
    %v1666 = vpack.c.b16 %v1654, %v1653
    %v1667 = vpack.c.b16 %v1656, %v1655
    %v1668 = vpack.c.b16 %v1658, %v1657
    %v1669 = vpack.c.b16 %v1660, %v1659
    %v1670 = vpack.c.b16 %v1662, %v1661
    %1679 = vmatpush.bf16.xpose.msra.mxu0 %v1491
    %1680 = vmatpush.bf16.xpose.msra.mxu0 %v1490
    %1681 = vmatpush.bf16.xpose.msra.mxu0 %v1489
    %1682 = vmatpush.bf16.xpose.msra.mxu0 %v1488
    %1683 = vmatpush.bf16.xpose.msra.mxu0 %v1487
    %1684 = vmatpush.bf16.xpose.msra.mxu0 %v1486
    %1685 = vmatpush.bf16.xpose.msra.mxu0 %v1485
    %1686 = vmatpush.bf16.xpose.msra.mxu0 %v1484
    %1687 = vmatmul.bf16.gmra.mxu0 %v1663
    %v1688 = vpop.f32.mrf.mxu0
    %v1689 = vadd.f32 %v1592, %v1688
    %v1690 = vpop.f32.mrf.mxu0
    %v1691 = vadd.f32 %v1594, %v1690
    %1692 = vmatmul.bf16.gmra.mxu0 %v1664
    %v1693 = vpop.f32.mrf.mxu0
    %v1694 = vadd.f32 %v1597, %v1693
    %v1695 = vpop.f32.mrf.mxu0
    %v1696 = vadd.f32 %v1599, %v1695
    %1697 = vmatmul.bf16.gmra.mxu0 %v1665
    %v1698 = vpop.f32.mrf.mxu0
    %v1699 = vadd.f32 %v1602, %v1698
    %v1700 = vpop.f32.mrf.mxu0
    %v1701 = vadd.f32 %v1604, %v1700
    %1702 = vmatmul.bf16.gmra.mxu0 %v1666
    %v1703 = vpop.f32.mrf.mxu0
    %v1704 = vadd.f32 %v1607, %v1703
    %v1705 = vpop.f32.mrf.mxu0
    %v1706 = vadd.f32 %v1609, %v1705
    %1707 = vmatmul.bf16.gmra.mxu0 %v1667
    %v1708 = vpop.f32.mrf.mxu0
    %v1709 = vadd.f32 %v1612, %v1708
    %v1710 = vpop.f32.mrf.mxu0
    %v1711 = vadd.f32 %v1614, %v1710
    %1712 = vmatmul.bf16.gmra.mxu0 %v1668
    %v1713 = vpop.f32.mrf.mxu0
    %v1714 = vadd.f32 %v1617, %v1713
    %v1715 = vpop.f32.mrf.mxu0
    %v1716 = vadd.f32 %v1619, %v1715
    %1717 = vmatmul.bf16.gmra.mxu0 %v1669
    %v1718 = vpop.f32.mrf.mxu0
    %v1719 = vadd.f32 %v1622, %v1718
    %v1720 = vpop.f32.mrf.mxu0
    %v1721 = vadd.f32 %v1624, %v1720
    %1722 = vmatmul.bf16.gmra.mxu0 %v1670
    %v1723 = vpop.f32.mrf.mxu0
    %v1724 = vadd.f32 %v1627, %v1723
    %v1725 = vpop.f32.mrf.mxu0
    %v1726 = vadd.f32 %v1629, %v1725
    %1727 = vdwg.mxu0
    %v1728 = vsel %vm65, %v1689, 0.0
    %v1729 = vsel %vm66, %v1691, 0.0
    %v1730 = vsel %vm67, %v1694, 0.0
    %v1731 = vsel %vm68, %v1696, 0.0
    %v1732 = vsel %vm69, %v1699, 0.0
    %v1733 = vsel %vm70, %v1701, 0.0
    %v1734 = vsel %vm71, %v1704, 0.0
    %v1735 = vsel %vm72, %v1706, 0.0
    %v1736 = vsel %vm73, %v1709, 0.0
    %v1737 = vsel %vm74, %v1711, 0.0
    %v1738 = vsel %vm75, %v1714, 0.0
    %v1739 = vsel %vm76, %v1716, 0.0
    %v1740 = vsel %vm77, %v1719, 0.0
    %v1741 = vsel %vm78, %v1721, 0.0
    %v1742 = vsel %vm79, %v1724, 0.0
    %v1743 = vsel %vm80, %v1726, 0.0
    %1744 = vadd.xlane.f32.xlu0 %v1728
    %v1745 = vpop.xlane.xlu0 %1744
    %1746 = vadd.xlane.f32.xlu0 %v1729
    %v1747 = vpop.xlane.xlu0 %1746
    %1748 = vadd.xlane.f32.xlu0 %v1730
    %v1749 = vpop.xlane.xlu0 %1748
    %1750 = vadd.xlane.f32.xlu0 %v1731
    %v1751 = vpop.xlane.xlu0 %1750
    %1752 = vadd.xlane.f32.xlu0 %v1732
    %v1753 = vpop.xlane.xlu0 %1752
    %1754 = vadd.xlane.f32.xlu0 %v1733
    %v1755 = vpop.xlane.xlu0 %1754
    %1756 = vadd.xlane.f32.xlu0 %v1734
    %v1757 = vpop.xlane.xlu0 %1756
    %1758 = vadd.xlane.f32.xlu0 %v1735
    %v1759 = vpop.xlane.xlu0 %1758
    %1760 = vadd.xlane.f32.xlu0 %v1736
    %v1761 = vpop.xlane.xlu0 %1760
    %1762 = vadd.xlane.f32.xlu0 %v1737
    %v1763 = vpop.xlane.xlu0 %1762
    %1764 = vadd.xlane.f32.xlu0 %v1738
    %v1765 = vpop.xlane.xlu0 %1764
    %1766 = vadd.xlane.f32.xlu0 %v1739
    %v1767 = vpop.xlane.xlu0 %1766
    %1768 = vadd.xlane.f32.xlu0 %v1740
    %v1769 = vpop.xlane.xlu0 %1768
    %1770 = vadd.xlane.f32.xlu0 %v1741
    %v1771 = vpop.xlane.xlu0 %1770
    %1772 = vadd.xlane.f32.xlu0 %v1742
    %v1773 = vpop.xlane.xlu0 %1772
    %1774 = vadd.xlane.f32.xlu0 %v1743
    %v1775 = vpop.xlane.xlu0 %1774
    %v1776 = vsub.f32 0.0, %v1745
    %v1777 = vsub.f32 0.0, %v1747
    %v1778 = vsub.f32 0.0, %v1749
    %v1779 = vsub.f32 0.0, %v1751
    %v1780 = vsub.f32 0.0, %v1753
    %v1781 = vsub.f32 0.0, %v1755
    %v1782 = vsub.f32 0.0, %v1757
    %v1783 = vsub.f32 0.0, %v1759
    %v1784 = vsub.f32 0.0, %v1761
    %v1785 = vsub.f32 0.0, %v1763
    %v1786 = vsub.f32 0.0, %v1765
    %v1787 = vsub.f32 0.0, %v1767
    %v1788 = vsub.f32 0.0, %v1769
    %v1789 = vsub.f32 0.0, %v1771
    %v1790 = vsub.f32 0.0, %v1773
    %v1791 = vsub.f32 0.0, %v1775
    %v1792 = vsel %vm81, %v1776, %v1689
    %v1793 = vsel %vm81, %v1777, %v1691
    %v1794 = vsel %vm81, %v1778, %v1694
    %v1795 = vsel %vm81, %v1779, %v1696
    %v1796 = vsel %vm81, %v1780, %v1699
    %v1797 = vsel %vm81, %v1781, %v1701
    %v1798 = vsel %vm81, %v1782, %v1704
    %v1799 = vsel %vm81, %v1783, %v1706
    %v1800 = vsel %vm81, %v1784, %v1709
    %v1801 = vsel %vm81, %v1785, %v1711
    %v1802 = vsel %vm81, %v1786, %v1714
    %v1803 = vsel %vm81, %v1787, %v1716
    %v1804 = vsel %vm81, %v1788, %v1719
    %v1805 = vsel %vm81, %v1789, %v1721
    %v1806 = vsel %vm81, %v1790, %v1724
    %v1807 = vsel %vm81, %v1791, %v1726
    %s1808 = scalar_lea.vmem %s3, 24
    %v1809 = vld [vmem:[%s1808] sm:$0xff]
    %s1810 = scalar_lea.vmem %s4, 24
    %v1811 = vld [vmem:[%s1810] sm:$0xff]
    %v1812 = vadd.s32 %v1811, 1
    %1813 = vset.pattern.permute.xlu0 0
    %1814 = vperm.xlu0 %1813, %v1812
    %v1815 = vpop.permute.xlu0 %1814
    %vm1816 = vcmp.eq.s32.totalorder %v1815, %v31
    %v1817 = vsel %vm1816, 1, 0
    %v1818 = vcvt.s32.f32 %v1817
    %v1819 = vadd.s32 %v1809, 1
    %1820 = vset.pattern.permute.xlu0 0
    %1821 = vperm.xlu0 %1820, %v1819
    %v1822 = vpop.permute.xlu0 %1821
    %vm1823 = vcmp.eq.s32.totalorder %v1822, %v31
    %v1824 = vsel %vm1823, 1, 0
    %v1825 = vcvt.s32.f32 %v1824
    %1826 = vmatpush.msra.mxu0 %v1807
    %1827 = vmatpush.msra.mxu0 %v1806
    %1828 = vmatpush.msra.mxu0 %v1805
    %1829 = vmatpush.msra.mxu0 %v1804
    %1830 = vmatpush.msra.mxu0 %v1803
    %1831 = vmatpush.msra.mxu0 %v1802
    %1832 = vmatpush.msra.mxu0 %v1801
    %1833 = vmatpush.msra.mxu0 %v1800
    %1834 = vmatpush.msra.mxu0 %v1799
    %1835 = vmatpush.msra.mxu0 %v1798
    %1836 = vmatpush.msra.mxu0 %v1797
    %1837 = vmatpush.msra.mxu0 %v1796
    %1838 = vmatpush.msra.mxu0 %v1795
    %1839 = vmatpush.msra.mxu0 %v1794
    %1840 = vmatpush.msra.mxu0 %v1793
    %1841 = vmatpush.msra.mxu0 %v1792
    %1842 = vmatmul.f32.gmra.mxu0 %v1818
    %v1843 = vpop.f32.mrf.mxu0
    %v1844 = vadd.f32 0.0, %v1843
    %1845 = vdwg.mxu0
    %v1846 = vmul.f32 %v1844, %v1825
    %1847 = vadd.xlane.f32.xlu0 %v1846
    %v1848 = vpop.xlane.xlu0 %1847
    %s1849 = scalar_lea.vmem %s6, 24
    %v1850 = vld [vmem:[%s1849] sm:$0xff]
    %s1851 = scalar_lea.vmem %s5, 24
    %v1852 = vld [vmem:[%s1851] sm:$0xff]
    %v1853 = vmul.f32 %v1852, 2.0
    %v1854 = vsub.f32 %v1853, 1.0
    %v1855 = vmul.f32 %v1850, %v1854
    %v1856 = vmul.f32 %v1848, %v1855
    %v1857 = vsel %vm503, %v1856, 0.0
    %v1858 = vrot.slane %v1857, 4
    %v1859 = vadd.f32 %v1857, %v1858
    %v1860 = vrot.slane %v1859, 2
    %v1861 = vadd.f32 %v1859, %v1860
    %v1862 = vrot.slane %v1861, 1
    %v1863 = vadd.f32 %v1861, %v1862
    %vm1864 = vcmp.eq.s32.totalorder %v33, 3
    %v1865 = vsel %vm1864, %v1863, 0.0
    %v1866 = vadd.f32 %v1415, %v1865
    %1867 = vst [vmem:[#allocation2 + $0x180] sm:$0xff] %v1792
    %1868 = vst [vmem:[#allocation2 + $0x188] sm:$0xff] %v1793
    %1869 = vst [vmem:[#allocation2 + $0x190] sm:$0xff] %v1794
    %1870 = vst [vmem:[#allocation2 + $0x198] sm:$0xff] %v1795
    %1871 = vst [vmem:[#allocation2 + $0x1a0] sm:$0xff] %v1796
    %1872 = vst [vmem:[#allocation2 + $0x1a8] sm:$0xff] %v1797
    %1873 = vst [vmem:[#allocation2 + $0x1b0] sm:$0xff] %v1798
    %1874 = vst [vmem:[#allocation2 + $0x1b8] sm:$0xff] %v1799
    %1875 = vst [vmem:[#allocation2 + $0x1c0] sm:$0xff] %v1800
    %1876 = vst [vmem:[#allocation2 + $0x1c8] sm:$0xff] %v1801
    %1877 = vst [vmem:[#allocation2 + $0x1d0] sm:$0xff] %v1802
    %1878 = vst [vmem:[#allocation2 + $0x1d8] sm:$0xff] %v1803
    %1879 = vst [vmem:[#allocation2 + $0x1e0] sm:$0xff] %v1804
    %1880 = vst [vmem:[#allocation2 + $0x1e8] sm:$0xff] %v1805
    %1881 = vst [vmem:[#allocation2 + $0x1f0] sm:$0xff] %v1806
    %1882 = vst [vmem:[#allocation2 + $0x1f8] sm:$0xff] %v1807
    %v1883 = vld [vmem:[%s0 + $0x4] sm:$0x1]
    %v1884 = vld [vmem:[%s1 + $0x4] sm:$0x1]
    %v1885 = vld [vmem:[%s2 + $0x4] sm:$0x1]
    %v1886 = vperm.slane %v1883, 0
    %vm1887 = vcmp.eq.s32.totalorder %v1886, %v49
    %vm1888 = vcmp.eq.s32.totalorder %v1886, %v50
    %vm1889 = vcmp.eq.s32.totalorder %v1886, %v51
    %vm1890 = vcmp.eq.s32.totalorder %v1886, %v52
    %vm1891 = vcmp.eq.s32.totalorder %v1886, %v53
    %vm1892 = vcmp.eq.s32.totalorder %v1886, %v54
    %vm1893 = vcmp.eq.s32.totalorder %v1886, %v55
    %vm1894 = vcmp.eq.s32.totalorder %v1886, %v56
    %vm1895 = vcmp.eq.s32.totalorder %v1886, %v57
    %vm1896 = vcmp.eq.s32.totalorder %v1886, %v58
    %vm1897 = vcmp.eq.s32.totalorder %v1886, %v59
    %vm1898 = vcmp.eq.s32.totalorder %v1886, %v60
    %vm1899 = vcmp.eq.s32.totalorder %v1886, %v61
    %vm1900 = vcmp.eq.s32.totalorder %v1886, %v62
    %vm1901 = vcmp.eq.s32.totalorder %v1886, %v63
    %vm1902 = vcmp.eq.s32.totalorder %v1886, %v64
    %v1903 = vsel %vm1887, 1, 0
    %v1904 = vsel %vm1888, 1, 0
    %v1905 = vsel %vm1889, 1, 0
    %v1906 = vsel %vm1890, 1, 0
    %v1907 = vsel %vm1891, 1, 0
    %v1908 = vsel %vm1892, 1, 0
    %v1909 = vsel %vm1893, 1, 0
    %v1910 = vsel %vm1894, 1, 0
    %v1911 = vsel %vm1895, 1, 0
    %v1912 = vsel %vm1896, 1, 0
    %v1913 = vsel %vm1897, 1, 0
    %v1914 = vsel %vm1898, 1, 0
    %v1915 = vsel %vm1899, 1, 0
    %v1916 = vsel %vm1900, 1, 0
    %v1917 = vsel %vm1901, 1, 0
    %v1918 = vsel %vm1902, 1, 0
    %v1919 = vcvt.s32.f32 %v1903
    %v1920 = vcvt.s32.f32 %v1904
    %v1921 = vcvt.s32.f32 %v1905
    %v1922 = vcvt.s32.f32 %v1906
    %v1923 = vcvt.s32.f32 %v1907
    %v1924 = vcvt.s32.f32 %v1908
    %v1925 = vcvt.s32.f32 %v1909
    %v1926 = vcvt.s32.f32 %v1910
    %v1927 = vcvt.s32.f32 %v1911
    %v1928 = vcvt.s32.f32 %v1912
    %v1929 = vcvt.s32.f32 %v1913
    %v1930 = vcvt.s32.f32 %v1914
    %v1931 = vcvt.s32.f32 %v1915
    %v1932 = vcvt.s32.f32 %v1916
    %v1933 = vcvt.s32.f32 %v1917
    %v1934 = vcvt.s32.f32 %v1918
    %v1935 = vpack.c.bf16 %v1920, %v1919
    %v1936 = vpack.c.bf16 %v1922, %v1921
    %v1937 = vpack.c.bf16 %v1924, %v1923
    %v1938 = vpack.c.bf16 %v1926, %v1925
    %v1939 = vpack.c.bf16 %v1928, %v1927
    %v1940 = vpack.c.bf16 %v1930, %v1929
    %v1941 = vpack.c.bf16 %v1932, %v1931
    %v1942 = vpack.c.bf16 %v1934, %v1933
    %v1943 = vperm.slane %v1884, 0
    %vm1944 = vcmp.eq.s32.totalorder %v1943, %v49
    %vm1945 = vcmp.eq.s32.totalorder %v1943, %v50
    %vm1946 = vcmp.eq.s32.totalorder %v1943, %v51
    %vm1947 = vcmp.eq.s32.totalorder %v1943, %v52
    %vm1948 = vcmp.eq.s32.totalorder %v1943, %v53
    %vm1949 = vcmp.eq.s32.totalorder %v1943, %v54
    %vm1950 = vcmp.eq.s32.totalorder %v1943, %v55
    %vm1951 = vcmp.eq.s32.totalorder %v1943, %v56
    %vm1952 = vcmp.eq.s32.totalorder %v1943, %v57
    %vm1953 = vcmp.eq.s32.totalorder %v1943, %v58
    %vm1954 = vcmp.eq.s32.totalorder %v1943, %v59
    %vm1955 = vcmp.eq.s32.totalorder %v1943, %v60
    %vm1956 = vcmp.eq.s32.totalorder %v1943, %v61
    %vm1957 = vcmp.eq.s32.totalorder %v1943, %v62
    %vm1958 = vcmp.eq.s32.totalorder %v1943, %v63
    %vm1959 = vcmp.eq.s32.totalorder %v1943, %v64
    %v1960 = vperm.slane %v1885, 0
    %v1961 = vsel %vm1944, %v1960, 0.0
    %v1962 = vsel %vm1945, %v1960, 0.0
    %v1963 = vsel %vm1946, %v1960, 0.0
    %v1964 = vsel %vm1947, %v1960, 0.0
    %v1965 = vsel %vm1948, %v1960, 0.0
    %v1966 = vsel %vm1949, %v1960, 0.0
    %v1967 = vsel %vm1950, %v1960, 0.0
    %v1968 = vsel %vm1951, %v1960, 0.0
    %v1969 = vsel %vm1952, %v1960, 0.0
    %v1970 = vsel %vm1953, %v1960, 0.0
    %v1971 = vsel %vm1954, %v1960, 0.0
    %v1972 = vsel %vm1955, %v1960, 0.0
    %v1973 = vsel %vm1956, %v1960, 0.0
    %v1974 = vsel %vm1957, %v1960, 0.0
    %v1975 = vsel %vm1958, %v1960, 0.0
    %v1976 = vsel %vm1959, %v1960, 0.0
    %v1977 = vpack.c.bf16 %v1961, %v1961
    %v1978 = vpack.c.bf16 %v1962, %v1962
    %v1979 = vpack.c.bf16 %v1963, %v1963
    %v1980 = vpack.c.bf16 %v1964, %v1964
    %v1981 = vpack.c.bf16 %v1965, %v1965
    %v1982 = vpack.c.bf16 %v1966, %v1966
    %v1983 = vpack.c.bf16 %v1967, %v1967
    %v1984 = vpack.c.bf16 %v1968, %v1968
    %v1985 = vpack.c.bf16 %v1969, %v1969
    %v1986 = vpack.c.bf16 %v1970, %v1970
    %v1987 = vpack.c.bf16 %v1971, %v1971
    %v1988 = vpack.c.bf16 %v1972, %v1972
    %v1989 = vpack.c.bf16 %v1973, %v1973
    %v1990 = vpack.c.bf16 %v1974, %v1974
    %v1991 = vpack.c.bf16 %v1975, %v1975
    %v1992 = vpack.c.bf16 %v1976, %v1976
    %v1993 = vunpack.c.l.bf16 %v1977
    %v1994 = vunpack.c.l.bf16 %v1978
    %v1995 = vunpack.c.l.bf16 %v1979
    %v1996 = vunpack.c.l.bf16 %v1980
    %v1997 = vunpack.c.l.bf16 %v1981
    %v1998 = vunpack.c.l.bf16 %v1982
    %v1999 = vunpack.c.l.bf16 %v1983
    %v2000 = vunpack.c.l.bf16 %v1984
    %v2001 = vunpack.c.l.bf16 %v1985
    %v2002 = vunpack.c.l.bf16 %v1986
    %v2003 = vunpack.c.l.bf16 %v1987
    %v2004 = vunpack.c.l.bf16 %v1988
    %v2005 = vunpack.c.l.bf16 %v1989
    %v2006 = vunpack.c.l.bf16 %v1990
    %v2007 = vunpack.c.l.bf16 %v1991
    %v2008 = vunpack.c.l.bf16 %v1992
    %v2009 = vsub.f32 %v1961, %v1993
    %v2010 = vsub.f32 %v1962, %v1994
    %v2011 = vsub.f32 %v1963, %v1995
    %v2012 = vsub.f32 %v1964, %v1996
    %v2013 = vsub.f32 %v1965, %v1997
    %v2014 = vsub.f32 %v1966, %v1998
    %v2015 = vsub.f32 %v1967, %v1999
    %v2016 = vsub.f32 %v1968, %v2000
    %v2017 = vsub.f32 %v1969, %v2001
    %v2018 = vsub.f32 %v1970, %v2002
    %v2019 = vsub.f32 %v1971, %v2003
    %v2020 = vsub.f32 %v1972, %v2004
    %v2021 = vsub.f32 %v1973, %v2005
    %v2022 = vsub.f32 %v1974, %v2006
    %v2023 = vsub.f32 %v1975, %v2007
    %v2024 = vsub.f32 %v1976, %v2008
    %v2025 = vpack.c.bf16 %v2010, %v2009
    %v2026 = vpack.c.bf16 %v2012, %v2011
    %v2027 = vpack.c.bf16 %v2014, %v2013
    %v2028 = vpack.c.bf16 %v2016, %v2015
    %v2029 = vpack.c.bf16 %v2018, %v2017
    %v2030 = vpack.c.bf16 %v2020, %v2019
    %v2031 = vpack.c.bf16 %v2022, %v2021
    %v2032 = vpack.c.bf16 %v2024, %v2023
    %2033 = vmatpush.bf16.xpose.msra.mxu0 %v1942
    %2034 = vmatpush.bf16.xpose.msra.mxu0 %v1941
    %2035 = vmatpush.bf16.xpose.msra.mxu0 %v1940
    %2036 = vmatpush.bf16.xpose.msra.mxu0 %v1939
    %2037 = vmatpush.bf16.xpose.msra.mxu0 %v1938
    %2038 = vmatpush.bf16.xpose.msra.mxu0 %v1937
    %2039 = vmatpush.bf16.xpose.msra.mxu0 %v1936
    %2040 = vmatpush.bf16.xpose.msra.mxu0 %v1935
    %2041 = vmatmul.bf16.gmra.mxu0 %v2025
    %v2042 = vpop.f32.mrf.mxu0
    %v2043 = vadd.f32 0.0, %v2042
    %v2044 = vpop.f32.mrf.mxu0
    %v2045 = vadd.f32 0.0, %v2044
    %2046 = vmatmul.bf16.gmra.mxu0 %v2026
    %v2047 = vpop.f32.mrf.mxu0
    %v2048 = vadd.f32 0.0, %v2047
    %v2049 = vpop.f32.mrf.mxu0
    %v2050 = vadd.f32 0.0, %v2049
    %2051 = vmatmul.bf16.gmra.mxu0 %v2027
    %v2052 = vpop.f32.mrf.mxu0
    %v2053 = vadd.f32 0.0, %v2052
    %v2054 = vpop.f32.mrf.mxu0
    %v2055 = vadd.f32 0.0, %v2054
    %2056 = vmatmul.bf16.gmra.mxu0 %v2028
    %v2057 = vpop.f32.mrf.mxu0
    %v2058 = vadd.f32 0.0, %v2057
    %v2059 = vpop.f32.mrf.mxu0
    %v2060 = vadd.f32 0.0, %v2059
    %2061 = vmatmul.bf16.gmra.mxu0 %v2029
    %v2062 = vpop.f32.mrf.mxu0
    %v2063 = vadd.f32 0.0, %v2062
    %v2064 = vpop.f32.mrf.mxu0
    %v2065 = vadd.f32 0.0, %v2064
    %2066 = vmatmul.bf16.gmra.mxu0 %v2030
    %v2067 = vpop.f32.mrf.mxu0
    %v2068 = vadd.f32 0.0, %v2067
    %v2069 = vpop.f32.mrf.mxu0
    %v2070 = vadd.f32 0.0, %v2069
    %2071 = vmatmul.bf16.gmra.mxu0 %v2031
    %v2072 = vpop.f32.mrf.mxu0
    %v2073 = vadd.f32 0.0, %v2072
    %v2074 = vpop.f32.mrf.mxu0
    %v2075 = vadd.f32 0.0, %v2074
    %2076 = vmatmul.bf16.gmra.mxu0 %v2032
    %v2077 = vpop.f32.mrf.mxu0
    %v2078 = vadd.f32 0.0, %v2077
    %v2079 = vpop.f32.mrf.mxu0
    %v2080 = vadd.f32 0.0, %v2079
    %2081 = vdwg.mxu0
    %v2098 = vunpack.c.l.b16 %v1977
    %v2099 = vunpack.c.l.b16 %v1978
    %v2100 = vunpack.c.l.b16 %v1979
    %v2101 = vunpack.c.l.b16 %v1980
    %v2102 = vunpack.c.l.b16 %v1981
    %v2103 = vunpack.c.l.b16 %v1982
    %v2104 = vunpack.c.l.b16 %v1983
    %v2105 = vunpack.c.l.b16 %v1984
    %v2106 = vunpack.c.l.b16 %v1985
    %v2107 = vunpack.c.l.b16 %v1986
    %v2108 = vunpack.c.l.b16 %v1987
    %v2109 = vunpack.c.l.b16 %v1988
    %v2110 = vunpack.c.l.b16 %v1989
    %v2111 = vunpack.c.l.b16 %v1990
    %v2112 = vunpack.c.l.b16 %v1991
    %v2113 = vunpack.c.l.b16 %v1992
    %v2114 = vpack.c.b16 %v2099, %v2098
    %v2115 = vpack.c.b16 %v2101, %v2100
    %v2116 = vpack.c.b16 %v2103, %v2102
    %v2117 = vpack.c.b16 %v2105, %v2104
    %v2118 = vpack.c.b16 %v2107, %v2106
    %v2119 = vpack.c.b16 %v2109, %v2108
    %v2120 = vpack.c.b16 %v2111, %v2110
    %v2121 = vpack.c.b16 %v2113, %v2112
    %2130 = vmatpush.bf16.xpose.msra.mxu0 %v1942
    %2131 = vmatpush.bf16.xpose.msra.mxu0 %v1941
    %2132 = vmatpush.bf16.xpose.msra.mxu0 %v1940
    %2133 = vmatpush.bf16.xpose.msra.mxu0 %v1939
    %2134 = vmatpush.bf16.xpose.msra.mxu0 %v1938
    %2135 = vmatpush.bf16.xpose.msra.mxu0 %v1937
    %2136 = vmatpush.bf16.xpose.msra.mxu0 %v1936
    %2137 = vmatpush.bf16.xpose.msra.mxu0 %v1935
    %2138 = vmatmul.bf16.gmra.mxu0 %v2114
    %v2139 = vpop.f32.mrf.mxu0
    %v2140 = vadd.f32 %v2043, %v2139
    %v2141 = vpop.f32.mrf.mxu0
    %v2142 = vadd.f32 %v2045, %v2141
    %2143 = vmatmul.bf16.gmra.mxu0 %v2115
    %v2144 = vpop.f32.mrf.mxu0
    %v2145 = vadd.f32 %v2048, %v2144
    %v2146 = vpop.f32.mrf.mxu0
    %v2147 = vadd.f32 %v2050, %v2146
    %2148 = vmatmul.bf16.gmra.mxu0 %v2116
    %v2149 = vpop.f32.mrf.mxu0
    %v2150 = vadd.f32 %v2053, %v2149
    %v2151 = vpop.f32.mrf.mxu0
    %v2152 = vadd.f32 %v2055, %v2151
    %2153 = vmatmul.bf16.gmra.mxu0 %v2117
    %v2154 = vpop.f32.mrf.mxu0
    %v2155 = vadd.f32 %v2058, %v2154
    %v2156 = vpop.f32.mrf.mxu0
    %v2157 = vadd.f32 %v2060, %v2156
    %2158 = vmatmul.bf16.gmra.mxu0 %v2118
    %v2159 = vpop.f32.mrf.mxu0
    %v2160 = vadd.f32 %v2063, %v2159
    %v2161 = vpop.f32.mrf.mxu0
    %v2162 = vadd.f32 %v2065, %v2161
    %2163 = vmatmul.bf16.gmra.mxu0 %v2119
    %v2164 = vpop.f32.mrf.mxu0
    %v2165 = vadd.f32 %v2068, %v2164
    %v2166 = vpop.f32.mrf.mxu0
    %v2167 = vadd.f32 %v2070, %v2166
    %2168 = vmatmul.bf16.gmra.mxu0 %v2120
    %v2169 = vpop.f32.mrf.mxu0
    %v2170 = vadd.f32 %v2073, %v2169
    %v2171 = vpop.f32.mrf.mxu0
    %v2172 = vadd.f32 %v2075, %v2171
    %2173 = vmatmul.bf16.gmra.mxu0 %v2121
    %v2174 = vpop.f32.mrf.mxu0
    %v2175 = vadd.f32 %v2078, %v2174
    %v2176 = vpop.f32.mrf.mxu0
    %v2177 = vadd.f32 %v2080, %v2176
    %2178 = vdwg.mxu0
    %v2179 = vsel %vm65, %v2140, 0.0
    %v2180 = vsel %vm66, %v2142, 0.0
    %v2181 = vsel %vm67, %v2145, 0.0
    %v2182 = vsel %vm68, %v2147, 0.0
    %v2183 = vsel %vm69, %v2150, 0.0
    %v2184 = vsel %vm70, %v2152, 0.0
    %v2185 = vsel %vm71, %v2155, 0.0
    %v2186 = vsel %vm72, %v2157, 0.0
    %v2187 = vsel %vm73, %v2160, 0.0
    %v2188 = vsel %vm74, %v2162, 0.0
    %v2189 = vsel %vm75, %v2165, 0.0
    %v2190 = vsel %vm76, %v2167, 0.0
    %v2191 = vsel %vm77, %v2170, 0.0
    %v2192 = vsel %vm78, %v2172, 0.0
    %v2193 = vsel %vm79, %v2175, 0.0
    %v2194 = vsel %vm80, %v2177, 0.0
    %2195 = vadd.xlane.f32.xlu0 %v2179
    %v2196 = vpop.xlane.xlu0 %2195
    %2197 = vadd.xlane.f32.xlu0 %v2180
    %v2198 = vpop.xlane.xlu0 %2197
    %2199 = vadd.xlane.f32.xlu0 %v2181
    %v2200 = vpop.xlane.xlu0 %2199
    %2201 = vadd.xlane.f32.xlu0 %v2182
    %v2202 = vpop.xlane.xlu0 %2201
    %2203 = vadd.xlane.f32.xlu0 %v2183
    %v2204 = vpop.xlane.xlu0 %2203
    %2205 = vadd.xlane.f32.xlu0 %v2184
    %v2206 = vpop.xlane.xlu0 %2205
    %2207 = vadd.xlane.f32.xlu0 %v2185
    %v2208 = vpop.xlane.xlu0 %2207
    %2209 = vadd.xlane.f32.xlu0 %v2186
    %v2210 = vpop.xlane.xlu0 %2209
    %2211 = vadd.xlane.f32.xlu0 %v2187
    %v2212 = vpop.xlane.xlu0 %2211
    %2213 = vadd.xlane.f32.xlu0 %v2188
    %v2214 = vpop.xlane.xlu0 %2213
    %2215 = vadd.xlane.f32.xlu0 %v2189
    %v2216 = vpop.xlane.xlu0 %2215
    %2217 = vadd.xlane.f32.xlu0 %v2190
    %v2218 = vpop.xlane.xlu0 %2217
    %2219 = vadd.xlane.f32.xlu0 %v2191
    %v2220 = vpop.xlane.xlu0 %2219
    %2221 = vadd.xlane.f32.xlu0 %v2192
    %v2222 = vpop.xlane.xlu0 %2221
    %2223 = vadd.xlane.f32.xlu0 %v2193
    %v2224 = vpop.xlane.xlu0 %2223
    %2225 = vadd.xlane.f32.xlu0 %v2194
    %v2226 = vpop.xlane.xlu0 %2225
    %v2227 = vsub.f32 0.0, %v2196
    %v2228 = vsub.f32 0.0, %v2198
    %v2229 = vsub.f32 0.0, %v2200
    %v2230 = vsub.f32 0.0, %v2202
    %v2231 = vsub.f32 0.0, %v2204
    %v2232 = vsub.f32 0.0, %v2206
    %v2233 = vsub.f32 0.0, %v2208
    %v2234 = vsub.f32 0.0, %v2210
    %v2235 = vsub.f32 0.0, %v2212
    %v2236 = vsub.f32 0.0, %v2214
    %v2237 = vsub.f32 0.0, %v2216
    %v2238 = vsub.f32 0.0, %v2218
    %v2239 = vsub.f32 0.0, %v2220
    %v2240 = vsub.f32 0.0, %v2222
    %v2241 = vsub.f32 0.0, %v2224
    %v2242 = vsub.f32 0.0, %v2226
    %v2243 = vsel %vm81, %v2227, %v2140
    %v2244 = vsel %vm81, %v2228, %v2142
    %v2245 = vsel %vm81, %v2229, %v2145
    %v2246 = vsel %vm81, %v2230, %v2147
    %v2247 = vsel %vm81, %v2231, %v2150
    %v2248 = vsel %vm81, %v2232, %v2152
    %v2249 = vsel %vm81, %v2233, %v2155
    %v2250 = vsel %vm81, %v2234, %v2157
    %v2251 = vsel %vm81, %v2235, %v2160
    %v2252 = vsel %vm81, %v2236, %v2162
    %v2253 = vsel %vm81, %v2237, %v2165
    %v2254 = vsel %vm81, %v2238, %v2167
    %v2255 = vsel %vm81, %v2239, %v2170
    %v2256 = vsel %vm81, %v2240, %v2172
    %v2257 = vsel %vm81, %v2241, %v2175
    %v2258 = vsel %vm81, %v2242, %v2177
    %s2259 = scalar_lea.vmem %s3, 32
    %v2260 = vld [vmem:[%s2259] sm:$0xff]
    %s2261 = scalar_lea.vmem %s4, 32
    %v2262 = vld [vmem:[%s2261] sm:$0xff]
    %v2263 = vadd.s32 %v2262, 1
    %2264 = vset.pattern.permute.xlu0 0
    %2265 = vperm.xlu0 %2264, %v2263
    %v2266 = vpop.permute.xlu0 %2265
    %vm2267 = vcmp.eq.s32.totalorder %v2266, %v31
    %v2268 = vsel %vm2267, 1, 0
    %v2269 = vcvt.s32.f32 %v2268
    %v2270 = vadd.s32 %v2260, 1
    %2271 = vset.pattern.permute.xlu0 0
    %2272 = vperm.xlu0 %2271, %v2270
    %v2273 = vpop.permute.xlu0 %2272
    %vm2274 = vcmp.eq.s32.totalorder %v2273, %v31
    %v2275 = vsel %vm2274, 1, 0
    %v2276 = vcvt.s32.f32 %v2275
    %2277 = vmatpush.msra.mxu0 %v2258
    %2278 = vmatpush.msra.mxu0 %v2257
    %2279 = vmatpush.msra.mxu0 %v2256
    %2280 = vmatpush.msra.mxu0 %v2255
    %2281 = vmatpush.msra.mxu0 %v2254
    %2282 = vmatpush.msra.mxu0 %v2253
    %2283 = vmatpush.msra.mxu0 %v2252
    %2284 = vmatpush.msra.mxu0 %v2251
    %2285 = vmatpush.msra.mxu0 %v2250
    %2286 = vmatpush.msra.mxu0 %v2249
    %2287 = vmatpush.msra.mxu0 %v2248
    %2288 = vmatpush.msra.mxu0 %v2247
    %2289 = vmatpush.msra.mxu0 %v2246
    %2290 = vmatpush.msra.mxu0 %v2245
    %2291 = vmatpush.msra.mxu0 %v2244
    %2292 = vmatpush.msra.mxu0 %v2243
    %2293 = vmatmul.f32.gmra.mxu0 %v2269
    %v2294 = vpop.f32.mrf.mxu0
    %v2295 = vadd.f32 0.0, %v2294
    %2296 = vdwg.mxu0
    %v2297 = vmul.f32 %v2295, %v2276
    %2298 = vadd.xlane.f32.xlu0 %v2297
    %v2299 = vpop.xlane.xlu0 %2298
    %s2300 = scalar_lea.vmem %s6, 32
    %v2301 = vld [vmem:[%s2300] sm:$0xff]
    %s2302 = scalar_lea.vmem %s5, 32
    %v2303 = vld [vmem:[%s2302] sm:$0xff]
    %v2304 = vmul.f32 %v2303, 2.0
    %v2305 = vsub.f32 %v2304, 1.0
    %v2306 = vmul.f32 %v2301, %v2305
    %v2307 = vmul.f32 %v2299, %v2306
    %v2308 = vsel %vm503, %v2307, 0.0
    %v2309 = vrot.slane %v2308, 4
    %v2310 = vadd.f32 %v2308, %v2309
    %v2311 = vrot.slane %v2310, 2
    %v2312 = vadd.f32 %v2310, %v2311
    %v2313 = vrot.slane %v2312, 1
    %v2314 = vadd.f32 %v2312, %v2313
    %vm2315 = vcmp.eq.s32.totalorder %v33, 4
    %v2316 = vsel %vm2315, %v2314, 0.0
    %v2317 = vadd.f32 %v1866, %v2316
    %2318 = vst [vmem:[#allocation2 + $0x200] sm:$0xff] %v2243
    %2319 = vst [vmem:[#allocation2 + $0x208] sm:$0xff] %v2244
    %2320 = vst [vmem:[#allocation2 + $0x210] sm:$0xff] %v2245
    %2321 = vst [vmem:[#allocation2 + $0x218] sm:$0xff] %v2246
    %2322 = vst [vmem:[#allocation2 + $0x220] sm:$0xff] %v2247
    %2323 = vst [vmem:[#allocation2 + $0x228] sm:$0xff] %v2248
    %2324 = vst [vmem:[#allocation2 + $0x230] sm:$0xff] %v2249
    %2325 = vst [vmem:[#allocation2 + $0x238] sm:$0xff] %v2250
    %2326 = vst [vmem:[#allocation2 + $0x240] sm:$0xff] %v2251
    %2327 = vst [vmem:[#allocation2 + $0x248] sm:$0xff] %v2252
    %2328 = vst [vmem:[#allocation2 + $0x250] sm:$0xff] %v2253
    %2329 = vst [vmem:[#allocation2 + $0x258] sm:$0xff] %v2254
    %2330 = vst [vmem:[#allocation2 + $0x260] sm:$0xff] %v2255
    %2331 = vst [vmem:[#allocation2 + $0x268] sm:$0xff] %v2256
    %2332 = vst [vmem:[#allocation2 + $0x270] sm:$0xff] %v2257
    %2333 = vst [vmem:[#allocation2 + $0x278] sm:$0xff] %v2258
    %v2334 = vld [vmem:[%s0 + $0x5] sm:$0x1]
    %v2335 = vld [vmem:[%s1 + $0x5] sm:$0x1]
    %v2336 = vld [vmem:[%s2 + $0x5] sm:$0x1]
    %v2337 = vperm.slane %v2334, 0
    %vm2338 = vcmp.eq.s32.totalorder %v2337, %v49
    %vm2339 = vcmp.eq.s32.totalorder %v2337, %v50
    %vm2340 = vcmp.eq.s32.totalorder %v2337, %v51
    %vm2341 = vcmp.eq.s32.totalorder %v2337, %v52
    %vm2342 = vcmp.eq.s32.totalorder %v2337, %v53
    %vm2343 = vcmp.eq.s32.totalorder %v2337, %v54
    %vm2344 = vcmp.eq.s32.totalorder %v2337, %v55
    %vm2345 = vcmp.eq.s32.totalorder %v2337, %v56
    %vm2346 = vcmp.eq.s32.totalorder %v2337, %v57
    %vm2347 = vcmp.eq.s32.totalorder %v2337, %v58
    %vm2348 = vcmp.eq.s32.totalorder %v2337, %v59
    %vm2349 = vcmp.eq.s32.totalorder %v2337, %v60
    %vm2350 = vcmp.eq.s32.totalorder %v2337, %v61
    %vm2351 = vcmp.eq.s32.totalorder %v2337, %v62
    %vm2352 = vcmp.eq.s32.totalorder %v2337, %v63
    %vm2353 = vcmp.eq.s32.totalorder %v2337, %v64
    %v2354 = vsel %vm2338, 1, 0
    %v2355 = vsel %vm2339, 1, 0
    %v2356 = vsel %vm2340, 1, 0
    %v2357 = vsel %vm2341, 1, 0
    %v2358 = vsel %vm2342, 1, 0
    %v2359 = vsel %vm2343, 1, 0
    %v2360 = vsel %vm2344, 1, 0
    %v2361 = vsel %vm2345, 1, 0
    %v2362 = vsel %vm2346, 1, 0
    %v2363 = vsel %vm2347, 1, 0
    %v2364 = vsel %vm2348, 1, 0
    %v2365 = vsel %vm2349, 1, 0
    %v2366 = vsel %vm2350, 1, 0
    %v2367 = vsel %vm2351, 1, 0
    %v2368 = vsel %vm2352, 1, 0
    %v2369 = vsel %vm2353, 1, 0
    %v2370 = vcvt.s32.f32 %v2354
    %v2371 = vcvt.s32.f32 %v2355
    %v2372 = vcvt.s32.f32 %v2356
    %v2373 = vcvt.s32.f32 %v2357
    %v2374 = vcvt.s32.f32 %v2358
    %v2375 = vcvt.s32.f32 %v2359
    %v2376 = vcvt.s32.f32 %v2360
    %v2377 = vcvt.s32.f32 %v2361
    %v2378 = vcvt.s32.f32 %v2362
    %v2379 = vcvt.s32.f32 %v2363
    %v2380 = vcvt.s32.f32 %v2364
    %v2381 = vcvt.s32.f32 %v2365
    %v2382 = vcvt.s32.f32 %v2366
    %v2383 = vcvt.s32.f32 %v2367
    %v2384 = vcvt.s32.f32 %v2368
    %v2385 = vcvt.s32.f32 %v2369
    %v2386 = vpack.c.bf16 %v2371, %v2370
    %v2387 = vpack.c.bf16 %v2373, %v2372
    %v2388 = vpack.c.bf16 %v2375, %v2374
    %v2389 = vpack.c.bf16 %v2377, %v2376
    %v2390 = vpack.c.bf16 %v2379, %v2378
    %v2391 = vpack.c.bf16 %v2381, %v2380
    %v2392 = vpack.c.bf16 %v2383, %v2382
    %v2393 = vpack.c.bf16 %v2385, %v2384
    %v2394 = vperm.slane %v2335, 0
    %vm2395 = vcmp.eq.s32.totalorder %v2394, %v49
    %vm2396 = vcmp.eq.s32.totalorder %v2394, %v50
    %vm2397 = vcmp.eq.s32.totalorder %v2394, %v51
    %vm2398 = vcmp.eq.s32.totalorder %v2394, %v52
    %vm2399 = vcmp.eq.s32.totalorder %v2394, %v53
    %vm2400 = vcmp.eq.s32.totalorder %v2394, %v54
    %vm2401 = vcmp.eq.s32.totalorder %v2394, %v55
    %vm2402 = vcmp.eq.s32.totalorder %v2394, %v56
    %vm2403 = vcmp.eq.s32.totalorder %v2394, %v57
    %vm2404 = vcmp.eq.s32.totalorder %v2394, %v58
    %vm2405 = vcmp.eq.s32.totalorder %v2394, %v59
    %vm2406 = vcmp.eq.s32.totalorder %v2394, %v60
    %vm2407 = vcmp.eq.s32.totalorder %v2394, %v61
    %vm2408 = vcmp.eq.s32.totalorder %v2394, %v62
    %vm2409 = vcmp.eq.s32.totalorder %v2394, %v63
    %vm2410 = vcmp.eq.s32.totalorder %v2394, %v64
    %v2411 = vperm.slane %v2336, 0
    %v2412 = vsel %vm2395, %v2411, 0.0
    %v2413 = vsel %vm2396, %v2411, 0.0
    %v2414 = vsel %vm2397, %v2411, 0.0
    %v2415 = vsel %vm2398, %v2411, 0.0
    %v2416 = vsel %vm2399, %v2411, 0.0
    %v2417 = vsel %vm2400, %v2411, 0.0
    %v2418 = vsel %vm2401, %v2411, 0.0
    %v2419 = vsel %vm2402, %v2411, 0.0
    %v2420 = vsel %vm2403, %v2411, 0.0
    %v2421 = vsel %vm2404, %v2411, 0.0
    %v2422 = vsel %vm2405, %v2411, 0.0
    %v2423 = vsel %vm2406, %v2411, 0.0
    %v2424 = vsel %vm2407, %v2411, 0.0
    %v2425 = vsel %vm2408, %v2411, 0.0
    %v2426 = vsel %vm2409, %v2411, 0.0
    %v2427 = vsel %vm2410, %v2411, 0.0
    %v2428 = vpack.c.bf16 %v2412, %v2412
    %v2429 = vpack.c.bf16 %v2413, %v2413
    %v2430 = vpack.c.bf16 %v2414, %v2414
    %v2431 = vpack.c.bf16 %v2415, %v2415
    %v2432 = vpack.c.bf16 %v2416, %v2416
    %v2433 = vpack.c.bf16 %v2417, %v2417
    %v2434 = vpack.c.bf16 %v2418, %v2418
    %v2435 = vpack.c.bf16 %v2419, %v2419
    %v2436 = vpack.c.bf16 %v2420, %v2420
    %v2437 = vpack.c.bf16 %v2421, %v2421
    %v2438 = vpack.c.bf16 %v2422, %v2422
    %v2439 = vpack.c.bf16 %v2423, %v2423
    %v2440 = vpack.c.bf16 %v2424, %v2424
    %v2441 = vpack.c.bf16 %v2425, %v2425
    %v2442 = vpack.c.bf16 %v2426, %v2426
    %v2443 = vpack.c.bf16 %v2427, %v2427
    %v2444 = vunpack.c.l.bf16 %v2428
    %v2445 = vunpack.c.l.bf16 %v2429
    %v2446 = vunpack.c.l.bf16 %v2430
    %v2447 = vunpack.c.l.bf16 %v2431
    %v2448 = vunpack.c.l.bf16 %v2432
    %v2449 = vunpack.c.l.bf16 %v2433
    %v2450 = vunpack.c.l.bf16 %v2434
    %v2451 = vunpack.c.l.bf16 %v2435
    %v2452 = vunpack.c.l.bf16 %v2436
    %v2453 = vunpack.c.l.bf16 %v2437
    %v2454 = vunpack.c.l.bf16 %v2438
    %v2455 = vunpack.c.l.bf16 %v2439
    %v2456 = vunpack.c.l.bf16 %v2440
    %v2457 = vunpack.c.l.bf16 %v2441
    %v2458 = vunpack.c.l.bf16 %v2442
    %v2459 = vunpack.c.l.bf16 %v2443
    %v2460 = vsub.f32 %v2412, %v2444
    %v2461 = vsub.f32 %v2413, %v2445
    %v2462 = vsub.f32 %v2414, %v2446
    %v2463 = vsub.f32 %v2415, %v2447
    %v2464 = vsub.f32 %v2416, %v2448
    %v2465 = vsub.f32 %v2417, %v2449
    %v2466 = vsub.f32 %v2418, %v2450
    %v2467 = vsub.f32 %v2419, %v2451
    %v2468 = vsub.f32 %v2420, %v2452
    %v2469 = vsub.f32 %v2421, %v2453
    %v2470 = vsub.f32 %v2422, %v2454
    %v2471 = vsub.f32 %v2423, %v2455
    %v2472 = vsub.f32 %v2424, %v2456
    %v2473 = vsub.f32 %v2425, %v2457
    %v2474 = vsub.f32 %v2426, %v2458
    %v2475 = vsub.f32 %v2427, %v2459
    %v2476 = vpack.c.bf16 %v2461, %v2460
    %v2477 = vpack.c.bf16 %v2463, %v2462
    %v2478 = vpack.c.bf16 %v2465, %v2464
    %v2479 = vpack.c.bf16 %v2467, %v2466
    %v2480 = vpack.c.bf16 %v2469, %v2468
    %v2481 = vpack.c.bf16 %v2471, %v2470
    %v2482 = vpack.c.bf16 %v2473, %v2472
    %v2483 = vpack.c.bf16 %v2475, %v2474
    %2484 = vmatpush.bf16.xpose.msra.mxu0 %v2393
    %2485 = vmatpush.bf16.xpose.msra.mxu0 %v2392
    %2486 = vmatpush.bf16.xpose.msra.mxu0 %v2391
    %2487 = vmatpush.bf16.xpose.msra.mxu0 %v2390
    %2488 = vmatpush.bf16.xpose.msra.mxu0 %v2389
    %2489 = vmatpush.bf16.xpose.msra.mxu0 %v2388
    %2490 = vmatpush.bf16.xpose.msra.mxu0 %v2387
    %2491 = vmatpush.bf16.xpose.msra.mxu0 %v2386
    %2492 = vmatmul.bf16.gmra.mxu0 %v2476
    %v2493 = vpop.f32.mrf.mxu0
    %v2494 = vadd.f32 0.0, %v2493
    %v2495 = vpop.f32.mrf.mxu0
    %v2496 = vadd.f32 0.0, %v2495
    %2497 = vmatmul.bf16.gmra.mxu0 %v2477
    %v2498 = vpop.f32.mrf.mxu0
    %v2499 = vadd.f32 0.0, %v2498
    %v2500 = vpop.f32.mrf.mxu0
    %v2501 = vadd.f32 0.0, %v2500
    %2502 = vmatmul.bf16.gmra.mxu0 %v2478
    %v2503 = vpop.f32.mrf.mxu0
    %v2504 = vadd.f32 0.0, %v2503
    %v2505 = vpop.f32.mrf.mxu0
    %v2506 = vadd.f32 0.0, %v2505
    %2507 = vmatmul.bf16.gmra.mxu0 %v2479
    %v2508 = vpop.f32.mrf.mxu0
    %v2509 = vadd.f32 0.0, %v2508
    %v2510 = vpop.f32.mrf.mxu0
    %v2511 = vadd.f32 0.0, %v2510
    %2512 = vmatmul.bf16.gmra.mxu0 %v2480
    %v2513 = vpop.f32.mrf.mxu0
    %v2514 = vadd.f32 0.0, %v2513
    %v2515 = vpop.f32.mrf.mxu0
    %v2516 = vadd.f32 0.0, %v2515
    %2517 = vmatmul.bf16.gmra.mxu0 %v2481
    %v2518 = vpop.f32.mrf.mxu0
    %v2519 = vadd.f32 0.0, %v2518
    %v2520 = vpop.f32.mrf.mxu0
    %v2521 = vadd.f32 0.0, %v2520
    %2522 = vmatmul.bf16.gmra.mxu0 %v2482
    %v2523 = vpop.f32.mrf.mxu0
    %v2524 = vadd.f32 0.0, %v2523
    %v2525 = vpop.f32.mrf.mxu0
    %v2526 = vadd.f32 0.0, %v2525
    %2527 = vmatmul.bf16.gmra.mxu0 %v2483
    %v2528 = vpop.f32.mrf.mxu0
    %v2529 = vadd.f32 0.0, %v2528
    %v2530 = vpop.f32.mrf.mxu0
    %v2531 = vadd.f32 0.0, %v2530
    %2532 = vdwg.mxu0
    %v2549 = vunpack.c.l.b16 %v2428
    %v2550 = vunpack.c.l.b16 %v2429
    %v2551 = vunpack.c.l.b16 %v2430
    %v2552 = vunpack.c.l.b16 %v2431
    %v2553 = vunpack.c.l.b16 %v2432
    %v2554 = vunpack.c.l.b16 %v2433
    %v2555 = vunpack.c.l.b16 %v2434
    %v2556 = vunpack.c.l.b16 %v2435
    %v2557 = vunpack.c.l.b16 %v2436
    %v2558 = vunpack.c.l.b16 %v2437
    %v2559 = vunpack.c.l.b16 %v2438
    %v2560 = vunpack.c.l.b16 %v2439
    %v2561 = vunpack.c.l.b16 %v2440
    %v2562 = vunpack.c.l.b16 %v2441
    %v2563 = vunpack.c.l.b16 %v2442
    %v2564 = vunpack.c.l.b16 %v2443
    %v2565 = vpack.c.b16 %v2550, %v2549
    %v2566 = vpack.c.b16 %v2552, %v2551
    %v2567 = vpack.c.b16 %v2554, %v2553
    %v2568 = vpack.c.b16 %v2556, %v2555
    %v2569 = vpack.c.b16 %v2558, %v2557
    %v2570 = vpack.c.b16 %v2560, %v2559
    %v2571 = vpack.c.b16 %v2562, %v2561
    %v2572 = vpack.c.b16 %v2564, %v2563
    %2581 = vmatpush.bf16.xpose.msra.mxu0 %v2393
    %2582 = vmatpush.bf16.xpose.msra.mxu0 %v2392
    %2583 = vmatpush.bf16.xpose.msra.mxu0 %v2391
    %2584 = vmatpush.bf16.xpose.msra.mxu0 %v2390
    %2585 = vmatpush.bf16.xpose.msra.mxu0 %v2389
    %2586 = vmatpush.bf16.xpose.msra.mxu0 %v2388
    %2587 = vmatpush.bf16.xpose.msra.mxu0 %v2387
    %2588 = vmatpush.bf16.xpose.msra.mxu0 %v2386
    %2589 = vmatmul.bf16.gmra.mxu0 %v2565
    %v2590 = vpop.f32.mrf.mxu0
    %v2591 = vadd.f32 %v2494, %v2590
    %v2592 = vpop.f32.mrf.mxu0
    %v2593 = vadd.f32 %v2496, %v2592
    %2594 = vmatmul.bf16.gmra.mxu0 %v2566
    %v2595 = vpop.f32.mrf.mxu0
    %v2596 = vadd.f32 %v2499, %v2595
    %v2597 = vpop.f32.mrf.mxu0
    %v2598 = vadd.f32 %v2501, %v2597
    %2599 = vmatmul.bf16.gmra.mxu0 %v2567
    %v2600 = vpop.f32.mrf.mxu0
    %v2601 = vadd.f32 %v2504, %v2600
    %v2602 = vpop.f32.mrf.mxu0
    %v2603 = vadd.f32 %v2506, %v2602
    %2604 = vmatmul.bf16.gmra.mxu0 %v2568
    %v2605 = vpop.f32.mrf.mxu0
    %v2606 = vadd.f32 %v2509, %v2605
    %v2607 = vpop.f32.mrf.mxu0
    %v2608 = vadd.f32 %v2511, %v2607
    %2609 = vmatmul.bf16.gmra.mxu0 %v2569
    %v2610 = vpop.f32.mrf.mxu0
    %v2611 = vadd.f32 %v2514, %v2610
    %v2612 = vpop.f32.mrf.mxu0
    %v2613 = vadd.f32 %v2516, %v2612
    %2614 = vmatmul.bf16.gmra.mxu0 %v2570
    %v2615 = vpop.f32.mrf.mxu0
    %v2616 = vadd.f32 %v2519, %v2615
    %v2617 = vpop.f32.mrf.mxu0
    %v2618 = vadd.f32 %v2521, %v2617
    %2619 = vmatmul.bf16.gmra.mxu0 %v2571
    %v2620 = vpop.f32.mrf.mxu0
    %v2621 = vadd.f32 %v2524, %v2620
    %v2622 = vpop.f32.mrf.mxu0
    %v2623 = vadd.f32 %v2526, %v2622
    %2624 = vmatmul.bf16.gmra.mxu0 %v2572
    %v2625 = vpop.f32.mrf.mxu0
    %v2626 = vadd.f32 %v2529, %v2625
    %v2627 = vpop.f32.mrf.mxu0
    %v2628 = vadd.f32 %v2531, %v2627
    %2629 = vdwg.mxu0
    %v2630 = vsel %vm65, %v2591, 0.0
    %v2631 = vsel %vm66, %v2593, 0.0
    %v2632 = vsel %vm67, %v2596, 0.0
    %v2633 = vsel %vm68, %v2598, 0.0
    %v2634 = vsel %vm69, %v2601, 0.0
    %v2635 = vsel %vm70, %v2603, 0.0
    %v2636 = vsel %vm71, %v2606, 0.0
    %v2637 = vsel %vm72, %v2608, 0.0
    %v2638 = vsel %vm73, %v2611, 0.0
    %v2639 = vsel %vm74, %v2613, 0.0
    %v2640 = vsel %vm75, %v2616, 0.0
    %v2641 = vsel %vm76, %v2618, 0.0
    %v2642 = vsel %vm77, %v2621, 0.0
    %v2643 = vsel %vm78, %v2623, 0.0
    %v2644 = vsel %vm79, %v2626, 0.0
    %v2645 = vsel %vm80, %v2628, 0.0
    %2646 = vadd.xlane.f32.xlu0 %v2630
    %v2647 = vpop.xlane.xlu0 %2646
    %2648 = vadd.xlane.f32.xlu0 %v2631
    %v2649 = vpop.xlane.xlu0 %2648
    %2650 = vadd.xlane.f32.xlu0 %v2632
    %v2651 = vpop.xlane.xlu0 %2650
    %2652 = vadd.xlane.f32.xlu0 %v2633
    %v2653 = vpop.xlane.xlu0 %2652
    %2654 = vadd.xlane.f32.xlu0 %v2634
    %v2655 = vpop.xlane.xlu0 %2654
    %2656 = vadd.xlane.f32.xlu0 %v2635
    %v2657 = vpop.xlane.xlu0 %2656
    %2658 = vadd.xlane.f32.xlu0 %v2636
    %v2659 = vpop.xlane.xlu0 %2658
    %2660 = vadd.xlane.f32.xlu0 %v2637
    %v2661 = vpop.xlane.xlu0 %2660
    %2662 = vadd.xlane.f32.xlu0 %v2638
    %v2663 = vpop.xlane.xlu0 %2662
    %2664 = vadd.xlane.f32.xlu0 %v2639
    %v2665 = vpop.xlane.xlu0 %2664
    %2666 = vadd.xlane.f32.xlu0 %v2640
    %v2667 = vpop.xlane.xlu0 %2666
    %2668 = vadd.xlane.f32.xlu0 %v2641
    %v2669 = vpop.xlane.xlu0 %2668
    %2670 = vadd.xlane.f32.xlu0 %v2642
    %v2671 = vpop.xlane.xlu0 %2670
    %2672 = vadd.xlane.f32.xlu0 %v2643
    %v2673 = vpop.xlane.xlu0 %2672
    %2674 = vadd.xlane.f32.xlu0 %v2644
    %v2675 = vpop.xlane.xlu0 %2674
    %2676 = vadd.xlane.f32.xlu0 %v2645
    %v2677 = vpop.xlane.xlu0 %2676
    %v2678 = vsub.f32 0.0, %v2647
    %v2679 = vsub.f32 0.0, %v2649
    %v2680 = vsub.f32 0.0, %v2651
    %v2681 = vsub.f32 0.0, %v2653
    %v2682 = vsub.f32 0.0, %v2655
    %v2683 = vsub.f32 0.0, %v2657
    %v2684 = vsub.f32 0.0, %v2659
    %v2685 = vsub.f32 0.0, %v2661
    %v2686 = vsub.f32 0.0, %v2663
    %v2687 = vsub.f32 0.0, %v2665
    %v2688 = vsub.f32 0.0, %v2667
    %v2689 = vsub.f32 0.0, %v2669
    %v2690 = vsub.f32 0.0, %v2671
    %v2691 = vsub.f32 0.0, %v2673
    %v2692 = vsub.f32 0.0, %v2675
    %v2693 = vsub.f32 0.0, %v2677
    %v2694 = vsel %vm81, %v2678, %v2591
    %v2695 = vsel %vm81, %v2679, %v2593
    %v2696 = vsel %vm81, %v2680, %v2596
    %v2697 = vsel %vm81, %v2681, %v2598
    %v2698 = vsel %vm81, %v2682, %v2601
    %v2699 = vsel %vm81, %v2683, %v2603
    %v2700 = vsel %vm81, %v2684, %v2606
    %v2701 = vsel %vm81, %v2685, %v2608
    %v2702 = vsel %vm81, %v2686, %v2611
    %v2703 = vsel %vm81, %v2687, %v2613
    %v2704 = vsel %vm81, %v2688, %v2616
    %v2705 = vsel %vm81, %v2689, %v2618
    %v2706 = vsel %vm81, %v2690, %v2621
    %v2707 = vsel %vm81, %v2691, %v2623
    %v2708 = vsel %vm81, %v2692, %v2626
    %v2709 = vsel %vm81, %v2693, %v2628
    %s2710 = scalar_lea.vmem %s3, 40
    %v2711 = vld [vmem:[%s2710] sm:$0xff]
    %s2712 = scalar_lea.vmem %s4, 40
    %v2713 = vld [vmem:[%s2712] sm:$0xff]
    %v2714 = vadd.s32 %v2713, 1
    %2715 = vset.pattern.permute.xlu0 0
    %2716 = vperm.xlu0 %2715, %v2714
    %v2717 = vpop.permute.xlu0 %2716
    %vm2718 = vcmp.eq.s32.totalorder %v2717, %v31
    %v2719 = vsel %vm2718, 1, 0
    %v2720 = vcvt.s32.f32 %v2719
    %v2721 = vadd.s32 %v2711, 1
    %2722 = vset.pattern.permute.xlu0 0
    %2723 = vperm.xlu0 %2722, %v2721
    %v2724 = vpop.permute.xlu0 %2723
    %vm2725 = vcmp.eq.s32.totalorder %v2724, %v31
    %v2726 = vsel %vm2725, 1, 0
    %v2727 = vcvt.s32.f32 %v2726
    %2728 = vmatpush.msra.mxu0 %v2709
    %2729 = vmatpush.msra.mxu0 %v2708
    %2730 = vmatpush.msra.mxu0 %v2707
    %2731 = vmatpush.msra.mxu0 %v2706
    %2732 = vmatpush.msra.mxu0 %v2705
    %2733 = vmatpush.msra.mxu0 %v2704
    %2734 = vmatpush.msra.mxu0 %v2703
    %2735 = vmatpush.msra.mxu0 %v2702
    %2736 = vmatpush.msra.mxu0 %v2701
    %2737 = vmatpush.msra.mxu0 %v2700
    %2738 = vmatpush.msra.mxu0 %v2699
    %2739 = vmatpush.msra.mxu0 %v2698
    %2740 = vmatpush.msra.mxu0 %v2697
    %2741 = vmatpush.msra.mxu0 %v2696
    %2742 = vmatpush.msra.mxu0 %v2695
    %2743 = vmatpush.msra.mxu0 %v2694
    %2744 = vmatmul.f32.gmra.mxu0 %v2720
    %v2745 = vpop.f32.mrf.mxu0
    %v2746 = vadd.f32 0.0, %v2745
    %2747 = vdwg.mxu0
    %v2748 = vmul.f32 %v2746, %v2727
    %2749 = vadd.xlane.f32.xlu0 %v2748
    %v2750 = vpop.xlane.xlu0 %2749
    %s2751 = scalar_lea.vmem %s6, 40
    %v2752 = vld [vmem:[%s2751] sm:$0xff]
    %s2753 = scalar_lea.vmem %s5, 40
    %v2754 = vld [vmem:[%s2753] sm:$0xff]
    %v2755 = vmul.f32 %v2754, 2.0
    %v2756 = vsub.f32 %v2755, 1.0
    %v2757 = vmul.f32 %v2752, %v2756
    %v2758 = vmul.f32 %v2750, %v2757
    %v2759 = vsel %vm503, %v2758, 0.0
    %v2760 = vrot.slane %v2759, 4
    %v2761 = vadd.f32 %v2759, %v2760
    %v2762 = vrot.slane %v2761, 2
    %v2763 = vadd.f32 %v2761, %v2762
    %v2764 = vrot.slane %v2763, 1
    %v2765 = vadd.f32 %v2763, %v2764
    %vm2766 = vcmp.eq.s32.totalorder %v33, 5
    %v2767 = vsel %vm2766, %v2765, 0.0
    %v2768 = vadd.f32 %v2317, %v2767
    %2769 = vst [vmem:[#allocation2 + $0x280] sm:$0xff] %v2694
    %2770 = vst [vmem:[#allocation2 + $0x288] sm:$0xff] %v2695
    %2771 = vst [vmem:[#allocation2 + $0x290] sm:$0xff] %v2696
    %2772 = vst [vmem:[#allocation2 + $0x298] sm:$0xff] %v2697
    %2773 = vst [vmem:[#allocation2 + $0x2a0] sm:$0xff] %v2698
    %2774 = vst [vmem:[#allocation2 + $0x2a8] sm:$0xff] %v2699
    %2775 = vst [vmem:[#allocation2 + $0x2b0] sm:$0xff] %v2700
    %2776 = vst [vmem:[#allocation2 + $0x2b8] sm:$0xff] %v2701
    %2777 = vst [vmem:[#allocation2 + $0x2c0] sm:$0xff] %v2702
    %2778 = vst [vmem:[#allocation2 + $0x2c8] sm:$0xff] %v2703
    %2779 = vst [vmem:[#allocation2 + $0x2d0] sm:$0xff] %v2704
    %2780 = vst [vmem:[#allocation2 + $0x2d8] sm:$0xff] %v2705
    %2781 = vst [vmem:[#allocation2 + $0x2e0] sm:$0xff] %v2706
    %2782 = vst [vmem:[#allocation2 + $0x2e8] sm:$0xff] %v2707
    %2783 = vst [vmem:[#allocation2 + $0x2f0] sm:$0xff] %v2708
    %2784 = vst [vmem:[#allocation2 + $0x2f8] sm:$0xff] %v2709
    %v2785 = vld [vmem:[%s0 + $0x6] sm:$0x1]
    %v2786 = vld [vmem:[%s1 + $0x6] sm:$0x1]
    %v2787 = vld [vmem:[%s2 + $0x6] sm:$0x1]
    %v2788 = vperm.slane %v2785, 0
    %vm2789 = vcmp.eq.s32.totalorder %v2788, %v49
    %vm2790 = vcmp.eq.s32.totalorder %v2788, %v50
    %vm2791 = vcmp.eq.s32.totalorder %v2788, %v51
    %vm2792 = vcmp.eq.s32.totalorder %v2788, %v52
    %vm2793 = vcmp.eq.s32.totalorder %v2788, %v53
    %vm2794 = vcmp.eq.s32.totalorder %v2788, %v54
    %vm2795 = vcmp.eq.s32.totalorder %v2788, %v55
    %vm2796 = vcmp.eq.s32.totalorder %v2788, %v56
    %vm2797 = vcmp.eq.s32.totalorder %v2788, %v57
    %vm2798 = vcmp.eq.s32.totalorder %v2788, %v58
    %vm2799 = vcmp.eq.s32.totalorder %v2788, %v59
    %vm2800 = vcmp.eq.s32.totalorder %v2788, %v60
    %vm2801 = vcmp.eq.s32.totalorder %v2788, %v61
    %vm2802 = vcmp.eq.s32.totalorder %v2788, %v62
    %vm2803 = vcmp.eq.s32.totalorder %v2788, %v63
    %vm2804 = vcmp.eq.s32.totalorder %v2788, %v64
    %v2805 = vsel %vm2789, 1, 0
    %v2806 = vsel %vm2790, 1, 0
    %v2807 = vsel %vm2791, 1, 0
    %v2808 = vsel %vm2792, 1, 0
    %v2809 = vsel %vm2793, 1, 0
    %v2810 = vsel %vm2794, 1, 0
    %v2811 = vsel %vm2795, 1, 0
    %v2812 = vsel %vm2796, 1, 0
    %v2813 = vsel %vm2797, 1, 0
    %v2814 = vsel %vm2798, 1, 0
    %v2815 = vsel %vm2799, 1, 0
    %v2816 = vsel %vm2800, 1, 0
    %v2817 = vsel %vm2801, 1, 0
    %v2818 = vsel %vm2802, 1, 0
    %v2819 = vsel %vm2803, 1, 0
    %v2820 = vsel %vm2804, 1, 0
    %v2821 = vcvt.s32.f32 %v2805
    %v2822 = vcvt.s32.f32 %v2806
    %v2823 = vcvt.s32.f32 %v2807
    %v2824 = vcvt.s32.f32 %v2808
    %v2825 = vcvt.s32.f32 %v2809
    %v2826 = vcvt.s32.f32 %v2810
    %v2827 = vcvt.s32.f32 %v2811
    %v2828 = vcvt.s32.f32 %v2812
    %v2829 = vcvt.s32.f32 %v2813
    %v2830 = vcvt.s32.f32 %v2814
    %v2831 = vcvt.s32.f32 %v2815
    %v2832 = vcvt.s32.f32 %v2816
    %v2833 = vcvt.s32.f32 %v2817
    %v2834 = vcvt.s32.f32 %v2818
    %v2835 = vcvt.s32.f32 %v2819
    %v2836 = vcvt.s32.f32 %v2820
    %v2837 = vpack.c.bf16 %v2822, %v2821
    %v2838 = vpack.c.bf16 %v2824, %v2823
    %v2839 = vpack.c.bf16 %v2826, %v2825
    %v2840 = vpack.c.bf16 %v2828, %v2827
    %v2841 = vpack.c.bf16 %v2830, %v2829
    %v2842 = vpack.c.bf16 %v2832, %v2831
    %v2843 = vpack.c.bf16 %v2834, %v2833
    %v2844 = vpack.c.bf16 %v2836, %v2835
    %v2845 = vperm.slane %v2786, 0
    %vm2846 = vcmp.eq.s32.totalorder %v2845, %v49
    %vm2847 = vcmp.eq.s32.totalorder %v2845, %v50
    %vm2848 = vcmp.eq.s32.totalorder %v2845, %v51
    %vm2849 = vcmp.eq.s32.totalorder %v2845, %v52
    %vm2850 = vcmp.eq.s32.totalorder %v2845, %v53
    %vm2851 = vcmp.eq.s32.totalorder %v2845, %v54
    %vm2852 = vcmp.eq.s32.totalorder %v2845, %v55
    %vm2853 = vcmp.eq.s32.totalorder %v2845, %v56
    %vm2854 = vcmp.eq.s32.totalorder %v2845, %v57
    %vm2855 = vcmp.eq.s32.totalorder %v2845, %v58
    %vm2856 = vcmp.eq.s32.totalorder %v2845, %v59
    %vm2857 = vcmp.eq.s32.totalorder %v2845, %v60
    %vm2858 = vcmp.eq.s32.totalorder %v2845, %v61
    %vm2859 = vcmp.eq.s32.totalorder %v2845, %v62
    %vm2860 = vcmp.eq.s32.totalorder %v2845, %v63
    %vm2861 = vcmp.eq.s32.totalorder %v2845, %v64
    %v2862 = vperm.slane %v2787, 0
    %v2863 = vsel %vm2846, %v2862, 0.0
    %v2864 = vsel %vm2847, %v2862, 0.0
    %v2865 = vsel %vm2848, %v2862, 0.0
    %v2866 = vsel %vm2849, %v2862, 0.0
    %v2867 = vsel %vm2850, %v2862, 0.0
    %v2868 = vsel %vm2851, %v2862, 0.0
    %v2869 = vsel %vm2852, %v2862, 0.0
    %v2870 = vsel %vm2853, %v2862, 0.0
    %v2871 = vsel %vm2854, %v2862, 0.0
    %v2872 = vsel %vm2855, %v2862, 0.0
    %v2873 = vsel %vm2856, %v2862, 0.0
    %v2874 = vsel %vm2857, %v2862, 0.0
    %v2875 = vsel %vm2858, %v2862, 0.0
    %v2876 = vsel %vm2859, %v2862, 0.0
    %v2877 = vsel %vm2860, %v2862, 0.0
    %v2878 = vsel %vm2861, %v2862, 0.0
    %v2879 = vpack.c.bf16 %v2863, %v2863
    %v2880 = vpack.c.bf16 %v2864, %v2864
    %v2881 = vpack.c.bf16 %v2865, %v2865
    %v2882 = vpack.c.bf16 %v2866, %v2866
    %v2883 = vpack.c.bf16 %v2867, %v2867
    %v2884 = vpack.c.bf16 %v2868, %v2868
    %v2885 = vpack.c.bf16 %v2869, %v2869
    %v2886 = vpack.c.bf16 %v2870, %v2870
    %v2887 = vpack.c.bf16 %v2871, %v2871
    %v2888 = vpack.c.bf16 %v2872, %v2872
    %v2889 = vpack.c.bf16 %v2873, %v2873
    %v2890 = vpack.c.bf16 %v2874, %v2874
    %v2891 = vpack.c.bf16 %v2875, %v2875
    %v2892 = vpack.c.bf16 %v2876, %v2876
    %v2893 = vpack.c.bf16 %v2877, %v2877
    %v2894 = vpack.c.bf16 %v2878, %v2878
    %v2895 = vunpack.c.l.bf16 %v2879
    %v2896 = vunpack.c.l.bf16 %v2880
    %v2897 = vunpack.c.l.bf16 %v2881
    %v2898 = vunpack.c.l.bf16 %v2882
    %v2899 = vunpack.c.l.bf16 %v2883
    %v2900 = vunpack.c.l.bf16 %v2884
    %v2901 = vunpack.c.l.bf16 %v2885
    %v2902 = vunpack.c.l.bf16 %v2886
    %v2903 = vunpack.c.l.bf16 %v2887
    %v2904 = vunpack.c.l.bf16 %v2888
    %v2905 = vunpack.c.l.bf16 %v2889
    %v2906 = vunpack.c.l.bf16 %v2890
    %v2907 = vunpack.c.l.bf16 %v2891
    %v2908 = vunpack.c.l.bf16 %v2892
    %v2909 = vunpack.c.l.bf16 %v2893
    %v2910 = vunpack.c.l.bf16 %v2894
    %v2911 = vsub.f32 %v2863, %v2895
    %v2912 = vsub.f32 %v2864, %v2896
    %v2913 = vsub.f32 %v2865, %v2897
    %v2914 = vsub.f32 %v2866, %v2898
    %v2915 = vsub.f32 %v2867, %v2899
    %v2916 = vsub.f32 %v2868, %v2900
    %v2917 = vsub.f32 %v2869, %v2901
    %v2918 = vsub.f32 %v2870, %v2902
    %v2919 = vsub.f32 %v2871, %v2903
    %v2920 = vsub.f32 %v2872, %v2904
    %v2921 = vsub.f32 %v2873, %v2905
    %v2922 = vsub.f32 %v2874, %v2906
    %v2923 = vsub.f32 %v2875, %v2907
    %v2924 = vsub.f32 %v2876, %v2908
    %v2925 = vsub.f32 %v2877, %v2909
    %v2926 = vsub.f32 %v2878, %v2910
    %v2927 = vpack.c.bf16 %v2912, %v2911
    %v2928 = vpack.c.bf16 %v2914, %v2913
    %v2929 = vpack.c.bf16 %v2916, %v2915
    %v2930 = vpack.c.bf16 %v2918, %v2917
    %v2931 = vpack.c.bf16 %v2920, %v2919
    %v2932 = vpack.c.bf16 %v2922, %v2921
    %v2933 = vpack.c.bf16 %v2924, %v2923
    %v2934 = vpack.c.bf16 %v2926, %v2925
    %2935 = vmatpush.bf16.xpose.msra.mxu0 %v2844
    %2936 = vmatpush.bf16.xpose.msra.mxu0 %v2843
    %2937 = vmatpush.bf16.xpose.msra.mxu0 %v2842
    %2938 = vmatpush.bf16.xpose.msra.mxu0 %v2841
    %2939 = vmatpush.bf16.xpose.msra.mxu0 %v2840
    %2940 = vmatpush.bf16.xpose.msra.mxu0 %v2839
    %2941 = vmatpush.bf16.xpose.msra.mxu0 %v2838
    %2942 = vmatpush.bf16.xpose.msra.mxu0 %v2837
    %2943 = vmatmul.bf16.gmra.mxu0 %v2927
    %v2944 = vpop.f32.mrf.mxu0
    %v2945 = vadd.f32 0.0, %v2944
    %v2946 = vpop.f32.mrf.mxu0
    %v2947 = vadd.f32 0.0, %v2946
    %2948 = vmatmul.bf16.gmra.mxu0 %v2928
    %v2949 = vpop.f32.mrf.mxu0
    %v2950 = vadd.f32 0.0, %v2949
    %v2951 = vpop.f32.mrf.mxu0
    %v2952 = vadd.f32 0.0, %v2951
    %2953 = vmatmul.bf16.gmra.mxu0 %v2929
    %v2954 = vpop.f32.mrf.mxu0
    %v2955 = vadd.f32 0.0, %v2954
    %v2956 = vpop.f32.mrf.mxu0
    %v2957 = vadd.f32 0.0, %v2956
    %2958 = vmatmul.bf16.gmra.mxu0 %v2930
    %v2959 = vpop.f32.mrf.mxu0
    %v2960 = vadd.f32 0.0, %v2959
    %v2961 = vpop.f32.mrf.mxu0
    %v2962 = vadd.f32 0.0, %v2961
    %2963 = vmatmul.bf16.gmra.mxu0 %v2931
    %v2964 = vpop.f32.mrf.mxu0
    %v2965 = vadd.f32 0.0, %v2964
    %v2966 = vpop.f32.mrf.mxu0
    %v2967 = vadd.f32 0.0, %v2966
    %2968 = vmatmul.bf16.gmra.mxu0 %v2932
    %v2969 = vpop.f32.mrf.mxu0
    %v2970 = vadd.f32 0.0, %v2969
    %v2971 = vpop.f32.mrf.mxu0
    %v2972 = vadd.f32 0.0, %v2971
    %2973 = vmatmul.bf16.gmra.mxu0 %v2933
    %v2974 = vpop.f32.mrf.mxu0
    %v2975 = vadd.f32 0.0, %v2974
    %v2976 = vpop.f32.mrf.mxu0
    %v2977 = vadd.f32 0.0, %v2976
    %2978 = vmatmul.bf16.gmra.mxu0 %v2934
    %v2979 = vpop.f32.mrf.mxu0
    %v2980 = vadd.f32 0.0, %v2979
    %v2981 = vpop.f32.mrf.mxu0
    %v2982 = vadd.f32 0.0, %v2981
    %2983 = vdwg.mxu0
    %v3000 = vunpack.c.l.b16 %v2879
    %v3001 = vunpack.c.l.b16 %v2880
    %v3002 = vunpack.c.l.b16 %v2881
    %v3003 = vunpack.c.l.b16 %v2882
    %v3004 = vunpack.c.l.b16 %v2883
    %v3005 = vunpack.c.l.b16 %v2884
    %v3006 = vunpack.c.l.b16 %v2885
    %v3007 = vunpack.c.l.b16 %v2886
    %v3008 = vunpack.c.l.b16 %v2887
    %v3009 = vunpack.c.l.b16 %v2888
    %v3010 = vunpack.c.l.b16 %v2889
    %v3011 = vunpack.c.l.b16 %v2890
    %v3012 = vunpack.c.l.b16 %v2891
    %v3013 = vunpack.c.l.b16 %v2892
    %v3014 = vunpack.c.l.b16 %v2893
    %v3015 = vunpack.c.l.b16 %v2894
    %v3016 = vpack.c.b16 %v3001, %v3000
    %v3017 = vpack.c.b16 %v3003, %v3002
    %v3018 = vpack.c.b16 %v3005, %v3004
    %v3019 = vpack.c.b16 %v3007, %v3006
    %v3020 = vpack.c.b16 %v3009, %v3008
    %v3021 = vpack.c.b16 %v3011, %v3010
    %v3022 = vpack.c.b16 %v3013, %v3012
    %v3023 = vpack.c.b16 %v3015, %v3014
    %3032 = vmatpush.bf16.xpose.msra.mxu0 %v2844
    %3033 = vmatpush.bf16.xpose.msra.mxu0 %v2843
    %3034 = vmatpush.bf16.xpose.msra.mxu0 %v2842
    %3035 = vmatpush.bf16.xpose.msra.mxu0 %v2841
    %3036 = vmatpush.bf16.xpose.msra.mxu0 %v2840
    %3037 = vmatpush.bf16.xpose.msra.mxu0 %v2839
    %3038 = vmatpush.bf16.xpose.msra.mxu0 %v2838
    %3039 = vmatpush.bf16.xpose.msra.mxu0 %v2837
    %3040 = vmatmul.bf16.gmra.mxu0 %v3016
    %v3041 = vpop.f32.mrf.mxu0
    %v3042 = vadd.f32 %v2945, %v3041
    %v3043 = vpop.f32.mrf.mxu0
    %v3044 = vadd.f32 %v2947, %v3043
    %3045 = vmatmul.bf16.gmra.mxu0 %v3017
    %v3046 = vpop.f32.mrf.mxu0
    %v3047 = vadd.f32 %v2950, %v3046
    %v3048 = vpop.f32.mrf.mxu0
    %v3049 = vadd.f32 %v2952, %v3048
    %3050 = vmatmul.bf16.gmra.mxu0 %v3018
    %v3051 = vpop.f32.mrf.mxu0
    %v3052 = vadd.f32 %v2955, %v3051
    %v3053 = vpop.f32.mrf.mxu0
    %v3054 = vadd.f32 %v2957, %v3053
    %3055 = vmatmul.bf16.gmra.mxu0 %v3019
    %v3056 = vpop.f32.mrf.mxu0
    %v3057 = vadd.f32 %v2960, %v3056
    %v3058 = vpop.f32.mrf.mxu0
    %v3059 = vadd.f32 %v2962, %v3058
    %3060 = vmatmul.bf16.gmra.mxu0 %v3020
    %v3061 = vpop.f32.mrf.mxu0
    %v3062 = vadd.f32 %v2965, %v3061
    %v3063 = vpop.f32.mrf.mxu0
    %v3064 = vadd.f32 %v2967, %v3063
    %3065 = vmatmul.bf16.gmra.mxu0 %v3021
    %v3066 = vpop.f32.mrf.mxu0
    %v3067 = vadd.f32 %v2970, %v3066
    %v3068 = vpop.f32.mrf.mxu0
    %v3069 = vadd.f32 %v2972, %v3068
    %3070 = vmatmul.bf16.gmra.mxu0 %v3022
    %v3071 = vpop.f32.mrf.mxu0
    %v3072 = vadd.f32 %v2975, %v3071
    %v3073 = vpop.f32.mrf.mxu0
    %v3074 = vadd.f32 %v2977, %v3073
    %3075 = vmatmul.bf16.gmra.mxu0 %v3023
    %v3076 = vpop.f32.mrf.mxu0
    %v3077 = vadd.f32 %v2980, %v3076
    %v3078 = vpop.f32.mrf.mxu0
    %v3079 = vadd.f32 %v2982, %v3078
    %3080 = vdwg.mxu0
    %v3081 = vsel %vm65, %v3042, 0.0
    %v3082 = vsel %vm66, %v3044, 0.0
    %v3083 = vsel %vm67, %v3047, 0.0
    %v3084 = vsel %vm68, %v3049, 0.0
    %v3085 = vsel %vm69, %v3052, 0.0
    %v3086 = vsel %vm70, %v3054, 0.0
    %v3087 = vsel %vm71, %v3057, 0.0
    %v3088 = vsel %vm72, %v3059, 0.0
    %v3089 = vsel %vm73, %v3062, 0.0
    %v3090 = vsel %vm74, %v3064, 0.0
    %v3091 = vsel %vm75, %v3067, 0.0
    %v3092 = vsel %vm76, %v3069, 0.0
    %v3093 = vsel %vm77, %v3072, 0.0
    %v3094 = vsel %vm78, %v3074, 0.0
    %v3095 = vsel %vm79, %v3077, 0.0
    %v3096 = vsel %vm80, %v3079, 0.0
    %3097 = vadd.xlane.f32.xlu0 %v3081
    %v3098 = vpop.xlane.xlu0 %3097
    %3099 = vadd.xlane.f32.xlu0 %v3082
    %v3100 = vpop.xlane.xlu0 %3099
    %3101 = vadd.xlane.f32.xlu0 %v3083
    %v3102 = vpop.xlane.xlu0 %3101
    %3103 = vadd.xlane.f32.xlu0 %v3084
    %v3104 = vpop.xlane.xlu0 %3103
    %3105 = vadd.xlane.f32.xlu0 %v3085
    %v3106 = vpop.xlane.xlu0 %3105
    %3107 = vadd.xlane.f32.xlu0 %v3086
    %v3108 = vpop.xlane.xlu0 %3107
    %3109 = vadd.xlane.f32.xlu0 %v3087
    %v3110 = vpop.xlane.xlu0 %3109
    %3111 = vadd.xlane.f32.xlu0 %v3088
    %v3112 = vpop.xlane.xlu0 %3111
    %3113 = vadd.xlane.f32.xlu0 %v3089
    %v3114 = vpop.xlane.xlu0 %3113
    %3115 = vadd.xlane.f32.xlu0 %v3090
    %v3116 = vpop.xlane.xlu0 %3115
    %3117 = vadd.xlane.f32.xlu0 %v3091
    %v3118 = vpop.xlane.xlu0 %3117
    %3119 = vadd.xlane.f32.xlu0 %v3092
    %v3120 = vpop.xlane.xlu0 %3119
    %3121 = vadd.xlane.f32.xlu0 %v3093
    %v3122 = vpop.xlane.xlu0 %3121
    %3123 = vadd.xlane.f32.xlu0 %v3094
    %v3124 = vpop.xlane.xlu0 %3123
    %3125 = vadd.xlane.f32.xlu0 %v3095
    %v3126 = vpop.xlane.xlu0 %3125
    %3127 = vadd.xlane.f32.xlu0 %v3096
    %v3128 = vpop.xlane.xlu0 %3127
    %v3129 = vsub.f32 0.0, %v3098
    %v3130 = vsub.f32 0.0, %v3100
    %v3131 = vsub.f32 0.0, %v3102
    %v3132 = vsub.f32 0.0, %v3104
    %v3133 = vsub.f32 0.0, %v3106
    %v3134 = vsub.f32 0.0, %v3108
    %v3135 = vsub.f32 0.0, %v3110
    %v3136 = vsub.f32 0.0, %v3112
    %v3137 = vsub.f32 0.0, %v3114
    %v3138 = vsub.f32 0.0, %v3116
    %v3139 = vsub.f32 0.0, %v3118
    %v3140 = vsub.f32 0.0, %v3120
    %v3141 = vsub.f32 0.0, %v3122
    %v3142 = vsub.f32 0.0, %v3124
    %v3143 = vsub.f32 0.0, %v3126
    %v3144 = vsub.f32 0.0, %v3128
    %v3145 = vsel %vm81, %v3129, %v3042
    %v3146 = vsel %vm81, %v3130, %v3044
    %v3147 = vsel %vm81, %v3131, %v3047
    %v3148 = vsel %vm81, %v3132, %v3049
    %v3149 = vsel %vm81, %v3133, %v3052
    %v3150 = vsel %vm81, %v3134, %v3054
    %v3151 = vsel %vm81, %v3135, %v3057
    %v3152 = vsel %vm81, %v3136, %v3059
    %v3153 = vsel %vm81, %v3137, %v3062
    %v3154 = vsel %vm81, %v3138, %v3064
    %v3155 = vsel %vm81, %v3139, %v3067
    %v3156 = vsel %vm81, %v3140, %v3069
    %v3157 = vsel %vm81, %v3141, %v3072
    %v3158 = vsel %vm81, %v3142, %v3074
    %v3159 = vsel %vm81, %v3143, %v3077
    %v3160 = vsel %vm81, %v3144, %v3079
    %s3161 = scalar_lea.vmem %s3, 48
    %v3162 = vld [vmem:[%s3161] sm:$0xff]
    %s3163 = scalar_lea.vmem %s4, 48
    %v3164 = vld [vmem:[%s3163] sm:$0xff]
    %v3165 = vadd.s32 %v3164, 1
    %3166 = vset.pattern.permute.xlu0 0
    %3167 = vperm.xlu0 %3166, %v3165
    %v3168 = vpop.permute.xlu0 %3167
    %vm3169 = vcmp.eq.s32.totalorder %v3168, %v31
    %v3170 = vsel %vm3169, 1, 0
    %v3171 = vcvt.s32.f32 %v3170
    %v3172 = vadd.s32 %v3162, 1
    %3173 = vset.pattern.permute.xlu0 0
    %3174 = vperm.xlu0 %3173, %v3172
    %v3175 = vpop.permute.xlu0 %3174
    %vm3176 = vcmp.eq.s32.totalorder %v3175, %v31
    %v3177 = vsel %vm3176, 1, 0
    %v3178 = vcvt.s32.f32 %v3177
    %3179 = vmatpush.msra.mxu0 %v3160
    %3180 = vmatpush.msra.mxu0 %v3159
    %3181 = vmatpush.msra.mxu0 %v3158
    %3182 = vmatpush.msra.mxu0 %v3157
    %3183 = vmatpush.msra.mxu0 %v3156
    %3184 = vmatpush.msra.mxu0 %v3155
    %3185 = vmatpush.msra.mxu0 %v3154
    %3186 = vmatpush.msra.mxu0 %v3153
    %3187 = vmatpush.msra.mxu0 %v3152
    %3188 = vmatpush.msra.mxu0 %v3151
    %3189 = vmatpush.msra.mxu0 %v3150
    %3190 = vmatpush.msra.mxu0 %v3149
    %3191 = vmatpush.msra.mxu0 %v3148
    %3192 = vmatpush.msra.mxu0 %v3147
    %3193 = vmatpush.msra.mxu0 %v3146
    %3194 = vmatpush.msra.mxu0 %v3145
    %3195 = vmatmul.f32.gmra.mxu0 %v3171
    %v3196 = vpop.f32.mrf.mxu0
    %v3197 = vadd.f32 0.0, %v3196
    %3198 = vdwg.mxu0
    %v3199 = vmul.f32 %v3197, %v3178
    %3200 = vadd.xlane.f32.xlu0 %v3199
    %v3201 = vpop.xlane.xlu0 %3200
    %s3202 = scalar_lea.vmem %s6, 48
    %v3203 = vld [vmem:[%s3202] sm:$0xff]
    %s3204 = scalar_lea.vmem %s5, 48
    %v3205 = vld [vmem:[%s3204] sm:$0xff]
    %v3206 = vmul.f32 %v3205, 2.0
    %v3207 = vsub.f32 %v3206, 1.0
    %v3208 = vmul.f32 %v3203, %v3207
    %v3209 = vmul.f32 %v3201, %v3208
    %v3210 = vsel %vm503, %v3209, 0.0
    %v3211 = vrot.slane %v3210, 4
    %v3212 = vadd.f32 %v3210, %v3211
    %v3213 = vrot.slane %v3212, 2
    %v3214 = vadd.f32 %v3212, %v3213
    %v3215 = vrot.slane %v3214, 1
    %v3216 = vadd.f32 %v3214, %v3215
    %vm3217 = vcmp.eq.s32.totalorder %v33, 6
    %v3218 = vsel %vm3217, %v3216, 0.0
    %v3219 = vadd.f32 %v2768, %v3218
    %3220 = vst [vmem:[#allocation2 + $0x300] sm:$0xff] %v3145
    %3221 = vst [vmem:[#allocation2 + $0x308] sm:$0xff] %v3146
    %3222 = vst [vmem:[#allocation2 + $0x310] sm:$0xff] %v3147
    %3223 = vst [vmem:[#allocation2 + $0x318] sm:$0xff] %v3148
    %3224 = vst [vmem:[#allocation2 + $0x320] sm:$0xff] %v3149
    %3225 = vst [vmem:[#allocation2 + $0x328] sm:$0xff] %v3150
    %3226 = vst [vmem:[#allocation2 + $0x330] sm:$0xff] %v3151
    %3227 = vst [vmem:[#allocation2 + $0x338] sm:$0xff] %v3152
    %3228 = vst [vmem:[#allocation2 + $0x340] sm:$0xff] %v3153
    %3229 = vst [vmem:[#allocation2 + $0x348] sm:$0xff] %v3154
    %3230 = vst [vmem:[#allocation2 + $0x350] sm:$0xff] %v3155
    %3231 = vst [vmem:[#allocation2 + $0x358] sm:$0xff] %v3156
    %3232 = vst [vmem:[#allocation2 + $0x360] sm:$0xff] %v3157
    %3233 = vst [vmem:[#allocation2 + $0x368] sm:$0xff] %v3158
    %3234 = vst [vmem:[#allocation2 + $0x370] sm:$0xff] %v3159
    %3235 = vst [vmem:[#allocation2 + $0x378] sm:$0xff] %v3160
    %v3236 = vld [vmem:[%s0 + $0x7] sm:$0x1]
    %v3237 = vld [vmem:[%s1 + $0x7] sm:$0x1]
    %v3238 = vld [vmem:[%s2 + $0x7] sm:$0x1]
    %v3239 = vperm.slane %v3236, 0
    %vm3240 = vcmp.eq.s32.totalorder %v3239, %v49
    %vm3241 = vcmp.eq.s32.totalorder %v3239, %v50
    %vm3242 = vcmp.eq.s32.totalorder %v3239, %v51
    %vm3243 = vcmp.eq.s32.totalorder %v3239, %v52
    %vm3244 = vcmp.eq.s32.totalorder %v3239, %v53
    %vm3245 = vcmp.eq.s32.totalorder %v3239, %v54
    %vm3246 = vcmp.eq.s32.totalorder %v3239, %v55
    %vm3247 = vcmp.eq.s32.totalorder %v3239, %v56
    %vm3248 = vcmp.eq.s32.totalorder %v3239, %v57
    %vm3249 = vcmp.eq.s32.totalorder %v3239, %v58
    %vm3250 = vcmp.eq.s32.totalorder %v3239, %v59
    %vm3251 = vcmp.eq.s32.totalorder %v3239, %v60
    %vm3252 = vcmp.eq.s32.totalorder %v3239, %v61
    %vm3253 = vcmp.eq.s32.totalorder %v3239, %v62
    %vm3254 = vcmp.eq.s32.totalorder %v3239, %v63
    %vm3255 = vcmp.eq.s32.totalorder %v3239, %v64
    %v3256 = vsel %vm3240, 1, 0
    %v3257 = vsel %vm3241, 1, 0
    %v3258 = vsel %vm3242, 1, 0
    %v3259 = vsel %vm3243, 1, 0
    %v3260 = vsel %vm3244, 1, 0
    %v3261 = vsel %vm3245, 1, 0
    %v3262 = vsel %vm3246, 1, 0
    %v3263 = vsel %vm3247, 1, 0
    %v3264 = vsel %vm3248, 1, 0
    %v3265 = vsel %vm3249, 1, 0
    %v3266 = vsel %vm3250, 1, 0
    %v3267 = vsel %vm3251, 1, 0
    %v3268 = vsel %vm3252, 1, 0
    %v3269 = vsel %vm3253, 1, 0
    %v3270 = vsel %vm3254, 1, 0
    %v3271 = vsel %vm3255, 1, 0
    %v3272 = vcvt.s32.f32 %v3256
    %v3273 = vcvt.s32.f32 %v3257
    %v3274 = vcvt.s32.f32 %v3258
    %v3275 = vcvt.s32.f32 %v3259
    %v3276 = vcvt.s32.f32 %v3260
    %v3277 = vcvt.s32.f32 %v3261
    %v3278 = vcvt.s32.f32 %v3262
    %v3279 = vcvt.s32.f32 %v3263
    %v3280 = vcvt.s32.f32 %v3264
    %v3281 = vcvt.s32.f32 %v3265
    %v3282 = vcvt.s32.f32 %v3266
    %v3283 = vcvt.s32.f32 %v3267
    %v3284 = vcvt.s32.f32 %v3268
    %v3285 = vcvt.s32.f32 %v3269
    %v3286 = vcvt.s32.f32 %v3270
    %v3287 = vcvt.s32.f32 %v3271
    %v3288 = vpack.c.bf16 %v3273, %v3272
    %v3289 = vpack.c.bf16 %v3275, %v3274
    %v3290 = vpack.c.bf16 %v3277, %v3276
    %v3291 = vpack.c.bf16 %v3279, %v3278
    %v3292 = vpack.c.bf16 %v3281, %v3280
    %v3293 = vpack.c.bf16 %v3283, %v3282
    %v3294 = vpack.c.bf16 %v3285, %v3284
    %v3295 = vpack.c.bf16 %v3287, %v3286
    %v3296 = vperm.slane %v3237, 0
    %vm3297 = vcmp.eq.s32.totalorder %v3296, %v49
    %vm3298 = vcmp.eq.s32.totalorder %v3296, %v50
    %vm3299 = vcmp.eq.s32.totalorder %v3296, %v51
    %vm3300 = vcmp.eq.s32.totalorder %v3296, %v52
    %vm3301 = vcmp.eq.s32.totalorder %v3296, %v53
    %vm3302 = vcmp.eq.s32.totalorder %v3296, %v54
    %vm3303 = vcmp.eq.s32.totalorder %v3296, %v55
    %vm3304 = vcmp.eq.s32.totalorder %v3296, %v56
    %vm3305 = vcmp.eq.s32.totalorder %v3296, %v57
    %vm3306 = vcmp.eq.s32.totalorder %v3296, %v58
    %vm3307 = vcmp.eq.s32.totalorder %v3296, %v59
    %vm3308 = vcmp.eq.s32.totalorder %v3296, %v60
    %vm3309 = vcmp.eq.s32.totalorder %v3296, %v61
    %vm3310 = vcmp.eq.s32.totalorder %v3296, %v62
    %vm3311 = vcmp.eq.s32.totalorder %v3296, %v63
    %vm3312 = vcmp.eq.s32.totalorder %v3296, %v64
    %v3313 = vperm.slane %v3238, 0
    %v3314 = vsel %vm3297, %v3313, 0.0
    %v3315 = vsel %vm3298, %v3313, 0.0
    %v3316 = vsel %vm3299, %v3313, 0.0
    %v3317 = vsel %vm3300, %v3313, 0.0
    %v3318 = vsel %vm3301, %v3313, 0.0
    %v3319 = vsel %vm3302, %v3313, 0.0
    %v3320 = vsel %vm3303, %v3313, 0.0
    %v3321 = vsel %vm3304, %v3313, 0.0
    %v3322 = vsel %vm3305, %v3313, 0.0
    %v3323 = vsel %vm3306, %v3313, 0.0
    %v3324 = vsel %vm3307, %v3313, 0.0
    %v3325 = vsel %vm3308, %v3313, 0.0
    %v3326 = vsel %vm3309, %v3313, 0.0
    %v3327 = vsel %vm3310, %v3313, 0.0
    %v3328 = vsel %vm3311, %v3313, 0.0
    %v3329 = vsel %vm3312, %v3313, 0.0
    %v3330 = vpack.c.bf16 %v3314, %v3314
    %v3331 = vpack.c.bf16 %v3315, %v3315
    %v3332 = vpack.c.bf16 %v3316, %v3316
    %v3333 = vpack.c.bf16 %v3317, %v3317
    %v3334 = vpack.c.bf16 %v3318, %v3318
    %v3335 = vpack.c.bf16 %v3319, %v3319
    %v3336 = vpack.c.bf16 %v3320, %v3320
    %v3337 = vpack.c.bf16 %v3321, %v3321
    %v3338 = vpack.c.bf16 %v3322, %v3322
    %v3339 = vpack.c.bf16 %v3323, %v3323
    %v3340 = vpack.c.bf16 %v3324, %v3324
    %v3341 = vpack.c.bf16 %v3325, %v3325
    %v3342 = vpack.c.bf16 %v3326, %v3326
    %v3343 = vpack.c.bf16 %v3327, %v3327
    %v3344 = vpack.c.bf16 %v3328, %v3328
    %v3345 = vpack.c.bf16 %v3329, %v3329
    %v3346 = vunpack.c.l.bf16 %v3330
    %v3347 = vunpack.c.l.bf16 %v3331
    %v3348 = vunpack.c.l.bf16 %v3332
    %v3349 = vunpack.c.l.bf16 %v3333
    %v3350 = vunpack.c.l.bf16 %v3334
    %v3351 = vunpack.c.l.bf16 %v3335
    %v3352 = vunpack.c.l.bf16 %v3336
    %v3353 = vunpack.c.l.bf16 %v3337
    %v3354 = vunpack.c.l.bf16 %v3338
    %v3355 = vunpack.c.l.bf16 %v3339
    %v3356 = vunpack.c.l.bf16 %v3340
    %v3357 = vunpack.c.l.bf16 %v3341
    %v3358 = vunpack.c.l.bf16 %v3342
    %v3359 = vunpack.c.l.bf16 %v3343
    %v3360 = vunpack.c.l.bf16 %v3344
    %v3361 = vunpack.c.l.bf16 %v3345
    %v3362 = vsub.f32 %v3314, %v3346
    %v3363 = vsub.f32 %v3315, %v3347
    %v3364 = vsub.f32 %v3316, %v3348
    %v3365 = vsub.f32 %v3317, %v3349
    %v3366 = vsub.f32 %v3318, %v3350
    %v3367 = vsub.f32 %v3319, %v3351
    %v3368 = vsub.f32 %v3320, %v3352
    %v3369 = vsub.f32 %v3321, %v3353
    %v3370 = vsub.f32 %v3322, %v3354
    %v3371 = vsub.f32 %v3323, %v3355
    %v3372 = vsub.f32 %v3324, %v3356
    %v3373 = vsub.f32 %v3325, %v3357
    %v3374 = vsub.f32 %v3326, %v3358
    %v3375 = vsub.f32 %v3327, %v3359
    %v3376 = vsub.f32 %v3328, %v3360
    %v3377 = vsub.f32 %v3329, %v3361
    %v3378 = vpack.c.bf16 %v3363, %v3362
    %v3379 = vpack.c.bf16 %v3365, %v3364
    %v3380 = vpack.c.bf16 %v3367, %v3366
    %v3381 = vpack.c.bf16 %v3369, %v3368
    %v3382 = vpack.c.bf16 %v3371, %v3370
    %v3383 = vpack.c.bf16 %v3373, %v3372
    %v3384 = vpack.c.bf16 %v3375, %v3374
    %v3385 = vpack.c.bf16 %v3377, %v3376
    %3386 = vmatpush.bf16.xpose.msra.mxu0 %v3295
    %3387 = vmatpush.bf16.xpose.msra.mxu0 %v3294
    %3388 = vmatpush.bf16.xpose.msra.mxu0 %v3293
    %3389 = vmatpush.bf16.xpose.msra.mxu0 %v3292
    %3390 = vmatpush.bf16.xpose.msra.mxu0 %v3291
    %3391 = vmatpush.bf16.xpose.msra.mxu0 %v3290
    %3392 = vmatpush.bf16.xpose.msra.mxu0 %v3289
    %3393 = vmatpush.bf16.xpose.msra.mxu0 %v3288
    %3394 = vmatmul.bf16.gmra.mxu0 %v3378
    %v3395 = vpop.f32.mrf.mxu0
    %v3396 = vadd.f32 0.0, %v3395
    %v3397 = vpop.f32.mrf.mxu0
    %v3398 = vadd.f32 0.0, %v3397
    %3399 = vmatmul.bf16.gmra.mxu0 %v3379
    %v3400 = vpop.f32.mrf.mxu0
    %v3401 = vadd.f32 0.0, %v3400
    %v3402 = vpop.f32.mrf.mxu0
    %v3403 = vadd.f32 0.0, %v3402
    %3404 = vmatmul.bf16.gmra.mxu0 %v3380
    %v3405 = vpop.f32.mrf.mxu0
    %v3406 = vadd.f32 0.0, %v3405
    %v3407 = vpop.f32.mrf.mxu0
    %v3408 = vadd.f32 0.0, %v3407
    %3409 = vmatmul.bf16.gmra.mxu0 %v3381
    %v3410 = vpop.f32.mrf.mxu0
    %v3411 = vadd.f32 0.0, %v3410
    %v3412 = vpop.f32.mrf.mxu0
    %v3413 = vadd.f32 0.0, %v3412
    %3414 = vmatmul.bf16.gmra.mxu0 %v3382
    %v3415 = vpop.f32.mrf.mxu0
    %v3416 = vadd.f32 0.0, %v3415
    %v3417 = vpop.f32.mrf.mxu0
    %v3418 = vadd.f32 0.0, %v3417
    %3419 = vmatmul.bf16.gmra.mxu0 %v3383
    %v3420 = vpop.f32.mrf.mxu0
    %v3421 = vadd.f32 0.0, %v3420
    %v3422 = vpop.f32.mrf.mxu0
    %v3423 = vadd.f32 0.0, %v3422
    %3424 = vmatmul.bf16.gmra.mxu0 %v3384
    %v3425 = vpop.f32.mrf.mxu0
    %v3426 = vadd.f32 0.0, %v3425
    %v3427 = vpop.f32.mrf.mxu0
    %v3428 = vadd.f32 0.0, %v3427
    %3429 = vmatmul.bf16.gmra.mxu0 %v3385
    %v3430 = vpop.f32.mrf.mxu0
    %v3431 = vadd.f32 0.0, %v3430
    %v3432 = vpop.f32.mrf.mxu0
    %v3433 = vadd.f32 0.0, %v3432
    %3434 = vdwg.mxu0
    %v3451 = vunpack.c.l.b16 %v3330
    %v3452 = vunpack.c.l.b16 %v3331
    %v3453 = vunpack.c.l.b16 %v3332
    %v3454 = vunpack.c.l.b16 %v3333
    %v3455 = vunpack.c.l.b16 %v3334
    %v3456 = vunpack.c.l.b16 %v3335
    %v3457 = vunpack.c.l.b16 %v3336
    %v3458 = vunpack.c.l.b16 %v3337
    %v3459 = vunpack.c.l.b16 %v3338
    %v3460 = vunpack.c.l.b16 %v3339
    %v3461 = vunpack.c.l.b16 %v3340
    %v3462 = vunpack.c.l.b16 %v3341
    %v3463 = vunpack.c.l.b16 %v3342
    %v3464 = vunpack.c.l.b16 %v3343
    %v3465 = vunpack.c.l.b16 %v3344
    %v3466 = vunpack.c.l.b16 %v3345
    %v3467 = vpack.c.b16 %v3452, %v3451
    %v3468 = vpack.c.b16 %v3454, %v3453
    %v3469 = vpack.c.b16 %v3456, %v3455
    %v3470 = vpack.c.b16 %v3458, %v3457
    %v3471 = vpack.c.b16 %v3460, %v3459
    %v3472 = vpack.c.b16 %v3462, %v3461
    %v3473 = vpack.c.b16 %v3464, %v3463
    %v3474 = vpack.c.b16 %v3466, %v3465
    %3483 = vmatpush.bf16.xpose.msra.mxu0 %v3295
    %3484 = vmatpush.bf16.xpose.msra.mxu0 %v3294
    %3485 = vmatpush.bf16.xpose.msra.mxu0 %v3293
    %3486 = vmatpush.bf16.xpose.msra.mxu0 %v3292
    %3487 = vmatpush.bf16.xpose.msra.mxu0 %v3291
    %3488 = vmatpush.bf16.xpose.msra.mxu0 %v3290
    %3489 = vmatpush.bf16.xpose.msra.mxu0 %v3289
    %3490 = vmatpush.bf16.xpose.msra.mxu0 %v3288
    %3491 = vmatmul.bf16.gmra.mxu0 %v3467
    %v3492 = vpop.f32.mrf.mxu0
    %v3493 = vadd.f32 %v3396, %v3492
    %v3494 = vpop.f32.mrf.mxu0
    %v3495 = vadd.f32 %v3398, %v3494
    %3496 = vmatmul.bf16.gmra.mxu0 %v3468
    %v3497 = vpop.f32.mrf.mxu0
    %v3498 = vadd.f32 %v3401, %v3497
    %v3499 = vpop.f32.mrf.mxu0
    %v3500 = vadd.f32 %v3403, %v3499
    %3501 = vmatmul.bf16.gmra.mxu0 %v3469
    %v3502 = vpop.f32.mrf.mxu0
    %v3503 = vadd.f32 %v3406, %v3502
    %v3504 = vpop.f32.mrf.mxu0
    %v3505 = vadd.f32 %v3408, %v3504
    %3506 = vmatmul.bf16.gmra.mxu0 %v3470
    %v3507 = vpop.f32.mrf.mxu0
    %v3508 = vadd.f32 %v3411, %v3507
    %v3509 = vpop.f32.mrf.mxu0
    %v3510 = vadd.f32 %v3413, %v3509
    %3511 = vmatmul.bf16.gmra.mxu0 %v3471
    %v3512 = vpop.f32.mrf.mxu0
    %v3513 = vadd.f32 %v3416, %v3512
    %v3514 = vpop.f32.mrf.mxu0
    %v3515 = vadd.f32 %v3418, %v3514
    %3516 = vmatmul.bf16.gmra.mxu0 %v3472
    %v3517 = vpop.f32.mrf.mxu0
    %v3518 = vadd.f32 %v3421, %v3517
    %v3519 = vpop.f32.mrf.mxu0
    %v3520 = vadd.f32 %v3423, %v3519
    %3521 = vmatmul.bf16.gmra.mxu0 %v3473
    %v3522 = vpop.f32.mrf.mxu0
    %v3523 = vadd.f32 %v3426, %v3522
    %v3524 = vpop.f32.mrf.mxu0
    %v3525 = vadd.f32 %v3428, %v3524
    %3526 = vmatmul.bf16.gmra.mxu0 %v3474
    %v3527 = vpop.f32.mrf.mxu0
    %v3528 = vadd.f32 %v3431, %v3527
    %v3529 = vpop.f32.mrf.mxu0
    %v3530 = vadd.f32 %v3433, %v3529
    %3531 = vdwg.mxu0
    %v3532 = vsel %vm65, %v3493, 0.0
    %v3533 = vsel %vm66, %v3495, 0.0
    %v3534 = vsel %vm67, %v3498, 0.0
    %v3535 = vsel %vm68, %v3500, 0.0
    %v3536 = vsel %vm69, %v3503, 0.0
    %v3537 = vsel %vm70, %v3505, 0.0
    %v3538 = vsel %vm71, %v3508, 0.0
    %v3539 = vsel %vm72, %v3510, 0.0
    %v3540 = vsel %vm73, %v3513, 0.0
    %v3541 = vsel %vm74, %v3515, 0.0
    %v3542 = vsel %vm75, %v3518, 0.0
    %v3543 = vsel %vm76, %v3520, 0.0
    %v3544 = vsel %vm77, %v3523, 0.0
    %v3545 = vsel %vm78, %v3525, 0.0
    %v3546 = vsel %vm79, %v3528, 0.0
    %v3547 = vsel %vm80, %v3530, 0.0
    %3548 = vadd.xlane.f32.xlu0 %v3532
    %v3549 = vpop.xlane.xlu0 %3548
    %3550 = vadd.xlane.f32.xlu0 %v3533
    %v3551 = vpop.xlane.xlu0 %3550
    %3552 = vadd.xlane.f32.xlu0 %v3534
    %v3553 = vpop.xlane.xlu0 %3552
    %3554 = vadd.xlane.f32.xlu0 %v3535
    %v3555 = vpop.xlane.xlu0 %3554
    %3556 = vadd.xlane.f32.xlu0 %v3536
    %v3557 = vpop.xlane.xlu0 %3556
    %3558 = vadd.xlane.f32.xlu0 %v3537
    %v3559 = vpop.xlane.xlu0 %3558
    %3560 = vadd.xlane.f32.xlu0 %v3538
    %v3561 = vpop.xlane.xlu0 %3560
    %3562 = vadd.xlane.f32.xlu0 %v3539
    %v3563 = vpop.xlane.xlu0 %3562
    %3564 = vadd.xlane.f32.xlu0 %v3540
    %v3565 = vpop.xlane.xlu0 %3564
    %3566 = vadd.xlane.f32.xlu0 %v3541
    %v3567 = vpop.xlane.xlu0 %3566
    %3568 = vadd.xlane.f32.xlu0 %v3542
    %v3569 = vpop.xlane.xlu0 %3568
    %3570 = vadd.xlane.f32.xlu0 %v3543
    %v3571 = vpop.xlane.xlu0 %3570
    %3572 = vadd.xlane.f32.xlu0 %v3544
    %v3573 = vpop.xlane.xlu0 %3572
    %3574 = vadd.xlane.f32.xlu0 %v3545
    %v3575 = vpop.xlane.xlu0 %3574
    %3576 = vadd.xlane.f32.xlu0 %v3546
    %v3577 = vpop.xlane.xlu0 %3576
    %3578 = vadd.xlane.f32.xlu0 %v3547
    %v3579 = vpop.xlane.xlu0 %3578
    %v3580 = vsub.f32 0.0, %v3549
    %v3581 = vsub.f32 0.0, %v3551
    %v3582 = vsub.f32 0.0, %v3553
    %v3583 = vsub.f32 0.0, %v3555
    %v3584 = vsub.f32 0.0, %v3557
    %v3585 = vsub.f32 0.0, %v3559
    %v3586 = vsub.f32 0.0, %v3561
    %v3587 = vsub.f32 0.0, %v3563
    %v3588 = vsub.f32 0.0, %v3565
    %v3589 = vsub.f32 0.0, %v3567
    %v3590 = vsub.f32 0.0, %v3569
    %v3591 = vsub.f32 0.0, %v3571
    %v3592 = vsub.f32 0.0, %v3573
    %v3593 = vsub.f32 0.0, %v3575
    %v3594 = vsub.f32 0.0, %v3577
    %v3595 = vsub.f32 0.0, %v3579
    %v3596 = vsel %vm81, %v3580, %v3493
    %v3597 = vsel %vm81, %v3581, %v3495
    %v3598 = vsel %vm81, %v3582, %v3498
    %v3599 = vsel %vm81, %v3583, %v3500
    %v3600 = vsel %vm81, %v3584, %v3503
    %v3601 = vsel %vm81, %v3585, %v3505
    %v3602 = vsel %vm81, %v3586, %v3508
    %v3603 = vsel %vm81, %v3587, %v3510
    %v3604 = vsel %vm81, %v3588, %v3513
    %v3605 = vsel %vm81, %v3589, %v3515
    %v3606 = vsel %vm81, %v3590, %v3518
    %v3607 = vsel %vm81, %v3591, %v3520
    %v3608 = vsel %vm81, %v3592, %v3523
    %v3609 = vsel %vm81, %v3593, %v3525
    %v3610 = vsel %vm81, %v3594, %v3528
    %v3611 = vsel %vm81, %v3595, %v3530
    %s3612 = scalar_lea.vmem %s3, 56
    %v3613 = vld [vmem:[%s3612] sm:$0xff]
    %s3614 = scalar_lea.vmem %s4, 56
    %v3615 = vld [vmem:[%s3614] sm:$0xff]
    %v3616 = vadd.s32 %v3615, 1
    %3617 = vset.pattern.permute.xlu0 0
    %3618 = vperm.xlu0 %3617, %v3616
    %v3619 = vpop.permute.xlu0 %3618
    %vm3620 = vcmp.eq.s32.totalorder %v3619, %v31
    %v3621 = vsel %vm3620, 1, 0
    %v3622 = vcvt.s32.f32 %v3621
    %v3623 = vadd.s32 %v3613, 1
    %3624 = vset.pattern.permute.xlu0 0
    %3625 = vperm.xlu0 %3624, %v3623
    %v3626 = vpop.permute.xlu0 %3625
    %vm3627 = vcmp.eq.s32.totalorder %v3626, %v31
    %v3628 = vsel %vm3627, 1, 0
    %v3629 = vcvt.s32.f32 %v3628
    %3630 = vmatpush.msra.mxu0 %v3611
    %3631 = vmatpush.msra.mxu0 %v3610
    %3632 = vmatpush.msra.mxu0 %v3609
    %3633 = vmatpush.msra.mxu0 %v3608
    %3634 = vmatpush.msra.mxu0 %v3607
    %3635 = vmatpush.msra.mxu0 %v3606
    %3636 = vmatpush.msra.mxu0 %v3605
    %3637 = vmatpush.msra.mxu0 %v3604
    %3638 = vmatpush.msra.mxu0 %v3603
    %3639 = vmatpush.msra.mxu0 %v3602
    %3640 = vmatpush.msra.mxu0 %v3601
    %3641 = vmatpush.msra.mxu0 %v3600
    %3642 = vmatpush.msra.mxu0 %v3599
    %3643 = vmatpush.msra.mxu0 %v3598
    %3644 = vmatpush.msra.mxu0 %v3597
    %3645 = vmatpush.msra.mxu0 %v3596
    %3646 = vmatmul.f32.gmra.mxu0 %v3622
    %v3647 = vpop.f32.mrf.mxu0
    %v3648 = vadd.f32 0.0, %v3647
    %3649 = vdwg.mxu0
    %v3650 = vmul.f32 %v3648, %v3629
    %3651 = vadd.xlane.f32.xlu0 %v3650
    %v3652 = vpop.xlane.xlu0 %3651
    %s3653 = scalar_lea.vmem %s6, 56
    %v3654 = vld [vmem:[%s3653] sm:$0xff]
    %s3655 = scalar_lea.vmem %s5, 56
    %v3656 = vld [vmem:[%s3655] sm:$0xff]
    %v3657 = vmul.f32 %v3656, 2.0
    %v3658 = vsub.f32 %v3657, 1.0
    %v3659 = vmul.f32 %v3654, %v3658
    %v3660 = vmul.f32 %v3652, %v3659
    %v3661 = vsel %vm503, %v3660, 0.0
    %v3662 = vrot.slane %v3661, 4
    %v3663 = vadd.f32 %v3661, %v3662
    %v3664 = vrot.slane %v3663, 2
    %v3665 = vadd.f32 %v3663, %v3664
    %v3666 = vrot.slane %v3665, 1
    %v3667 = vadd.f32 %v3665, %v3666
    %vm3668 = vcmp.eq.s32.totalorder %v33, 7
    %v3669 = vsel %vm3668, %v3667, 0.0
    %v3670 = vadd.f32 %v3219, %v3669
    %3671 = vst [vmem:[#allocation2 + $0x380] sm:$0xff] %v3596
    %3672 = vst [vmem:[#allocation2 + $0x388] sm:$0xff] %v3597
    %3673 = vst [vmem:[#allocation2 + $0x390] sm:$0xff] %v3598
    %3674 = vst [vmem:[#allocation2 + $0x398] sm:$0xff] %v3599
    %3675 = vst [vmem:[#allocation2 + $0x3a0] sm:$0xff] %v3600
    %3676 = vst [vmem:[#allocation2 + $0x3a8] sm:$0xff] %v3601
    %3677 = vst [vmem:[#allocation2 + $0x3b0] sm:$0xff] %v3602
    %3678 = vst [vmem:[#allocation2 + $0x3b8] sm:$0xff] %v3603
    %3679 = vst [vmem:[#allocation2 + $0x3c0] sm:$0xff] %v3604
    %3680 = vst [vmem:[#allocation2 + $0x3c8] sm:$0xff] %v3605
    %3681 = vst [vmem:[#allocation2 + $0x3d0] sm:$0xff] %v3606
    %3682 = vst [vmem:[#allocation2 + $0x3d8] sm:$0xff] %v3607
    %3683 = vst [vmem:[#allocation2 + $0x3e0] sm:$0xff] %v3608
    %3684 = vst [vmem:[#allocation2 + $0x3e8] sm:$0xff] %v3609
    %3685 = vst [vmem:[#allocation2 + $0x3f0] sm:$0xff] %v3610
    %3686 = vst [vmem:[#allocation2 + $0x3f8] sm:$0xff] %v3611
    %v3687 = vld [vmem:[%s7] sm:$0xff]
    %3688 = vadd.xlane.f32.xlu0 %v3687
    %v3689 = vpop.xlane.xlu0 %3688
    %v3690 = vsub.f32 %v3689, 1.0
    %v3691 = vcvt.f32.s32.to.zero.pseudo %v3690
    %s3692 = scalar_lea.vmem [#allocation2], 1
    %v3693 = vld [vmem:[%s3692] ss:$128 sm:$0x1]
    %v3694 = vld [vmem:[%s3692] ss:$128 sm:$0x2]
    %v3695 = vor.u32 %v3693, %v3694
    %v3696 = vld [vmem:[%s3692] ss:$128 sm:$0x4]
    %v3697 = vor.u32 %v3695, %v3696
    %v3698 = vld [vmem:[%s3692] ss:$128 sm:$0x8]
    %v3699 = vor.u32 %v3697, %v3698
    %v3700 = vld [vmem:[%s3692] ss:$128 sm:$0x10]
    %v3701 = vor.u32 %v3699, %v3700
    %v3702 = vld [vmem:[%s3692] ss:$128 sm:$0x20]
    %v3703 = vor.u32 %v3701, %v3702
    %v3704 = vld [vmem:[%s3692] ss:$128 sm:$0x40]
    %v3705 = vor.u32 %v3703, %v3704
    %v3706 = vld [vmem:[%s3692] ss:$128 sm:$0x80]
    %v3707 = vor.u32 %v3705, %v3706
    %v3708 = vadd.f32 %v3707, 0.0
    %vm3709 = vcmp.eq.s32.totalorder %v3691, 1
    %v3710 = vsel %vm3709, 1, 0
    %vm3711 = vcmp.eq.s32.totalorder %v3710, 1
    %v3712 = vsel %vm3711, %v3708, 0.0
    %vm3713 = vcmp.le.s32.totalorder %v31, 1
    %v3714 = vsel %vm3713, 1, 0
    %vm3715 = vcmp.eq.s32.totalorder %v3714, 1
    %v3716 = vsel %vm3715, %v3708, -inf
    %3717 = vmax.xlane.f32.xlu0 %v3716
    %v3718 = vpop.xlane.xlu0 %3717
    %v3719 = vsub.f32 %v3716, %v3718
    %v3720 = vmul.f32 %v3719, 1.442695
    %v3721 = vpow.pop %v3720
    %3722 = vadd.xlane.f32.xlu0 %v3721
    %v3723 = vpop.xlane.xlu0 %3722
    %v3724 = vlog2.pop %v3723
    %v3725 = vmul.f32 %v3724, 0.6931472
    %v3726 = vadd.f32 %v3718, %v3725
    %vm3727 = vcmp.eq.s32.totalorder %v31, 2
    %v3728 = vsel %vm3727, 1, 0
    %vm3729 = vcmp.eq.s32.totalorder %v3728, 1
    %v3730 = vsel %vm3729, %v3726, 0.0
    %s3731 = scalar_lea.vmem [#allocation2], 2
    %v3732 = vld [vmem:[%s3731] ss:$128 sm:$0x1]
    %v3733 = vld [vmem:[%s3731] ss:$128 sm:$0x2]
    %v3734 = vor.u32 %v3732, %v3733
    %v3735 = vld [vmem:[%s3731] ss:$128 sm:$0x4]
    %v3736 = vor.u32 %v3734, %v3735
    %v3737 = vld [vmem:[%s3731] ss:$128 sm:$0x8]
    %v3738 = vor.u32 %v3736, %v3737
    %v3739 = vld [vmem:[%s3731] ss:$128 sm:$0x10]
    %v3740 = vor.u32 %v3738, %v3739
    %v3741 = vld [vmem:[%s3731] ss:$128 sm:$0x20]
    %v3742 = vor.u32 %v3740, %v3741
    %v3743 = vld [vmem:[%s3731] ss:$128 sm:$0x40]
    %v3744 = vor.u32 %v3742, %v3743
    %v3745 = vld [vmem:[%s3731] ss:$128 sm:$0x80]
    %v3746 = vor.u32 %v3744, %v3745
    %v3747 = vsel %vm81, 1, 0
    %vm3748 = vcmp.eq.s32.totalorder %v3747, 1
    %v3749 = vsel %vm3748, %v3726, %v3730
    %v3750 = vadd.f32 %v3749, %v3746
    %vm3751 = vcmp.eq.s32.totalorder %v3691, 2
    %v3752 = vsel %vm3751, 1, 0
    %vm3753 = vcmp.eq.s32.totalorder %v3752, 1
    %v3754 = vsel %vm3753, %v3750, %v3712
    %vm3755 = vcmp.le.s32.totalorder %v31, 2
    %v3756 = vsel %vm3755, 1, 0
    %vm3757 = vcmp.eq.s32.totalorder %v3756, 1
    %v3758 = vsel %vm3757, %v3750, -inf
    %3759 = vmax.xlane.f32.xlu0 %v3758
    %v3760 = vpop.xlane.xlu0 %3759
    %v3761 = vsub.f32 %v3758, %v3760
    %v3762 = vmul.f32 %v3761, 1.442695
    %v3763 = vpow.pop %v3762
    %3764 = vadd.xlane.f32.xlu0 %v3763
    %v3765 = vpop.xlane.xlu0 %3764
    %v3766 = vlog2.pop %v3765
    %v3767 = vmul.f32 %v3766, 0.6931472
    %v3768 = vadd.f32 %v3760, %v3767
    %vm3769 = vcmp.eq.s32.totalorder %v31, 3
    %v3770 = vsel %vm3769, 1, 0
    %vm3771 = vcmp.eq.s32.totalorder %v3770, 1
    %v3772 = vsel %vm3771, %v3768, %v3730
    %s3773 = scalar_lea.vmem [#allocation2], 3
    %v3774 = vld [vmem:[%s3773] ss:$128 sm:$0x1]
    %v3775 = vld [vmem:[%s3773] ss:$128 sm:$0x2]
    %v3776 = vor.u32 %v3774, %v3775
    %v3777 = vld [vmem:[%s3773] ss:$128 sm:$0x4]
    %v3778 = vor.u32 %v3776, %v3777
    %v3779 = vld [vmem:[%s3773] ss:$128 sm:$0x8]
    %v3780 = vor.u32 %v3778, %v3779
    %v3781 = vld [vmem:[%s3773] ss:$128 sm:$0x10]
    %v3782 = vor.u32 %v3780, %v3781
    %v3783 = vld [vmem:[%s3773] ss:$128 sm:$0x20]
    %v3784 = vor.u32 %v3782, %v3783
    %v3785 = vld [vmem:[%s3773] ss:$128 sm:$0x40]
    %v3786 = vor.u32 %v3784, %v3785
    %v3787 = vld [vmem:[%s3773] ss:$128 sm:$0x80]
    %v3788 = vor.u32 %v3786, %v3787
    %v3789 = vsel %vm3748, %v3768, %v3772
    %v3790 = vadd.f32 %v3789, %v3788
    %vm3791 = vcmp.eq.s32.totalorder %v3691, 3
    %v3792 = vsel %vm3791, 1, 0
    %vm3793 = vcmp.eq.s32.totalorder %v3792, 1
    %v3794 = vsel %vm3793, %v3790, %v3754
    %vm3795 = vcmp.le.s32.totalorder %v31, 3
    %v3796 = vsel %vm3795, 1, 0
    %vm3797 = vcmp.eq.s32.totalorder %v3796, 1
    %v3798 = vsel %vm3797, %v3790, -inf
    %3799 = vmax.xlane.f32.xlu0 %v3798
    %v3800 = vpop.xlane.xlu0 %3799
    %v3801 = vsub.f32 %v3798, %v3800
    %v3802 = vmul.f32 %v3801, 1.442695
    %v3803 = vpow.pop %v3802
    %3804 = vadd.xlane.f32.xlu0 %v3803
    %v3805 = vpop.xlane.xlu0 %3804
    %v3806 = vlog2.pop %v3805
    %v3807 = vmul.f32 %v3806, 0.6931472
    %v3808 = vadd.f32 %v3800, %v3807
    %vm3809 = vcmp.eq.s32.totalorder %v31, 4
    %v3810 = vsel %vm3809, 1, 0
    %vm3811 = vcmp.eq.s32.totalorder %v3810, 1
    %v3812 = vsel %vm3811, %v3808, %v3772
    %s3813 = scalar_lea.vmem [#allocation2], 4
    %v3814 = vld [vmem:[%s3813] ss:$128 sm:$0x1]
    %v3815 = vld [vmem:[%s3813] ss:$128 sm:$0x2]
    %v3816 = vor.u32 %v3814, %v3815
    %v3817 = vld [vmem:[%s3813] ss:$128 sm:$0x4]
    %v3818 = vor.u32 %v3816, %v3817
    %v3819 = vld [vmem:[%s3813] ss:$128 sm:$0x8]
    %v3820 = vor.u32 %v3818, %v3819
    %v3821 = vld [vmem:[%s3813] ss:$128 sm:$0x10]
    %v3822 = vor.u32 %v3820, %v3821
    %v3823 = vld [vmem:[%s3813] ss:$128 sm:$0x20]
    %v3824 = vor.u32 %v3822, %v3823
    %v3825 = vld [vmem:[%s3813] ss:$128 sm:$0x40]
    %v3826 = vor.u32 %v3824, %v3825
    %v3827 = vld [vmem:[%s3813] ss:$128 sm:$0x80]
    %v3828 = vor.u32 %v3826, %v3827
    %v3829 = vsel %vm3748, %v3808, %v3812
    %v3830 = vadd.f32 %v3829, %v3828
    %vm3831 = vcmp.eq.s32.totalorder %v3691, 4
    %v3832 = vsel %vm3831, 1, 0
    %vm3833 = vcmp.eq.s32.totalorder %v3832, 1
    %v3834 = vsel %vm3833, %v3830, %v3794
    %vm3835 = vcmp.le.s32.totalorder %v31, 4
    %v3836 = vsel %vm3835, 1, 0
    %vm3837 = vcmp.eq.s32.totalorder %v3836, 1
    %v3838 = vsel %vm3837, %v3830, -inf
    %3839 = vmax.xlane.f32.xlu0 %v3838
    %v3840 = vpop.xlane.xlu0 %3839
    %v3841 = vsub.f32 %v3838, %v3840
    %v3842 = vmul.f32 %v3841, 1.442695
    %v3843 = vpow.pop %v3842
    %3844 = vadd.xlane.f32.xlu0 %v3843
    %v3845 = vpop.xlane.xlu0 %3844
    %v3846 = vlog2.pop %v3845
    %v3847 = vmul.f32 %v3846, 0.6931472
    %v3848 = vadd.f32 %v3840, %v3847
    %vm3849 = vcmp.eq.s32.totalorder %v31, 5
    %v3850 = vsel %vm3849, 1, 0
    %vm3851 = vcmp.eq.s32.totalorder %v3850, 1
    %v3852 = vsel %vm3851, %v3848, %v3812
    %s3853 = scalar_lea.vmem [#allocation2], 5
    %v3854 = vld [vmem:[%s3853] ss:$128 sm:$0x1]
    %v3855 = vld [vmem:[%s3853] ss:$128 sm:$0x2]
    %v3856 = vor.u32 %v3854, %v3855
    %v3857 = vld [vmem:[%s3853] ss:$128 sm:$0x4]
    %v3858 = vor.u32 %v3856, %v3857
    %v3859 = vld [vmem:[%s3853] ss:$128 sm:$0x8]
    %v3860 = vor.u32 %v3858, %v3859
    %v3861 = vld [vmem:[%s3853] ss:$128 sm:$0x10]
    %v3862 = vor.u32 %v3860, %v3861
    %v3863 = vld [vmem:[%s3853] ss:$128 sm:$0x20]
    %v3864 = vor.u32 %v3862, %v3863
    %v3865 = vld [vmem:[%s3853] ss:$128 sm:$0x40]
    %v3866 = vor.u32 %v3864, %v3865
    %v3867 = vld [vmem:[%s3853] ss:$128 sm:$0x80]
    %v3868 = vor.u32 %v3866, %v3867
    %v3869 = vsel %vm3748, %v3848, %v3852
    %v3870 = vadd.f32 %v3869, %v3868
    %vm3871 = vcmp.eq.s32.totalorder %v3691, 5
    %v3872 = vsel %vm3871, 1, 0
    %vm3873 = vcmp.eq.s32.totalorder %v3872, 1
    %v3874 = vsel %vm3873, %v3870, %v3834
    %vm3875 = vcmp.le.s32.totalorder %v31, 5
    %v3876 = vsel %vm3875, 1, 0
    %vm3877 = vcmp.eq.s32.totalorder %v3876, 1
    %v3878 = vsel %vm3877, %v3870, -inf
    %3879 = vmax.xlane.f32.xlu0 %v3878
    %v3880 = vpop.xlane.xlu0 %3879
    %v3881 = vsub.f32 %v3878, %v3880
    %v3882 = vmul.f32 %v3881, 1.442695
    %v3883 = vpow.pop %v3882
    %3884 = vadd.xlane.f32.xlu0 %v3883
    %v3885 = vpop.xlane.xlu0 %3884
    %v3886 = vlog2.pop %v3885
    %v3887 = vmul.f32 %v3886, 0.6931472
    %v3888 = vadd.f32 %v3880, %v3887
    %vm3889 = vcmp.eq.s32.totalorder %v31, 6
    %v3890 = vsel %vm3889, 1, 0
    %vm3891 = vcmp.eq.s32.totalorder %v3890, 1
    %v3892 = vsel %vm3891, %v3888, %v3852
    %s3893 = scalar_lea.vmem [#allocation2], 6
    %v3894 = vld [vmem:[%s3893] ss:$128 sm:$0x1]
    %v3895 = vld [vmem:[%s3893] ss:$128 sm:$0x2]
    %v3896 = vor.u32 %v3894, %v3895
    %v3897 = vld [vmem:[%s3893] ss:$128 sm:$0x4]
    %v3898 = vor.u32 %v3896, %v3897
    %v3899 = vld [vmem:[%s3893] ss:$128 sm:$0x8]
    %v3900 = vor.u32 %v3898, %v3899
    %v3901 = vld [vmem:[%s3893] ss:$128 sm:$0x10]
    %v3902 = vor.u32 %v3900, %v3901
    %v3903 = vld [vmem:[%s3893] ss:$128 sm:$0x20]
    %v3904 = vor.u32 %v3902, %v3903
    %v3905 = vld [vmem:[%s3893] ss:$128 sm:$0x40]
    %v3906 = vor.u32 %v3904, %v3905
    %v3907 = vld [vmem:[%s3893] ss:$128 sm:$0x80]
    %v3908 = vor.u32 %v3906, %v3907
    %v3909 = vsel %vm3748, %v3888, %v3892
    %v3910 = vadd.f32 %v3909, %v3908
    %vm3911 = vcmp.eq.s32.totalorder %v3691, 6
    %v3912 = vsel %vm3911, 1, 0
    %vm3913 = vcmp.eq.s32.totalorder %v3912, 1
    %v3914 = vsel %vm3913, %v3910, %v3874
    %vm3915 = vcmp.le.s32.totalorder %v31, 6
    %v3916 = vsel %vm3915, 1, 0
    %vm3917 = vcmp.eq.s32.totalorder %v3916, 1
    %v3918 = vsel %vm3917, %v3910, -inf
    %3919 = vmax.xlane.f32.xlu0 %v3918
    %v3920 = vpop.xlane.xlu0 %3919
    %v3921 = vsub.f32 %v3918, %v3920
    %v3922 = vmul.f32 %v3921, 1.442695
    %v3923 = vpow.pop %v3922
    %3924 = vadd.xlane.f32.xlu0 %v3923
    %v3925 = vpop.xlane.xlu0 %3924
    %v3926 = vlog2.pop %v3925
    %v3927 = vmul.f32 %v3926, 0.6931472
    %v3928 = vadd.f32 %v3920, %v3927
    %vm3929 = vcmp.eq.s32.totalorder %v31, 7
    %v3930 = vsel %vm3929, 1, 0
    %vm3931 = vcmp.eq.s32.totalorder %v3930, 1
    %v3932 = vsel %vm3931, %v3928, %v3892
    %s3933 = scalar_lea.vmem [#allocation2], 7
    %v3934 = vld [vmem:[%s3933] ss:$128 sm:$0x1]
    %v3935 = vld [vmem:[%s3933] ss:$128 sm:$0x2]
    %v3936 = vor.u32 %v3934, %v3935
    %v3937 = vld [vmem:[%s3933] ss:$128 sm:$0x4]
    %v3938 = vor.u32 %v3936, %v3937
    %v3939 = vld [vmem:[%s3933] ss:$128 sm:$0x8]
    %v3940 = vor.u32 %v3938, %v3939
    %v3941 = vld [vmem:[%s3933] ss:$128 sm:$0x10]
    %v3942 = vor.u32 %v3940, %v3941
    %v3943 = vld [vmem:[%s3933] ss:$128 sm:$0x20]
    %v3944 = vor.u32 %v3942, %v3943
    %v3945 = vld [vmem:[%s3933] ss:$128 sm:$0x40]
    %v3946 = vor.u32 %v3944, %v3945
    %v3947 = vld [vmem:[%s3933] ss:$128 sm:$0x80]
    %v3948 = vor.u32 %v3946, %v3947
    %v3949 = vsel %vm3748, %v3928, %v3932
    %v3950 = vadd.f32 %v3949, %v3948
    %vm3951 = vcmp.eq.s32.totalorder %v3691, 7
    %v3952 = vsel %vm3951, 1, 0
    %vm3953 = vcmp.eq.s32.totalorder %v3952, 1
    %v3954 = vsel %vm3953, %v3950, %v3914
    %vm3955 = vcmp.le.s32.totalorder %v31, 7
    %v3956 = vsel %vm3955, 1, 0
    %vm3957 = vcmp.eq.s32.totalorder %v3956, 1
    %v3958 = vsel %vm3957, %v3950, -inf
    %3959 = vmax.xlane.f32.xlu0 %v3958
    %v3960 = vpop.xlane.xlu0 %3959
    %v3961 = vsub.f32 %v3958, %v3960
    %v3962 = vmul.f32 %v3961, 1.442695
    %v3963 = vpow.pop %v3962
    %3964 = vadd.xlane.f32.xlu0 %v3963
    %v3965 = vpop.xlane.xlu0 %3964
    %v3966 = vlog2.pop %v3965
    %v3967 = vmul.f32 %v3966, 0.6931472
    %v3968 = vadd.f32 %v3960, %v3967
    %vm3969 = vcmp.eq.s32.totalorder %v31, 8
    %v3970 = vsel %vm3969, 1, 0
    %vm3971 = vcmp.eq.s32.totalorder %v3970, 1
    %v3972 = vsel %vm3971, %v3968, %v3932
    %s3973 = scalar_lea.vmem [#allocation2], 8
    %v3974 = vld [vmem:[%s3973] ss:$128 sm:$0x1]
    %v3975 = vld [vmem:[%s3973] ss:$128 sm:$0x2]
    %v3976 = vor.u32 %v3974, %v3975
    %v3977 = vld [vmem:[%s3973] ss:$128 sm:$0x4]
    %v3978 = vor.u32 %v3976, %v3977
    %v3979 = vld [vmem:[%s3973] ss:$128 sm:$0x8]
    %v3980 = vor.u32 %v3978, %v3979
    %v3981 = vld [vmem:[%s3973] ss:$128 sm:$0x10]
    %v3982 = vor.u32 %v3980, %v3981
    %v3983 = vld [vmem:[%s3973] ss:$128 sm:$0x20]
    %v3984 = vor.u32 %v3982, %v3983
    %v3985 = vld [vmem:[%s3973] ss:$128 sm:$0x40]
    %v3986 = vor.u32 %v3984, %v3985
    %v3987 = vld [vmem:[%s3973] ss:$128 sm:$0x80]
    %v3988 = vor.u32 %v3986, %v3987
    %v3989 = vsel %vm3748, %v3968, %v3972
    %v3990 = vadd.f32 %v3989, %v3988
    %vm3991 = vcmp.eq.s32.totalorder %v3691, 8
    %v3992 = vsel %vm3991, 1, 0
    %vm3993 = vcmp.eq.s32.totalorder %v3992, 1
    %v3994 = vsel %vm3993, %v3990, %v3954
    %vm3995 = vcmp.le.s32.totalorder %v31, %v3691
    %v3996 = vsel %vm3995, %v3994, 0.0
    %v3997 = vlog2.pop %v3687
    %v3998 = vmul.f32 %v3997, 0.6931472
    %v3999 = vadd.f32 %v3996, %v3998
    %4000 = vmax.xlane.f32.xlu0 %v3999
    %v4001 = vpop.xlane.xlu0 %4000
    %v4002 = vsub.f32 %v3999, %v4001
    %v4003 = vmul.f32 %v4002, 1.442695
    %v4004 = vpow.pop %v4003
    %4005 = vadd.xlane.f32.xlu0 %v4004
    %v4006 = vpop.xlane.xlu0 %4005
    %v4007 = vlog2.pop %v4006
    %v4008 = vmul.f32 %v4007, 0.6931472
    %v4009 = vadd.f32 %v4001, %v4008
    %v4010 = vsub.f32 %v3670, %v4009
    %4012 = vset.pattern.permute.xlu0 0
    %4013 = vperm.xlu0 %4012, %v4010
    %v4014 = vpop.permute.xlu0 %4013
    %4016 = vst [vmem:[#allocation3] sm:$0xff] %v4014
    // Predicated region
    $region34: #{tpu_custom_call.1} parent=1 // pred_check
      _
    $region35: #{tpu_custom_call.1} parent=1 // pred_check_branch
      %4018 = sbr.rel (0) target = $region37
    $region36: #{tpu_custom_call.1} parent=1 // pred_region
      %4020 = vsyncadd [#allocation4], 0
      %s4022 = sshll.u32 [#allocation3], 4
      %s4023 = int_to_ptr.vmem [resolvable:$true] %s4022
      %s4024 = sshll.u32 %s8, 4
      %s4025 = int_to_ptr.hbm [resolvable:$true] %s4024
      %4027 = dma.vmem_to_hbm [thread:$0]  %s4023, 128, %s4025, [#allocation4]
    $region37: #{tpu_custom_call.1} parent=1 // pred_fallthru
      _
    // Predicated region
    $region38: #{tpu_custom_call.1} parent=1 // pred_check
      _
    $region39: #{tpu_custom_call.1} parent=1 // pred_check_branch
      %4029 = sbr.rel (0) target = $region41
    $region40: #{tpu_custom_call.1} parent=1 // pred_region
      %4031 = dma.done [#allocation4], 128
    $region41: #{tpu_custom_call.1} parent=1 // pred_fallthru
      _
    %4032 = vsyncpa [#allocation4], 1

</llo_original>
